<compile_context>
chip_gen: v7x
topology: tpu7x:2x2x1
jax: 0.10.0
libtpu: 0.0.40
codegen_flags: <defaults>
</compile_context>

<pallas_src>
import jax
import jax.numpy as jnp
from jax.experimental import pallas as pl
from jax.experimental.pallas import tpu as pltpu


def _bottleneck_kernel(x_ref, mask_ref,
                       w1_ref, s1_ref, b1_ref,
                       w2_ref, s2_ref, b2_ref,
                       w3_ref, s3_ref, b3_ref,
                       out_ref, h1pad_ref, col_ref):
    # x_ref     : (1, M_pad, Cin)   bf16  spatially zero-padded, row-flattened
    # mask_ref  : (M_out, 1)        f32   1 on valid columns of interior rows
    # w1_ref    : (Cin, P)          bf16
    # w2_ref    : (9*P, P)          bf16  im2col layout (tap-major, HWIO order)
    # w3_ref    : (P, Cexp)         bf16
    # s*/b*     : (1, C)            f32   folded BatchNorm scale / bias
    # out_ref   : (1, H*W, Cexp)    f32   compact NHWC rows
    # h1pad_ref : (M_pad, P)        bf16  scratch (padded conv1 activation)
    # col_ref   : (M_out, 9*P)      bf16  scratch (im2col buffer)
    M_pad = x_ref.shape[1]
    P = w1_ref.shape[1]
    M_out = col_ref.shape[0]
    Wp = (M_pad - M_out) // 3            # padded row width (static)
    HW = out_ref.shape[1]
    H = M_out // Wp
    W = HW // H

    # ---- zero the pad-border rows of the bf16 activation scratch -----------
    # (done every step: 3*Wp rows is tiny, and it keeps the kernel free of
    #  cross-step scratch state, which matters under megacore grid sharding)
    h1pad_ref[pl.ds(0, Wp), :] = jnp.zeros((Wp, P), jnp.bfloat16)
    tail = M_pad - M_out - Wp
    h1pad_ref[pl.ds(Wp + M_out, tail), :] = jnp.zeros((tail, P), jnp.bfloat16)

    # ---- conv1 (1x1) + bn1 + relu on the interior rows only ----------------
    x_in = x_ref[0, pl.ds(Wp, M_out), :]                       # (M_out, Cin)
    h1 = jnp.dot(x_in, w1_ref[...], preferred_element_type=jnp.float32)
    h1 = jnp.maximum(h1 * s1_ref[...] + b1_ref[...], 0.0) * mask_ref[...]
    h1pad_ref[pl.ds(Wp, M_out), :] = h1.astype(jnp.bfloat16)   # single cast

    # ---- conv2 (3x3, stride=1, pad=1): im2col + one K=9*P MXU matmul --------
    # output row q = h*Wp + w reads padded activation row q + dh*Wp + dw.
    for t in range(9):                                          # static unroll
        dh, dw = t // 3, t % 3
        off = dh * Wp + dw                                      # static int
        col_ref[:, pl.ds(t * P, P)] = h1pad_ref[pl.ds(off, M_out), :]
    h2 = jnp.dot(col_ref[...], w2_ref[...],
                 preferred_element_type=jnp.float32)            # (M_out, P)
    h2 = jnp.maximum(h2 * s2_ref[...] + b2_ref[...], 0.0)

    # ---- conv3 (1x1) + bn3 ---------------------------------------------------
    h3 = jnp.dot(h2.astype(jnp.bfloat16), w3_ref[...],
                 preferred_element_type=jnp.float32)            # (M_out, Cexp)
    h3 = h3 * s3_ref[...] + b3_ref[...]

    # ---- residual add (downsample=None -> identity) + relu --------------------
    # x row aligned to padded-grid output row q is q + Wp + 1.
    res = x_ref[0, pl.ds(Wp + 1, M_out), :].astype(jnp.float32)
    y = jnp.maximum(h3 + res, 0.0)                              # (M_out, Cexp)

    # ---- compact store: drop the Wp-W junk columns per image row -------------
    # Offsets h*Wp and h*W are multiples of 8 and Cexp is a multiple of 128,
    # so every store is a sublane-aligned, lane-dense unmasked vst.
    for h in range(H):                                          # static unroll
        out_ref[0, pl.ds(h * W, W), :] = y[h * Wp:h * Wp + W, :].astype(
            out_ref.dtype)


def bottleneck_forward(x_nhwc, params):
    """NHWC in, NHWC out (channels-last keeps C on the 128-wide lane axis)."""
    w1, s1, b1 = params["w1"], params["s1"], params["b1"]
    w2c, s2, b2 = params["w2col"], params["s2"], params["b2"]
    w3, s3, b3 = params["w3"], params["s3"], params["b3"]

    N, H, W, Cin = x_nhwc.shape
    P = w1.shape[1]
    Cexp = w3.shape[1]
    assert Cin == Cexp, "identity residual requires inplanes == planes * 4"
    assert W % 8 == 0, "compact per-row stores assume W is a multiple of 8"

    # Padded row width, rounded up to a sublane multiple so dh*Wp tap offsets
    # are aligned; 1 top + 2 bottom pad rows (the last row is a guard).
    Wp = ((W + 2 + 7) // 8) * 8
    M_out = H * Wp
    M_pad = (H + 3) * Wp

    # Pad once in the wrapper, flatten rows, and cast to bf16 (halves the
    # per-step HBM->VMEM DMA; the residual becomes bf16-rounded x).
    x_pad = jnp.pad(x_nhwc, ((0, 0), (1, 2), (1, Wp - W - 1), (0, 0)))
    x_flat = x_pad.reshape(N, M_pad, Cin).astype(jnp.bfloat16)

    # Interior-column mask for the interior row block (valid cols 1..W).
    col_idx = jnp.arange(Wp)
    row_mask = ((col_idx >= 1) & (col_idx <= W)).astype(jnp.float32)
    mask = jnp.tile(row_mask, (H,)).reshape(M_out, 1)

    def const(shape):
        nd = len(shape)
        return pl.BlockSpec(shape, lambda n, _nd=nd: (0,) * _nd)

    cost = pl.CostEstimate(
        flops=2 * N * M_out * (Cin * P + 9 * P * P + P * Cexp),
        transcendentals=0,
        bytes_accessed=(x_flat.size * 2 + mask.size * 4
                        + (w1.size + w2c.size + w3.size) * 2
                        + (s1.size + b1.size + s2.size + b2.size
                           + s3.size + b3.size) * 4
                        + N * H * W * Cexp * 4))

    out_flat = pl.pallas_call(
        _bottleneck_kernel,
        out_shape=jax.ShapeDtypeStruct((N, H * W, Cexp), jnp.float32),
        grid=(N,),
        in_specs=[
            pl.BlockSpec((1, M_pad, Cin), lambda n: (n, 0, 0)),
            const(mask.shape),
            const(w1.shape), const(s1.shape), const(b1.shape),
            const(w2c.shape), const(s2.shape), const(b2.shape),
            const(w3.shape), const(s3.shape), const(b3.shape),
        ],
        out_specs=pl.BlockSpec((1, H * W, Cexp), lambda n: (n, 0, 0)),
        scratch_shapes=[pltpu.VMEM((M_pad, P), jnp.bfloat16),
                        pltpu.VMEM((M_out, 9 * P), jnp.bfloat16)],
        compiler_params=pltpu.CompilerParams(
            dimension_semantics=("parallel",)),
        cost_estimate=cost,
    )(x_flat, mask, w1, s1, b1, w2c, s2, b2, w3, s3, b3)

    # Compact output: this reshape is free (no junk columns to slice away).
    return out_flat.reshape(N, H, W, Cexp)


def init_params(key, inplanes, planes, dtype=jnp.float32):
    """Deterministic synthetic parameters with the module's shapes/layouts."""
    expansion = 4
    eps = 1e-5
    ks = jax.random.split(key, 15)

    # PyTorch conv weight layout: (out_ch, in_ch, kh, kw)
    w1_t = 0.1 * jax.random.normal(ks[0], (planes, inplanes, 1, 1), dtype)
    w2_t = 0.1 * jax.random.normal(ks[1], (planes, planes, 3, 3), dtype)
    w3_t = 0.1 * jax.random.normal(ks[2], (planes * expansion, planes, 1, 1),
                                   dtype)

    def bn_fold(kg, kb, km, kv, c):
        gamma = jax.random.uniform(kg, (c,), dtype, 0.5, 1.5)
        beta = 0.1 * jax.random.normal(kb, (c,), dtype)
        rmean = 0.1 * jax.random.normal(km, (c,), dtype)
        rvar = jax.random.uniform(kv, (c,), dtype, 0.5, 1.5)
        scale = gamma * jax.lax.rsqrt(rvar + eps)
        bias = beta - rmean * scale
        return scale[None, :], bias[None, :]          # (1, C) for broadcasting

    s1, b1 = bn_fold(ks[3], ks[4], ks[5], ks[6], planes)
    s2, b2 = bn_fold(ks[7], ks[8], ks[9], ks[10], planes)
    s3, b3 = bn_fold(ks[11], ks[12], ks[13], ks[14], planes * expansion)

    # Kernel-friendly layouts, conv weights in bf16 for the MXU.  w2 is stored
    # in im2col order: row block t = dh*3+dw holds w2[dh, dw] as (in, out).
    w2_hwio = jnp.transpose(w2_t, (2, 3, 1, 0))                      # HWIO
    return {
        "w1": jnp.transpose(w1_t[:, :, 0, 0], (1, 0)).astype(jnp.bfloat16),
        "w2col": w2_hwio.reshape(9 * planes, planes).astype(jnp.bfloat16),
        "w3": jnp.transpose(w3_t[:, :, 0, 0], (1, 0)).astype(jnp.bfloat16),
        "s1": s1, "b1": b1, "s2": s2, "b2": b2, "s3": s3, "b3": b3,
    }


def ref_forward(x_nhwc, params):
    """Pure-JAX reference: bf16 conv operands / f32 accumulation, but the
    module-faithful f32 identity residual (the kernel's residual is the
    bf16-rounded x, hence the slightly loose assert tolerance)."""
    def conv(y, w_hwio, pad):
        return jax.lax.conv_general_dilated(
            y.astype(jnp.bfloat16), w_hwio,
            window_strides=(1, 1), padding=[(pad, pad), (pad, pad)],
            dimension_numbers=("NHWC", "HWIO", "NHWC"),
            preferred_element_type=jnp.float32)

    P = params["w1"].shape[1]
    w1 = params["w1"][None, None]                    # (1,1,Cin,P)
    w2 = params["w2col"].reshape(3, 3, P, P)         # (3,3,in,out) HWIO
    w3 = params["w3"][None, None]                    # (1,1,P,4P)
    h = jnp.maximum(conv(x_nhwc, w1, 0) * params["s1"] + params["b1"], 0.0)
    h = jnp.maximum(conv(h, w2, 1) * params["s2"] + params["b2"], 0.0)
    h = conv(h, w3, 0) * params["s3"] + params["b3"]
    return jnp.maximum(h + x_nhwc, 0.0)


if __name__ == "__main__":
    key = jax.random.PRNGKey(0)
    kx, kp = jax.random.split(key)

    # inplanes == planes * expansion so the identity residual applies (module
    # defaults stride=1, downsample=None); planes*4 = 128 keeps the output
    # channel axis lane-dense.
    N, inplanes, planes, H, W = 2, 128, 32, 16, 16
    x = jax.random.normal(kx, (N, H, W, inplanes), jnp.float32)    # NHWC
    params = init_params(kp, inplanes, planes)

    out = jax.block_until_ready(bottleneck_forward(x, params))
    assert out.shape == (N, H, W, planes * 4)

    ref = ref_forward(x, params)
    max_err = float(jnp.max(jnp.abs(out - ref)))
    # 5e-2 tolerance: covers MXU accumulation-order noise plus the bf16
    # rounding of the identity residual (|x| <= ~4.5 -> error <= ~2e-2).
    assert jnp.allclose(out, ref, atol=5e-2, rtol=5e-2), max_err

    # Mirror of the module's diagnostic expression (host print omitted so
    # stdout is exactly "KERNEL_OK"):
    residual = x                                     # downsample is None
    _diag = (jnp.abs(residual).mean(), residual.mean(),
             jnp.abs(out - residual).mean()
             / (jnp.abs(out).mean() + jnp.abs(residual).mean()) / 2)
    jax.block_until_ready(_diag)

    print("KERNEL_OK")
</pallas_src>

<mosaic_0001>
module attributes {stable_mosaic.version = 11 : i64} {
  func.func @_bottleneck_kernel(%arg0: i32, %arg1: memref<1x456x128xbf16, #tpu.memory_space<vmem>>, %arg2: memref<384x1xf32, #tpu.memory_space<vmem>>, %arg3: memref<128x32xbf16, #tpu.memory_space<vmem>>, %arg4: memref<1x32xf32, #tpu.memory_space<vmem>>, %arg5: memref<1x32xf32, #tpu.memory_space<vmem>>, %arg6: memref<288x32xbf16, #tpu.memory_space<vmem>>, %arg7: memref<1x32xf32, #tpu.memory_space<vmem>>, %arg8: memref<1x32xf32, #tpu.memory_space<vmem>>, %arg9: memref<32x128xbf16, #tpu.memory_space<vmem>>, %arg10: memref<1x128xf32, #tpu.memory_space<vmem>>, %arg11: memref<1x128xf32, #tpu.memory_space<vmem>>, %arg12: memref<1x256x128xf32, #tpu.memory_space<vmem>>, %arg13: memref<456x32xbf16, #tpu.memory_space<vmem>>, %arg14: memref<384x288xbf16, #tpu.memory_space<vmem>>) attributes {dimension_semantics = [#tpu.dimension_semantics<parallel>], iteration_bounds = array<i64: 2>, scalar_prefetch = 0 : i64, scratch_operands = 2 : i64, tpu.core_type = #tpu.core_type<tc>, window_params = [{transform_indices = @transform_0, window_bounds = array<i64: 1, 456, 128>}, {pipeline_mode = #tpu.pipeline_mode<synchronous>, transform_indices = @transform_1, window_bounds = array<i64: 384, 1>}, {pipeline_mode = #tpu.pipeline_mode<synchronous>, transform_indices = @transform_2, window_bounds = array<i64: 128, 32>}, {pipeline_mode = #tpu.pipeline_mode<synchronous>, transform_indices = @transform_3, window_bounds = array<i64: 1, 32>}, {pipeline_mode = #tpu.pipeline_mode<synchronous>, transform_indices = @transform_4, window_bounds = array<i64: 1, 32>}, {pipeline_mode = #tpu.pipeline_mode<synchronous>, transform_indices = @transform_5, window_bounds = array<i64: 288, 32>}, {pipeline_mode = #tpu.pipeline_mode<synchronous>, transform_indices = @transform_6, window_bounds = array<i64: 1, 32>}, {pipeline_mode = #tpu.pipeline_mode<synchronous>, transform_indices = @transform_7, window_bounds = array<i64: 1, 32>}, {pipeline_mode = #tpu.pipeline_mode<synchronous>, transform_indices = @transform_8, window_bounds = array<i64: 32, 128>}, {pipeline_mode = #tpu.pipeline_mode<synchronous>, transform_indices = @transform_9, window_bounds = array<i64: 1, 128>}, {pipeline_mode = #tpu.pipeline_mode<synchronous>, transform_indices = @transform_10, window_bounds = array<i64: 1, 128>}, {transform_indices = @transform_11, window_bounds = array<i64: 1, 256, 128>}]} {
    %cst = arith.constant 0.000000e+00 : bf16
    %0 = vector.broadcast %cst : bf16 to vector<24x32xbf16>
    %c0 = arith.constant 0 : index
    %c0_0 = arith.constant 0 : index
    %1 = vector.load %arg13[%c0, %c0_0] : memref<456x32xbf16, #tpu.memory_space<vmem>>, vector<24x32xbf16>
    tpu.vector_store %arg13[%c0, %c0_0], %0 {strides = array<i32>} : memref<456x32xbf16, #tpu.memory_space<vmem>>, vector<24x32xbf16>,
    %cst_1 = arith.constant 0.000000e+00 : bf16
    %2 = vector.broadcast %cst_1 : bf16 to vector<48x32xbf16>
    %c408 = arith.constant 408 : index
    %c0_2 = arith.constant 0 : index
    %3 = vector.load %arg13[%c408, %c0_2] : memref<456x32xbf16, #tpu.memory_space<vmem>>, vector<48x32xbf16>
    tpu.vector_store %arg13[%c408, %c0_2], %2 {strides = array<i32>} : memref<456x32xbf16, #tpu.memory_space<vmem>>, vector<48x32xbf16>,
    %c0_3 = arith.constant 0 : index
    %c24 = arith.constant 24 : index
    %c0_4 = arith.constant 0 : index
    %4 = vector.load %arg1[%c0_3, %c24, %c0_4] : memref<1x456x128xbf16, #tpu.memory_space<vmem>>, vector<1x384x128xbf16>
    %5 = vector.shape_cast %4 : vector<1x384x128xbf16> to vector<384x128xbf16>
    %c0_5 = arith.constant 0 : index
    %c0_6 = arith.constant 0 : index
    %6 = vector.load %arg3[%c0_5, %c0_6] : memref<128x32xbf16, #tpu.memory_space<vmem>>, vector<128x32xbf16>
    %cst_7 = arith.constant dense<0.000000e+00> : vector<384x32xf32>
    %7 = tpu.matmul %5, %6, %cst_7 {dimension_numbers = #tpu.dot_dimension_numbers<[1], [0], [0], [1], [0, 0, 1, 1], [], []>} : vector<384x128xbf16>, vector<128x32xbf16>, vector<384x32xf32> -> vector<384x32xf32>
    %c0_8 = arith.constant 0 : index
    %c0_9 = arith.constant 0 : index
    %8 = vector.load %arg4[%c0_8, %c0_9] : memref<1x32xf32, #tpu.memory_space<vmem>>, vector<1x32xf32>
    %9 = vector.broadcast %8 : vector<1x32xf32> to vector<384x32xf32>
    %10 = arith.mulf %7, %9 : vector<384x32xf32>
    %c0_10 = arith.constant 0 : index
    %c0_11 = arith.constant 0 : index
    %11 = vector.load %arg5[%c0_10, %c0_11] : memref<1x32xf32, #tpu.memory_space<vmem>>, vector<1x32xf32>
    %12 = vector.broadcast %11 : vector<1x32xf32> to vector<384x32xf32>
    %13 = arith.addf %10, %12 : vector<384x32xf32>
    %cst_12 = arith.constant 0.000000e+00 : f32
    %14 = vector.broadcast %cst_12 : f32 to vector<384x32xf32>
    %15 = arith.maximumf %13, %14 : vector<384x32xf32>
    %c0_13 = arith.constant 0 : index
    %c0_14 = arith.constant 0 : index
    %16 = vector.load %arg2[%c0_13, %c0_14] : memref<384x1xf32, #tpu.memory_space<vmem>>, vector<384x1xf32>
    %17 = vector.broadcast %16 : vector<384x1xf32> to vector<384x32xf32>
    %18 = arith.mulf %15, %17 : vector<384x32xf32>
    %19 = arith.truncf %18 : vector<384x32xf32> to vector<384x32xbf16>
    %c24_15 = arith.constant 24 : index
    %c0_16 = arith.constant 0 : index
    %20 = vector.load %arg13[%c24_15, %c0_16] : memref<456x32xbf16, #tpu.memory_space<vmem>>, vector<384x32xbf16>
    tpu.vector_store %arg13[%c24_15, %c0_16], %19 {strides = array<i32>} : memref<456x32xbf16, #tpu.memory_space<vmem>>, vector<384x32xbf16>,
    %c0_17 = arith.constant 0 : index
    %c0_18 = arith.constant 0 : index
    %21 = vector.load %arg13[%c0_17, %c0_18] : memref<456x32xbf16, #tpu.memory_space<vmem>>, vector<384x32xbf16>
    %c0_19 = arith.constant 0 : index
    %c0_20 = arith.constant 0 : index
    %22 = vector.load %arg14[%c0_19, %c0_20] : memref<384x288xbf16, #tpu.memory_space<vmem>>, vector<384x32xbf16>
    tpu.vector_store %arg14[%c0_19, %c0_20], %21 {strides = array<i32>} : memref<384x288xbf16, #tpu.memory_space<vmem>>, vector<384x32xbf16>,
    %c1 = arith.constant 1 : index
    %c0_21 = arith.constant 0 : index
    %23 = vector.load %arg13[%c1, %c0_21] : memref<456x32xbf16, #tpu.memory_space<vmem>>, vector<384x32xbf16>
    %c0_22 = arith.constant 0 : index
    %c32 = arith.constant 32 : index
    %24 = vector.load %arg14[%c0_22, %c32] : memref<384x288xbf16, #tpu.memory_space<vmem>>, vector<384x32xbf16>
    tpu.vector_store %arg14[%c0_22, %c32], %23 {strides = array<i32>} : memref<384x288xbf16, #tpu.memory_space<vmem>>, vector<384x32xbf16>,
    %c2 = arith.constant 2 : index
    %c0_23 = arith.constant 0 : index
    %25 = vector.load %arg13[%c2, %c0_23] : memref<456x32xbf16, #tpu.memory_space<vmem>>, vector<384x32xbf16>
    %c0_24 = arith.constant 0 : index
    %c64 = arith.constant 64 : index
    %26 = vector.load %arg14[%c0_24, %c64] : memref<384x288xbf16, #tpu.memory_space<vmem>>, vector<384x32xbf16>
    tpu.vector_store %arg14[%c0_24, %c64], %25 {strides = array<i32>} : memref<384x288xbf16, #tpu.memory_space<vmem>>, vector<384x32xbf16>,
    %c24_25 = arith.constant 24 : index
    %c0_26 = arith.constant 0 : index
    %27 = vector.load %arg13[%c24_25, %c0_26] : memref<456x32xbf16, #tpu.memory_space<vmem>>, vector<384x32xbf16>
    %c0_27 = arith.constant 0 : index
    %c96 = arith.constant 96 : index
    %28 = vector.load %arg14[%c0_27, %c96] : memref<384x288xbf16, #tpu.memory_space<vmem>>, vector<384x32xbf16>
    tpu.vector_store %arg14[%c0_27, %c96], %27 {strides = array<i32>} : memref<384x288xbf16, #tpu.memory_space<vmem>>, vector<384x32xbf16>,
    %c25 = arith.constant 25 : index
    %c0_28 = arith.constant 0 : index
    %29 = vector.load %arg13[%c25, %c0_28] : memref<456x32xbf16, #tpu.memory_space<vmem>>, vector<384x32xbf16>
    %c0_29 = arith.constant 0 : index
    %c128 = arith.constant 128 : index
    %30 = vector.load %arg14[%c0_29, %c128] : memref<384x288xbf16, #tpu.memory_space<vmem>>, vector<384x32xbf16>
    tpu.vector_store %arg14[%c0_29, %c128], %29 {strides = array<i32>} : memref<384x288xbf16, #tpu.memory_space<vmem>>, vector<384x32xbf16>,
    %c26 = arith.constant 26 : index
    %c0_30 = arith.constant 0 : index
    %31 = vector.load %arg13[%c26, %c0_30] : memref<456x32xbf16, #tpu.memory_space<vmem>>, vector<384x32xbf16>
    %c0_31 = arith.constant 0 : index
    %c160 = arith.constant 160 : index
    %32 = vector.load %arg14[%c0_31, %c160] : memref<384x288xbf16, #tpu.memory_space<vmem>>, vector<384x32xbf16>
    tpu.vector_store %arg14[%c0_31, %c160], %31 {strides = array<i32>} : memref<384x288xbf16, #tpu.memory_space<vmem>>, vector<384x32xbf16>,
    %c48 = arith.constant 48 : index
    %c0_32 = arith.constant 0 : index
    %33 = vector.load %arg13[%c48, %c0_32] : memref<456x32xbf16, #tpu.memory_space<vmem>>, vector<384x32xbf16>
    %c0_33 = arith.constant 0 : index
    %c192 = arith.constant 192 : index
    %34 = vector.load %arg14[%c0_33, %c192] : memref<384x288xbf16, #tpu.memory_space<vmem>>, vector<384x32xbf16>
    tpu.vector_store %arg14[%c0_33, %c192], %33 {strides = array<i32>} : memref<384x288xbf16, #tpu.memory_space<vmem>>, vector<384x32xbf16>,
    %c49 = arith.constant 49 : index
    %c0_34 = arith.constant 0 : index
    %35 = vector.load %arg13[%c49, %c0_34] : memref<456x32xbf16, #tpu.memory_space<vmem>>, vector<384x32xbf16>
    %c0_35 = arith.constant 0 : index
    %c224 = arith.constant 224 : index
    %36 = vector.load %arg14[%c0_35, %c224] : memref<384x288xbf16, #tpu.memory_space<vmem>>, vector<384x32xbf16>
    tpu.vector_store %arg14[%c0_35, %c224], %35 {strides = array<i32>} : memref<384x288xbf16, #tpu.memory_space<vmem>>, vector<384x32xbf16>,
    %c50 = arith.constant 50 : index
    %c0_36 = arith.constant 0 : index
    %37 = vector.load %arg13[%c50, %c0_36] : memref<456x32xbf16, #tpu.memory_space<vmem>>, vector<384x32xbf16>
    %c0_37 = arith.constant 0 : index
    %c256 = arith.constant 256 : index
    %38 = vector.load %arg14[%c0_37, %c256] : memref<384x288xbf16, #tpu.memory_space<vmem>>, vector<384x32xbf16>
    tpu.vector_store %arg14[%c0_37, %c256], %37 {strides = array<i32>} : memref<384x288xbf16, #tpu.memory_space<vmem>>, vector<384x32xbf16>,
    %c0_38 = arith.constant 0 : index
    %c0_39 = arith.constant 0 : index
    %39 = vector.load %arg14[%c0_38, %c0_39] : memref<384x288xbf16, #tpu.memory_space<vmem>>, vector<384x288xbf16>
    %c0_40 = arith.constant 0 : index
    %c0_41 = arith.constant 0 : index
    %40 = vector.load %arg6[%c0_40, %c0_41] : memref<288x32xbf16, #tpu.memory_space<vmem>>, vector<288x32xbf16>
    %cst_42 = arith.constant dense<0.000000e+00> : vector<384x32xf32>
    %41 = tpu.matmul %39, %40, %cst_42 {dimension_numbers = #tpu.dot_dimension_numbers<[1], [0], [0], [1], [0, 0, 1, 1], [], []>} : vector<384x288xbf16>, vector<288x32xbf16>, vector<384x32xf32> -> vector<384x32xf32>
    %c0_43 = arith.constant 0 : index
    %c0_44 = arith.constant 0 : index
    %42 = vector.load %arg7[%c0_43, %c0_44] : memref<1x32xf32, #tpu.memory_space<vmem>>, vector<1x32xf32>
    %43 = vector.broadcast %42 : vector<1x32xf32> to vector<384x32xf32>
    %44 = arith.mulf %41, %43 : vector<384x32xf32>
    %c0_45 = arith.constant 0 : index
    %c0_46 = arith.constant 0 : index
    %45 = vector.load %arg8[%c0_45, %c0_46] : memref<1x32xf32, #tpu.memory_space<vmem>>, vector<1x32xf32>
    %46 = vector.broadcast %45 : vector<1x32xf32> to vector<384x32xf32>
    %47 = arith.addf %44, %46 : vector<384x32xf32>
    %cst_47 = arith.constant 0.000000e+00 : f32
    %48 = vector.broadcast %cst_47 : f32 to vector<384x32xf32>
    %49 = arith.maximumf %47, %48 : vector<384x32xf32>
    %50 = arith.truncf %49 : vector<384x32xf32> to vector<384x32xbf16>
    %c0_48 = arith.constant 0 : index
    %c0_49 = arith.constant 0 : index
    %51 = vector.load %arg9[%c0_48, %c0_49] : memref<32x128xbf16, #tpu.memory_space<vmem>>, vector<32x128xbf16>
    %cst_50 = arith.constant dense<0.000000e+00> : vector<384x128xf32>
    %52 = tpu.matmul %50, %51, %cst_50 {dimension_numbers = #tpu.dot_dimension_numbers<[1], [0], [0], [1], [0, 0, 1, 1], [], []>} : vector<384x32xbf16>, vector<32x128xbf16>, vector<384x128xf32> -> vector<384x128xf32>
    %c0_51 = arith.constant 0 : index
    %c0_52 = arith.constant 0 : index
    %53 = vector.load %arg10[%c0_51, %c0_52] : memref<1x128xf32, #tpu.memory_space<vmem>>, vector<1x128xf32>
    %54 = vector.broadcast %53 : vector<1x128xf32> to vector<384x128xf32>
    %55 = arith.mulf %52, %54 : vector<384x128xf32>
    %c0_53 = arith.constant 0 : index
    %c0_54 = arith.constant 0 : index
    %56 = vector.load %arg11[%c0_53, %c0_54] : memref<1x128xf32, #tpu.memory_space<vmem>>, vector<1x128xf32>
    %57 = vector.broadcast %56 : vector<1x128xf32> to vector<384x128xf32>
    %58 = arith.addf %55, %57 : vector<384x128xf32>
    %c0_55 = arith.constant 0 : index
    %c25_56 = arith.constant 25 : index
    %c0_57 = arith.constant 0 : index
    %59 = vector.load %arg1[%c0_55, %c25_56, %c0_57] : memref<1x456x128xbf16, #tpu.memory_space<vmem>>, vector<1x384x128xbf16>
    %60 = vector.shape_cast %59 : vector<1x384x128xbf16> to vector<384x128xbf16>
    %61 = arith.extf %60 : vector<384x128xbf16> to vector<384x128xf32>
    %62 = arith.addf %58, %61 : vector<384x128xf32>
    %cst_58 = arith.constant 0.000000e+00 : f32
    %63 = vector.broadcast %cst_58 : f32 to vector<384x128xf32>
    %64 = arith.maximumf %62, %63 : vector<384x128xf32>
    %65 = vector.extract_strided_slice %64 {offsets = [0, 0], sizes = [16, 128], strides = [1, 1]} : vector<384x128xf32> to vector<16x128xf32>
    %c0_59 = arith.constant 0 : index
    %c0_60 = arith.constant 0 : index
    %c0_61 = arith.constant 0 : index
    %66 = vector.load %arg12[%c0_59, %c0_60, %c0_61] : memref<1x256x128xf32, #tpu.memory_space<vmem>>, vector<1x16x128xf32>
    %67 = vector.shape_cast %66 : vector<1x16x128xf32> to vector<16x128xf32>
    %68 = vector.shape_cast %65 : vector<16x128xf32> to vector<1x16x128xf32>
    tpu.vector_store %arg12[%c0_59, %c0_60, %c0_61], %68 {strides = array<i32>} : memref<1x256x128xf32, #tpu.memory_space<vmem>>, vector<1x16x128xf32>,
    %69 = vector.extract_strided_slice %64 {offsets = [24, 0], sizes = [16, 128], strides = [1, 1]} : vector<384x128xf32> to vector<16x128xf32>
    %c0_62 = arith.constant 0 : index
    %c16 = arith.constant 16 : index
    %c0_63 = arith.constant 0 : index
    %70 = vector.load %arg12[%c0_62, %c16, %c0_63] : memref<1x256x128xf32, #tpu.memory_space<vmem>>, vector<1x16x128xf32>
    %71 = vector.shape_cast %70 : vector<1x16x128xf32> to vector<16x128xf32>
    %72 = vector.shape_cast %69 : vector<16x128xf32> to vector<1x16x128xf32>
    tpu.vector_store %arg12[%c0_62, %c16, %c0_63], %72 {strides = array<i32>} : memref<1x256x128xf32, #tpu.memory_space<vmem>>, vector<1x16x128xf32>,
    %73 = vector.extract_strided_slice %64 {offsets = [48, 0], sizes = [16, 128], strides = [1, 1]} : vector<384x128xf32> to vector<16x128xf32>
    %c0_64 = arith.constant 0 : index
    %c32_65 = arith.constant 32 : index
    %c0_66 = arith.constant 0 : index
    %74 = vector.load %arg12[%c0_64, %c32_65, %c0_66] : memref<1x256x128xf32, #tpu.memory_space<vmem>>, vector<1x16x128xf32>
    %75 = vector.shape_cast %74 : vector<1x16x128xf32> to vector<16x128xf32>
    %76 = vector.shape_cast %73 : vector<16x128xf32> to vector<1x16x128xf32>
    tpu.vector_store %arg12[%c0_64, %c32_65, %c0_66], %76 {strides = array<i32>} : memref<1x256x128xf32, #tpu.memory_space<vmem>>, vector<1x16x128xf32>,
    %77 = vector.extract_strided_slice %64 {offsets = [72, 0], sizes = [16, 128], strides = [1, 1]} : vector<384x128xf32> to vector<16x128xf32>
    %c0_67 = arith.constant 0 : index
    %c48_68 = arith.constant 48 : index
    %c0_69 = arith.constant 0 : index
    %78 = vector.load %arg12[%c0_67, %c48_68, %c0_69] : memref<1x256x128xf32, #tpu.memory_space<vmem>>, vector<1x16x128xf32>
    %79 = vector.shape_cast %78 : vector<1x16x128xf32> to vector<16x128xf32>
    %80 = vector.shape_cast %77 : vector<16x128xf32> to vector<1x16x128xf32>
    tpu.vector_store %arg12[%c0_67, %c48_68, %c0_69], %80 {strides = array<i32>} : memref<1x256x128xf32, #tpu.memory_space<vmem>>, vector<1x16x128xf32>,
    %81 = vector.extract_strided_slice %64 {offsets = [96, 0], sizes = [16, 128], strides = [1, 1]} : vector<384x128xf32> to vector<16x128xf32>
    %c0_70 = arith.constant 0 : index
    %c64_71 = arith.constant 64 : index
    %c0_72 = arith.constant 0 : index
    %82 = vector.load %arg12[%c0_70, %c64_71, %c0_72] : memref<1x256x128xf32, #tpu.memory_space<vmem>>, vector<1x16x128xf32>
    %83 = vector.shape_cast %82 : vector<1x16x128xf32> to vector<16x128xf32>
    %84 = vector.shape_cast %81 : vector<16x128xf32> to vector<1x16x128xf32>
    tpu.vector_store %arg12[%c0_70, %c64_71, %c0_72], %84 {strides = array<i32>} : memref<1x256x128xf32, #tpu.memory_space<vmem>>, vector<1x16x128xf32>,
    %85 = vector.extract_strided_slice %64 {offsets = [120, 0], sizes = [16, 128], strides = [1, 1]} : vector<384x128xf32> to vector<16x128xf32>
    %c0_73 = arith.constant 0 : index
    %c80 = arith.constant 80 : index
    %c0_74 = arith.constant 0 : index
    %86 = vector.load %arg12[%c0_73, %c80, %c0_74] : memref<1x256x128xf32, #tpu.memory_space<vmem>>, vector<1x16x128xf32>
    %87 = vector.shape_cast %86 : vector<1x16x128xf32> to vector<16x128xf32>
    %88 = vector.shape_cast %85 : vector<16x128xf32> to vector<1x16x128xf32>
    tpu.vector_store %arg12[%c0_73, %c80, %c0_74], %88 {strides = array<i32>} : memref<1x256x128xf32, #tpu.memory_space<vmem>>, vector<1x16x128xf32>,
    %89 = vector.extract_strided_slice %64 {offsets = [144, 0], sizes = [16, 128], strides = [1, 1]} : vector<384x128xf32> to vector<16x128xf32>
    %c0_75 = arith.constant 0 : index
    %c96_76 = arith.constant 96 : index
    %c0_77 = arith.constant 0 : index
    %90 = vector.load %arg12[%c0_75, %c96_76, %c0_77] : memref<1x256x128xf32, #tpu.memory_space<vmem>>, vector<1x16x128xf32>
    %91 = vector.shape_cast %90 : vector<1x16x128xf32> to vector<16x128xf32>
    %92 = vector.shape_cast %89 : vector<16x128xf32> to vector<1x16x128xf32>
    tpu.vector_store %arg12[%c0_75, %c96_76, %c0_77], %92 {strides = array<i32>} : memref<1x256x128xf32, #tpu.memory_space<vmem>>, vector<1x16x128xf32>,
    %93 = vector.extract_strided_slice %64 {offsets = [168, 0], sizes = [16, 128], strides = [1, 1]} : vector<384x128xf32> to vector<16x128xf32>
    %c0_78 = arith.constant 0 : index
    %c112 = arith.constant 112 : index
    %c0_79 = arith.constant 0 : index
    %94 = vector.load %arg12[%c0_78, %c112, %c0_79] : memref<1x256x128xf32, #tpu.memory_space<vmem>>, vector<1x16x128xf32>
    %95 = vector.shape_cast %94 : vector<1x16x128xf32> to vector<16x128xf32>
    %96 = vector.shape_cast %93 : vector<16x128xf32> to vector<1x16x128xf32>
    tpu.vector_store %arg12[%c0_78, %c112, %c0_79], %96 {strides = array<i32>} : memref<1x256x128xf32, #tpu.memory_space<vmem>>, vector<1x16x128xf32>,
    %97 = vector.extract_strided_slice %64 {offsets = [192, 0], sizes = [16, 128], strides = [1, 1]} : vector<384x128xf32> to vector<16x128xf32>
    %c0_80 = arith.constant 0 : index
    %c128_81 = arith.constant 128 : index
    %c0_82 = arith.constant 0 : index
    %98 = vector.load %arg12[%c0_80, %c128_81, %c0_82] : memref<1x256x128xf32, #tpu.memory_space<vmem>>, vector<1x16x128xf32>
    %99 = vector.shape_cast %98 : vector<1x16x128xf32> to vector<16x128xf32>
    %100 = vector.shape_cast %97 : vector<16x128xf32> to vector<1x16x128xf32>
    tpu.vector_store %arg12[%c0_80, %c128_81, %c0_82], %100 {strides = array<i32>} : memref<1x256x128xf32, #tpu.memory_space<vmem>>, vector<1x16x128xf32>,
    %101 = vector.extract_strided_slice %64 {offsets = [216, 0], sizes = [16, 128], strides = [1, 1]} : vector<384x128xf32> to vector<16x128xf32>
    %c0_83 = arith.constant 0 : index
    %c144 = arith.constant 144 : index
    %c0_84 = arith.constant 0 : index
    %102 = vector.load %arg12[%c0_83, %c144, %c0_84] : memref<1x256x128xf32, #tpu.memory_space<vmem>>, vector<1x16x128xf32>
    %103 = vector.shape_cast %102 : vector<1x16x128xf32> to vector<16x128xf32>
    %104 = vector.shape_cast %101 : vector<16x128xf32> to vector<1x16x128xf32>
    tpu.vector_store %arg12[%c0_83, %c144, %c0_84], %104 {strides = array<i32>} : memref<1x256x128xf32, #tpu.memory_space<vmem>>, vector<1x16x128xf32>,
    %105 = vector.extract_strided_slice %64 {offsets = [240, 0], sizes = [16, 128], strides = [1, 1]} : vector<384x128xf32> to vector<16x128xf32>
    %c0_85 = arith.constant 0 : index
    %c160_86 = arith.constant 160 : index
    %c0_87 = arith.constant 0 : index
    %106 = vector.load %arg12[%c0_85, %c160_86, %c0_87] : memref<1x256x128xf32, #tpu.memory_space<vmem>>, vector<1x16x128xf32>
    %107 = vector.shape_cast %106 : vector<1x16x128xf32> to vector<16x128xf32>
    %108 = vector.shape_cast %105 : vector<16x128xf32> to vector<1x16x128xf32>
    tpu.vector_store %arg12[%c0_85, %c160_86, %c0_87], %108 {strides = array<i32>} : memref<1x256x128xf32, #tpu.memory_space<vmem>>, vector<1x16x128xf32>,
    %109 = vector.extract_strided_slice %64 {offsets = [264, 0], sizes = [16, 128], strides = [1, 1]} : vector<384x128xf32> to vector<16x128xf32>
    %c0_88 = arith.constant 0 : index
    %c176 = arith.constant 176 : index
    %c0_89 = arith.constant 0 : index
    %110 = vector.load %arg12[%c0_88, %c176, %c0_89] : memref<1x256x128xf32, #tpu.memory_space<vmem>>, vector<1x16x128xf32>
    %111 = vector.shape_cast %110 : vector<1x16x128xf32> to vector<16x128xf32>
    %112 = vector.shape_cast %109 : vector<16x128xf32> to vector<1x16x128xf32>
    tpu.vector_store %arg12[%c0_88, %c176, %c0_89], %112 {strides = array<i32>} : memref<1x256x128xf32, #tpu.memory_space<vmem>>, vector<1x16x128xf32>,
    %113 = vector.extract_strided_slice %64 {offsets = [288, 0], sizes = [16, 128], strides = [1, 1]} : vector<384x128xf32> to vector<16x128xf32>
    %c0_90 = arith.constant 0 : index
    %c192_91 = arith.constant 192 : index
    %c0_92 = arith.constant 0 : index
    %114 = vector.load %arg12[%c0_90, %c192_91, %c0_92] : memref<1x256x128xf32, #tpu.memory_space<vmem>>, vector<1x16x128xf32>
    %115 = vector.shape_cast %114 : vector<1x16x128xf32> to vector<16x128xf32>
    %116 = vector.shape_cast %113 : vector<16x128xf32> to vector<1x16x128xf32>
    tpu.vector_store %arg12[%c0_90, %c192_91, %c0_92], %116 {strides = array<i32>} : memref<1x256x128xf32, #tpu.memory_space<vmem>>, vector<1x16x128xf32>,
    %117 = vector.extract_strided_slice %64 {offsets = [312, 0], sizes = [16, 128], strides = [1, 1]} : vector<384x128xf32> to vector<16x128xf32>
    %c0_93 = arith.constant 0 : index
    %c208 = arith.constant 208 : index
    %c0_94 = arith.constant 0 : index
    %118 = vector.load %arg12[%c0_93, %c208, %c0_94] : memref<1x256x128xf32, #tpu.memory_space<vmem>>, vector<1x16x128xf32>
    %119 = vector.shape_cast %118 : vector<1x16x128xf32> to vector<16x128xf32>
    %120 = vector.shape_cast %117 : vector<16x128xf32> to vector<1x16x128xf32>
    tpu.vector_store %arg12[%c0_93, %c208, %c0_94], %120 {strides = array<i32>} : memref<1x256x128xf32, #tpu.memory_space<vmem>>, vector<1x16x128xf32>,
    %121 = vector.extract_strided_slice %64 {offsets = [336, 0], sizes = [16, 128], strides = [1, 1]} : vector<384x128xf32> to vector<16x128xf32>
    %c0_95 = arith.constant 0 : index
    %c224_96 = arith.constant 224 : index
    %c0_97 = arith.constant 0 : index
    %122 = vector.load %arg12[%c0_95, %c224_96, %c0_97] : memref<1x256x128xf32, #tpu.memory_space<vmem>>, vector<1x16x128xf32>
    %123 = vector.shape_cast %122 : vector<1x16x128xf32> to vector<16x128xf32>
    %124 = vector.shape_cast %121 : vector<16x128xf32> to vector<1x16x128xf32>
    tpu.vector_store %arg12[%c0_95, %c224_96, %c0_97], %124 {strides = array<i32>} : memref<1x256x128xf32, #tpu.memory_space<vmem>>, vector<1x16x128xf32>,
    %125 = vector.extract_strided_slice %64 {offsets = [360, 0], sizes = [16, 128], strides = [1, 1]} : vector<384x128xf32> to vector<16x128xf32>
    %c0_98 = arith.constant 0 : index
    %c240 = arith.constant 240 : index
    %c0_99 = arith.constant 0 : index
    %126 = vector.load %arg12[%c0_98, %c240, %c0_99] : memref<1x256x128xf32, #tpu.memory_space<vmem>>, vector<1x16x128xf32>
    %127 = vector.shape_cast %126 : vector<1x16x128xf32> to vector<16x128xf32>
    %128 = vector.shape_cast %125 : vector<16x128xf32> to vector<1x16x128xf32>
    tpu.vector_store %arg12[%c0_98, %c240, %c0_99], %128 {strides = array<i32>} : memref<1x256x128xf32, #tpu.memory_space<vmem>>, vector<1x16x128xf32>,
    return
  }
  func.func @transform_0(%arg0: i32) -> (i32, i32, i32) {
    %c0_i32 = arith.constant 0 : i32
    %c0_i32_0 = arith.constant 0 : i32
    %c0_i32_1 = arith.constant 0 : i32
    return %arg0, %c0_i32, %c0_i32_0 : i32, i32, i32
  }
  func.func @transform_1(%arg0: i32) -> (i32, i32) {
    %c0_i32 = arith.constant 0 : i32
    %c0_i32_0 = arith.constant 0 : i32
    %c0_i32_1 = arith.constant 0 : i32
    return %c0_i32, %c0_i32_0 : i32, i32
  }
  func.func @transform_2(%arg0: i32) -> (i32, i32) {
    %c0_i32 = arith.constant 0 : i32
    %c0_i32_0 = arith.constant 0 : i32
    %c0_i32_1 = arith.constant 0 : i32
    return %c0_i32, %c0_i32_0 : i32, i32
  }
  func.func @transform_3(%arg0: i32) -> (i32, i32) {
    %c0_i32 = arith.constant 0 : i32
    %c0_i32_0 = arith.constant 0 : i32
    %c0_i32_1 = arith.constant 0 : i32
    return %c0_i32, %c0_i32_0 : i32, i32
  }
  func.func @transform_4(%arg0: i32) -> (i32, i32) {
    %c0_i32 = arith.constant 0 : i32
    %c0_i32_0 = arith.constant 0 : i32
    %c0_i32_1 = arith.constant 0 : i32
    return %c0_i32, %c0_i32_0 : i32, i32
  }
  func.func @transform_5(%arg0: i32) -> (i32, i32) {
    %c0_i32 = arith.constant 0 : i32
    %c0_i32_0 = arith.constant 0 : i32
    %c0_i32_1 = arith.constant 0 : i32
    return %c0_i32, %c0_i32_0 : i32, i32
  }
  func.func @transform_6(%arg0: i32) -> (i32, i32) {
    %c0_i32 = arith.constant 0 : i32
    %c0_i32_0 = arith.constant 0 : i32
    %c0_i32_1 = arith.constant 0 : i32
    return %c0_i32, %c0_i32_0 : i32, i32
  }
  func.func @transform_7(%arg0: i32) -> (i32, i32) {
    %c0_i32 = arith.constant 0 : i32
    %c0_i32_0 = arith.constant 0 : i32
    %c0_i32_1 = arith.constant 0 : i32
    return %c0_i32, %c0_i32_0 : i32, i32
  }
  func.func @transform_8(%arg0: i32) -> (i32, i32) {
    %c0_i32 = arith.constant 0 : i32
    %c0_i32_0 = arith.constant 0 : i32
    %c0_i32_1 = arith.constant 0 : i32
    return %c0_i32, %c0_i32_0 : i32, i32
  }
  func.func @transform_9(%arg0: i32) -> (i32, i32) {
    %c0_i32 = arith.constant 0 : i32
    %c0_i32_0 = arith.constant 0 : i32
    %c0_i32_1 = arith.constant 0 : i32
    return %c0_i32, %c0_i32_0 : i32, i32
  }
  func.func @transform_10(%arg0: i32) -> (i32, i32) {
    %c0_i32 = arith.constant 0 : i32
    %c0_i32_0 = arith.constant 0 : i32
    %c0_i32_1 = arith.constant 0 : i32
    return %c0_i32, %c0_i32_0 : i32, i32
  }
  func.func @transform_11(%arg0: i32) -> (i32, i32, i32) {
    %c0_i32 = arith.constant 0 : i32
    %c0_i32_0 = arith.constant 0 : i32
    %c0_i32_1 = arith.constant 0 : i32
    return %arg0, %c0_i32, %c0_i32_0 : i32, i32, i32
  }
}

</mosaic_0001>

<llo_original>
// kernel: tpu_custom_call.1
$region0: #{tpu_custom_call.1}
  #allocation0 [shape = 'u32[]', space=smem, size = 0x4, offset = 0x4, fixed_abs, tag = 'smem constant byte address 0x4 - core index']
  #allocation1 [shape = 'u32[144,128]{1,0:T(1,128)}', space=vmem, size = 0x12000, scoped, tag = 'internal scratch']
  #allocation2 [shape = 'bf16[456,32]{1,0:T(8,128)(2,1)}', space=vmem, size = 0x1c800, scoped, tag = 'scratch operand']
  #allocation3 [shape = 'bf16[384,288]{1,0:T(16,128)(2,1)}', space=vmem, size = 0x48000, scoped, tag = 'scratch operand']
  %s0 = inlined_call_operand.vmem [shape: bf16[2,456,128], index: 0, kind: input, shape index: {}]
  %s1 = inlined_call_operand.vmem [shape: f32[384,1], index: 1, kind: input, shape index: {}]
  %s2 = inlined_call_operand.vmem [shape: bf16[128,32], index: 2, kind: input, shape index: {}]
  %s3 = inlined_call_operand.vmem [shape: f32[1,32], index: 3, kind: input, shape index: {}]
  %s4 = inlined_call_operand.vmem [shape: f32[1,32], index: 4, kind: input, shape index: {}]
  %s5 = inlined_call_operand.vmem [shape: bf16[288,32], index: 5, kind: input, shape index: {}]
  %s6 = inlined_call_operand.vmem [shape: f32[1,32], index: 6, kind: input, shape index: {}]
  %s7 = inlined_call_operand.vmem [shape: f32[1,32], index: 7, kind: input, shape index: {}]
  %s8 = inlined_call_operand.vmem [shape: bf16[32,128], index: 8, kind: input, shape index: {}]
  %s9 = inlined_call_operand.vmem [shape: f32[1,128], index: 9, kind: input, shape index: {}]
  %s10 = inlined_call_operand.vmem [shape: f32[1,128], index: 10, kind: input, shape index: {}]
  %s11 = inlined_call_operand.hbm [shape: f32[2,256,128], index: 11, kind: output, shape index: {}]
  %s12 = sld [smem:[#allocation0]]
  $region77: #{tpu_custom_call.1} parent=0
    _
  %s14 = ssub.s32 1, %s12
  %s15 = scalar_select 0, %s14, %s12
  $region1: #{tpu_custom_call.1} parent=0
    #allocation4 [shape = 'u8[262144]{0}', space=vmem, size = 0x40000, scoped, tag = 'output window, operand 0']
    #allocation5 [shape = 's32[2]{0}', space=sflag, size = 0x8, scoped, tag = 'scoped memory for tpu_custom_call.1']
    %16 = vsyncpa [#allocation5], 0
    %s17 = scalar_lea.sflag [#allocation5], 1
    %18 = vsyncpa %s17, 0
    loop: start=0, step=1, limit=4
    $region2: #{tpu_custom_call.1} parent=1 // loop_pre_header
      _
    $region3: #{tpu_custom_call.1} parent=1 // loop_header
      %s20 = sphi 0, %s24
      %p21 = scmp.ge.s32.totalorder %s20, 4
      %s30 = sphi 0, %s32
      %s33 = sphi 0, %s30
      %s34 = sphi 0, %s33
      %s50 = sphi 0, %s34
      %s54 = sphi 0, %s54
      %s56 = sphi 0, %s54
      %s57 = sphi 0, %s56
      %s71 = sphi 0, %s57
      %s75 = sphi 0, %s75
      %s77 = sphi 0, %s75
      %s78 = sphi 0, %s77
      %s92 = sphi 0, %s78
      %s96 = sphi 0, %s96
      %s98 = sphi 0, %s96
      %s99 = sphi 0, %s98
      %s113 = sphi 0, %s99
      %s117 = sphi 0, %s117
      %s119 = sphi 0, %s117
      %s120 = sphi 0, %s119
      %s134 = sphi 0, %s120
      %s138 = sphi 0, %s138
      %s140 = sphi 0, %s138
      %s141 = sphi 0, %s140
      %s155 = sphi 0, %s141
      %s159 = sphi 0, %s159
      %s161 = sphi 0, %s159
      %s162 = sphi 0, %s161
      %s176 = sphi 0, %s162
      %s180 = sphi 0, %s180
      %s182 = sphi 0, %s180
      %s183 = sphi 0, %s182
      %s197 = sphi 0, %s183
      %s201 = sphi 0, %s201
      %s203 = sphi 0, %s201
      %s204 = sphi 0, %s203
      %s218 = sphi 0, %s204
      %s222 = sphi 0, %s222
      %s224 = sphi 0, %s222
      %s225 = sphi 0, %s224
      %s239 = sphi 0, %s225
      %s243 = sphi 0, %s243
      %s245 = sphi 0, %s243
      %s246 = sphi 0, %s245
      %s260 = sphi 0, %s246
      %s266 = sphi 0, %s268
      %s269 = sphi 0, %s266
      %s270 = sphi 0, %s269
      %s286 = sphi 0, %s270
    $region4: #{tpu_custom_call.1} parent=1 // loop_header_branch
      %23 = sbr.rel (%p21) target = $region8
    $region5: #{tpu_custom_call.1} parent=1 // loop_body
      %s25 = ssub.s32 %s20, 1
      %s26 = ssub.s32 %s20, 2
      %s27 = sadd.s32 %s20, 1
      %s28 = ssub.s32 %s20, %s27
      %p29 = scmp.eq.s32.totalorder %s28, 0
      %s31 = sadd.s32 %s30, 1
      %s32 = scalar_select %p29, %s30, %s31
      %p35 = pneg %p29
      %p36 = scmp.eq.s32.totalorder %s20, 1
      %p37 = por %p35, %p36
      %p38 = scmp.ne.s32.totalorder %s30, %s33
      %p39 = scmp.eq.s32.totalorder %s20, 0
      %p40 = por %p38, %p39
      %p41 = scmp.ne.s32.totalorder %s30, %s33
      %p42 = scmp.eq.s32.totalorder %s25, 1
      %p43 = por %p41, %p42
      %p44 = scmp.ne.s32.totalorder %s33, %s34
      %p45 = scmp.eq.s32.totalorder %s25, 0
      %p46 = por %p44, %p45
      %p47 = scmp.ne.s32.totalorder %s33, %s34
      %p48 = scmp.eq.s32.totalorder %s26, 1
      %p49 = por %p47, %p48
      %p51 = scmp.ne.s32.totalorder %s34, %s50
      %p52 = scmp.eq.s32.totalorder %s26, 0
      %p53 = por %p51, %p52
      %s55 = sadd.s32 %s54, 1
      %p58 = scmp.eq.s32.totalorder %s20, 1
      %p59 = scmp.ne.s32.totalorder %s54, %s56
      %p60 = scmp.eq.s32.totalorder %s20, 0
      %p61 = por %p59, %p60
      %p62 = scmp.ne.s32.totalorder %s54, %s56
      %p63 = scmp.eq.s32.totalorder %s25, 1
      %p64 = por %p62, %p63
      %p65 = scmp.ne.s32.totalorder %s56, %s57
      %p66 = scmp.eq.s32.totalorder %s25, 0
      %p67 = por %p65, %p66
      %p68 = scmp.ne.s32.totalorder %s56, %s57
      %p69 = scmp.eq.s32.totalorder %s26, 1
      %p70 = por %p68, %p69
      %p72 = scmp.ne.s32.totalorder %s57, %s71
      %p73 = scmp.eq.s32.totalorder %s26, 0
      %p74 = por %p72, %p73
      %s76 = sadd.s32 %s75, 1
      %p79 = scmp.eq.s32.totalorder %s20, 1
      %p80 = scmp.ne.s32.totalorder %s75, %s77
      %p81 = scmp.eq.s32.totalorder %s20, 0
      %p82 = por %p80, %p81
      %p83 = scmp.ne.s32.totalorder %s75, %s77
      %p84 = scmp.eq.s32.totalorder %s25, 1
      %p85 = por %p83, %p84
      %p86 = scmp.ne.s32.totalorder %s77, %s78
      %p87 = scmp.eq.s32.totalorder %s25, 0
      %p88 = por %p86, %p87
      %p89 = scmp.ne.s32.totalorder %s77, %s78
      %p90 = scmp.eq.s32.totalorder %s26, 1
      %p91 = por %p89, %p90
      %p93 = scmp.ne.s32.totalorder %s78, %s92
      %p94 = scmp.eq.s32.totalorder %s26, 0
      %p95 = por %p93, %p94
      %s97 = sadd.s32 %s96, 1
      %p100 = scmp.eq.s32.totalorder %s20, 1
      %p101 = scmp.ne.s32.totalorder %s96, %s98
      %p102 = scmp.eq.s32.totalorder %s20, 0
      %p103 = por %p101, %p102
      %p104 = scmp.ne.s32.totalorder %s96, %s98
      %p105 = scmp.eq.s32.totalorder %s25, 1
      %p106 = por %p104, %p105
      %p107 = scmp.ne.s32.totalorder %s98, %s99
      %p108 = scmp.eq.s32.totalorder %s25, 0
      %p109 = por %p107, %p108
      %p110 = scmp.ne.s32.totalorder %s98, %s99
      %p111 = scmp.eq.s32.totalorder %s26, 1
      %p112 = por %p110, %p111
      %p114 = scmp.ne.s32.totalorder %s99, %s113
      %p115 = scmp.eq.s32.totalorder %s26, 0
      %p116 = por %p114, %p115
      %s118 = sadd.s32 %s117, 1
      %p121 = scmp.eq.s32.totalorder %s20, 1
      %p122 = scmp.ne.s32.totalorder %s117, %s119
      %p123 = scmp.eq.s32.totalorder %s20, 0
      %p124 = por %p122, %p123
      %p125 = scmp.ne.s32.totalorder %s117, %s119
      %p126 = scmp.eq.s32.totalorder %s25, 1
      %p127 = por %p125, %p126
      %p128 = scmp.ne.s32.totalorder %s119, %s120
      %p129 = scmp.eq.s32.totalorder %s25, 0
      %p130 = por %p128, %p129
      %p131 = scmp.ne.s32.totalorder %s119, %s120
      %p132 = scmp.eq.s32.totalorder %s26, 1
      %p133 = por %p131, %p132
      %p135 = scmp.ne.s32.totalorder %s120, %s134
      %p136 = scmp.eq.s32.totalorder %s26, 0
      %p137 = por %p135, %p136
      %s139 = sadd.s32 %s138, 1
      %p142 = scmp.eq.s32.totalorder %s20, 1
      %p143 = scmp.ne.s32.totalorder %s138, %s140
      %p144 = scmp.eq.s32.totalorder %s20, 0
      %p145 = por %p143, %p144
      %p146 = scmp.ne.s32.totalorder %s138, %s140
      %p147 = scmp.eq.s32.totalorder %s25, 1
      %p148 = por %p146, %p147
      %p149 = scmp.ne.s32.totalorder %s140, %s141
      %p150 = scmp.eq.s32.totalorder %s25, 0
      %p151 = por %p149, %p150
      %p152 = scmp.ne.s32.totalorder %s140, %s141
      %p153 = scmp.eq.s32.totalorder %s26, 1
      %p154 = por %p152, %p153
      %p156 = scmp.ne.s32.totalorder %s141, %s155
      %p157 = scmp.eq.s32.totalorder %s26, 0
      %p158 = por %p156, %p157
      %s160 = sadd.s32 %s159, 1
      %p163 = scmp.eq.s32.totalorder %s20, 1
      %p164 = scmp.ne.s32.totalorder %s159, %s161
      %p165 = scmp.eq.s32.totalorder %s20, 0
      %p166 = por %p164, %p165
      %p167 = scmp.ne.s32.totalorder %s159, %s161
      %p168 = scmp.eq.s32.totalorder %s25, 1
      %p169 = por %p167, %p168
      %p170 = scmp.ne.s32.totalorder %s161, %s162
      %p171 = scmp.eq.s32.totalorder %s25, 0
      %p172 = por %p170, %p171
      %p173 = scmp.ne.s32.totalorder %s161, %s162
      %p174 = scmp.eq.s32.totalorder %s26, 1
      %p175 = por %p173, %p174
      %p177 = scmp.ne.s32.totalorder %s162, %s176
      %p178 = scmp.eq.s32.totalorder %s26, 0
      %p179 = por %p177, %p178
      %s181 = sadd.s32 %s180, 1
      %p184 = scmp.eq.s32.totalorder %s20, 1
      %p185 = scmp.ne.s32.totalorder %s180, %s182
      %p186 = scmp.eq.s32.totalorder %s20, 0
      %p187 = por %p185, %p186
      %p188 = scmp.ne.s32.totalorder %s180, %s182
      %p189 = scmp.eq.s32.totalorder %s25, 1
      %p190 = por %p188, %p189
      %p191 = scmp.ne.s32.totalorder %s182, %s183
      %p192 = scmp.eq.s32.totalorder %s25, 0
      %p193 = por %p191, %p192
      %p194 = scmp.ne.s32.totalorder %s182, %s183
      %p195 = scmp.eq.s32.totalorder %s26, 1
      %p196 = por %p194, %p195
      %p198 = scmp.ne.s32.totalorder %s183, %s197
      %p199 = scmp.eq.s32.totalorder %s26, 0
      %p200 = por %p198, %p199
      %s202 = sadd.s32 %s201, 1
      %p205 = scmp.eq.s32.totalorder %s20, 1
      %p206 = scmp.ne.s32.totalorder %s201, %s203
      %p207 = scmp.eq.s32.totalorder %s20, 0
      %p208 = por %p206, %p207
      %p209 = scmp.ne.s32.totalorder %s201, %s203
      %p210 = scmp.eq.s32.totalorder %s25, 1
      %p211 = por %p209, %p210
      %p212 = scmp.ne.s32.totalorder %s203, %s204
      %p213 = scmp.eq.s32.totalorder %s25, 0
      %p214 = por %p212, %p213
      %p215 = scmp.ne.s32.totalorder %s203, %s204
      %p216 = scmp.eq.s32.totalorder %s26, 1
      %p217 = por %p215, %p216
      %p219 = scmp.ne.s32.totalorder %s204, %s218
      %p220 = scmp.eq.s32.totalorder %s26, 0
      %p221 = por %p219, %p220
      %s223 = sadd.s32 %s222, 1
      %p226 = scmp.eq.s32.totalorder %s20, 1
      %p227 = scmp.ne.s32.totalorder %s222, %s224
      %p228 = scmp.eq.s32.totalorder %s20, 0
      %p229 = por %p227, %p228
      %p230 = scmp.ne.s32.totalorder %s222, %s224
      %p231 = scmp.eq.s32.totalorder %s25, 1
      %p232 = por %p230, %p231
      %p233 = scmp.ne.s32.totalorder %s224, %s225
      %p234 = scmp.eq.s32.totalorder %s25, 0
      %p235 = por %p233, %p234
      %p236 = scmp.ne.s32.totalorder %s224, %s225
      %p237 = scmp.eq.s32.totalorder %s26, 1
      %p238 = por %p236, %p237
      %p240 = scmp.ne.s32.totalorder %s225, %s239
      %p241 = scmp.eq.s32.totalorder %s26, 0
      %p242 = por %p240, %p241
      %s244 = sadd.s32 %s243, 1
      %p247 = scmp.eq.s32.totalorder %s20, 1
      %p248 = scmp.ne.s32.totalorder %s243, %s245
      %p249 = scmp.eq.s32.totalorder %s20, 0
      %p250 = por %p248, %p249
      %p251 = scmp.ne.s32.totalorder %s243, %s245
      %p252 = scmp.eq.s32.totalorder %s25, 1
      %p253 = por %p251, %p252
      %p254 = scmp.ne.s32.totalorder %s245, %s246
      %p255 = scmp.eq.s32.totalorder %s25, 0
      %p256 = por %p254, %p255
      %p257 = scmp.ne.s32.totalorder %s245, %s246
      %p258 = scmp.eq.s32.totalorder %s26, 1
      %p259 = por %p257, %p258
      %p261 = scmp.ne.s32.totalorder %s246, %s260
      %p262 = scmp.eq.s32.totalorder %s26, 0
      %p263 = por %p261, %p262
      %s264 = ssub.s32 %s20, %s27
      %p265 = scmp.eq.s32.totalorder %s264, 0
      %s267 = sadd.s32 %s266, 1
      %s268 = scalar_select %p265, %s266, %s267
      %p271 = pneg %p265
      %p272 = scmp.eq.s32.totalorder %s20, 1
      %p273 = por %p271, %p272
      %p274 = scmp.ne.s32.totalorder %s266, %s269
      %p275 = scmp.eq.s32.totalorder %s20, 0
      %p276 = por %p274, %p275
      %p277 = scmp.ne.s32.totalorder %s266, %s269
      %p278 = scmp.eq.s32.totalorder %s25, 1
      %p279 = por %p277, %p278
      %p280 = scmp.ne.s32.totalorder %s269, %s270
      %p281 = scmp.eq.s32.totalorder %s25, 0
      %p282 = por %p280, %p281
      %p283 = scmp.ne.s32.totalorder %s269, %s270
      %p284 = scmp.eq.s32.totalorder %s26, 1
      %p285 = por %p283, %p284
      %p287 = scmp.ne.s32.totalorder %s270, %s286
      %p288 = scmp.eq.s32.totalorder %s26, 0
      %p289 = por %p287, %p288
      %p290 = scmp.le.s32.totalorder 1, %s20
      %p291 = scmp.lt.s32.totalorder %s20, 3
      %p292 = pnand %p290, %p291
      %p293 = pneg %p292
      // Predicated region
      $region9: #{tpu_custom_call.1} parent=5 // pred_check
        _
      $region10: #{tpu_custom_call.1} parent=5 // pred_check_branch
        %295 = sbr.rel (%p292) target = $region12
      $region11: #{tpu_custom_call.1} parent=5 // pred_region
        %s296 = ssub.s32 %s20, 1
        // Predicated region
        $region13: #{tpu_custom_call.1} parent=11 // pred_check
          %p297 = pneg %p67
        $region14: #{tpu_custom_call.1} parent=11 // pred_check_branch
          %299 = sbr.rel (%p297) target = $region16
        $region15: #{tpu_custom_call.1} parent=11 // pred_region
          _
        $region16: #{tpu_custom_call.1} parent=11 // pred_fallthru
          _
        // Predicated region
        $region17: #{tpu_custom_call.1} parent=11 // pred_check
          %p300 = pneg %p88
        $region18: #{tpu_custom_call.1} parent=11 // pred_check_branch
          %302 = sbr.rel (%p300) target = $region20
        $region19: #{tpu_custom_call.1} parent=11 // pred_region
          _
        $region20: #{tpu_custom_call.1} parent=11 // pred_fallthru
          _
        // Predicated region
        $region21: #{tpu_custom_call.1} parent=11 // pred_check
          %p303 = pneg %p109
        $region22: #{tpu_custom_call.1} parent=11 // pred_check_branch
          %305 = sbr.rel (%p303) target = $region24
        $region23: #{tpu_custom_call.1} parent=11 // pred_region
          _
        $region24: #{tpu_custom_call.1} parent=11 // pred_fallthru
          _
        // Predicated region
        $region25: #{tpu_custom_call.1} parent=11 // pred_check
          %p306 = pneg %p130
        $region26: #{tpu_custom_call.1} parent=11 // pred_check_branch
          %308 = sbr.rel (%p306) target = $region28
        $region27: #{tpu_custom_call.1} parent=11 // pred_region
          _
        $region28: #{tpu_custom_call.1} parent=11 // pred_fallthru
          _
        // Predicated region
        $region29: #{tpu_custom_call.1} parent=11 // pred_check
          %p309 = pneg %p151
        $region30: #{tpu_custom_call.1} parent=11 // pred_check_branch
          %311 = sbr.rel (%p309) target = $region32
        $region31: #{tpu_custom_call.1} parent=11 // pred_region
          _
        $region32: #{tpu_custom_call.1} parent=11 // pred_fallthru
          _
        // Predicated region
        $region33: #{tpu_custom_call.1} parent=11 // pred_check
          %p312 = pneg %p172
        $region34: #{tpu_custom_call.1} parent=11 // pred_check_branch
          %314 = sbr.rel (%p312) target = $region36
        $region35: #{tpu_custom_call.1} parent=11 // pred_region
          _
        $region36: #{tpu_custom_call.1} parent=11 // pred_fallthru
          _
        // Predicated region
        $region37: #{tpu_custom_call.1} parent=11 // pred_check
          %p315 = pneg %p193
        $region38: #{tpu_custom_call.1} parent=11 // pred_check_branch
          %317 = sbr.rel (%p315) target = $region40
        $region39: #{tpu_custom_call.1} parent=11 // pred_region
          _
        $region40: #{tpu_custom_call.1} parent=11 // pred_fallthru
          _
        // Predicated region
        $region41: #{tpu_custom_call.1} parent=11 // pred_check
          %p318 = pneg %p214
        $region42: #{tpu_custom_call.1} parent=11 // pred_check_branch
          %320 = sbr.rel (%p318) target = $region44
        $region43: #{tpu_custom_call.1} parent=11 // pred_region
          _
        $region44: #{tpu_custom_call.1} parent=11 // pred_fallthru
          _
        // Predicated region
        $region45: #{tpu_custom_call.1} parent=11 // pred_check
          %p321 = pneg %p235
        $region46: #{tpu_custom_call.1} parent=11 // pred_check_branch
          %323 = sbr.rel (%p321) target = $region48
        $region47: #{tpu_custom_call.1} parent=11 // pred_region
          _
        $region48: #{tpu_custom_call.1} parent=11 // pred_fallthru
          _
        // Predicated region
        $region49: #{tpu_custom_call.1} parent=11 // pred_check
          %p324 = pneg %p256
        $region50: #{tpu_custom_call.1} parent=11 // pred_check_branch
          %326 = sbr.rel (%p324) target = $region52
        $region51: #{tpu_custom_call.1} parent=11 // pred_region
          _
        $region52: #{tpu_custom_call.1} parent=11 // pred_fallthru
          _
      $region12: #{tpu_custom_call.1} parent=5 // pred_fallthru
        _
      %p327 = scmp.lt.s32.totalorder %s20, 2
      // Predicated region
      $region53: #{tpu_custom_call.1} parent=5 // pred_check
        %p328 = pneg %p327
      $region54: #{tpu_custom_call.1} parent=5 // pred_check_branch
        %330 = sbr.rel (%p328) target = $region56
      $region55: #{tpu_custom_call.1} parent=5 // pred_region
        // Predicated region
        $region57: #{tpu_custom_call.1} parent=55 // pred_check
          %p331 = pneg %p40
        $region58: #{tpu_custom_call.1} parent=55 // pred_check_branch
          %333 = sbr.rel (%p331) target = $region60
        $region59: #{tpu_custom_call.1} parent=55 // pred_region
          %p334 = scmp.lt.s32.totalorder %s20, 1
          %s335 = scalar_select %p334, %s20, 1
          %s336 = smul.addr %s335, 57
          %s337 = smul.addr %s336, 4
          %s338 = scalar_lea.vmem %s0, %s337
        $region60: #{tpu_custom_call.1} parent=55 // pred_fallthru
          _
      $region56: #{tpu_custom_call.1} parent=5 // pred_fallthru
        _
      %p339 = scmp.le.s32.totalorder 1, %s20
      %p340 = scmp.lt.s32.totalorder %s20, 3
      %p341 = pnand %p339, %p340
      %p342 = pneg %p341
      // Predicated region
      $region61: #{tpu_custom_call.1} parent=5 // pred_check
        _
      $region62: #{tpu_custom_call.1} parent=5 // pred_check_branch
        %344 = sbr.rel (%p341) target = $region64
      $region63: #{tpu_custom_call.1} parent=5 // pred_region
        %s345 = ssub.s32 %s20, 1
        %p346 = scmp.lt.s32.totalorder %s25, 1
        %s347 = scalar_select %p346, %s25, 1
        %s348 = smul.addr %s347, 57
        %s349 = smul.addr %s348, 4
        %s350 = scalar_lea.vmem %s0, %s349
        %p351 = pneg %p46
        %p352 = pneg %p43
        %p353 = pneg %p67
        %p354 = pneg %p64
        %p355 = pneg %p88
        %p356 = pneg %p85
        %p357 = pneg %p109
        %p358 = pneg %p106
        %p359 = pneg %p130
        %p360 = pneg %p127
        %p361 = pneg %p151
        %p362 = pneg %p148
        %p363 = pneg %p172
        %p364 = pneg %p169
        %p365 = pneg %p193
        %p366 = pneg %p190
        %p367 = pneg %p214
        %p368 = pneg %p211
        %p369 = pneg %p235
        %p370 = pneg %p232
        %p371 = pneg %p256
        %p372 = pneg %p253
        %p373 = pneg %p282
        %p374 = pneg %p279
        %s375 = sand.u32 %s269, 1
        %s376 = scalar_lea.sflag [#allocation5], %s375
        %s377 = sand.u32 %s269, 1
        %s378 = smul.addr %s377, 256
        %s379 = scalar_lea.vmem [#allocation4], %s378
        %p380 = scmp.lt.s32.totalorder %s25, 1
        %s381 = scalar_select %p380, %s25, 1
        %s382 = smul.addr %s381, 57
        %s383 = smul.addr %s382, 4
        %s384 = scalar_lea.vmem %s0, %s383
        %vm386 = vcmask 257024
        %387 = vst.msk [vmem:[#allocation2] sm:$0xf] %vm386, 0
        %388 = vst.msk [vmem:[#allocation2 + $0x4] sm:$0xf] %vm386, 0
        %389 = vst.msk [vmem:[#allocation2 + $0x8] sm:$0xf] %vm386, 0
        %390 = vst.msk [vmem:[#allocation2 + $0xcc] sm:$0xf] %vm386, 0
        %391 = vst.msk [vmem:[#allocation2 + $0xd0] sm:$0xf] %vm386, 0
        %392 = vst.msk [vmem:[#allocation2 + $0xd4] sm:$0xf] %vm386, 0
        %393 = vst.msk [vmem:[#allocation2 + $0xd8] sm:$0xf] %vm386, 0
        %394 = vst.msk [vmem:[#allocation2 + $0xdc] sm:$0xf] %vm386, 0
        %395 = vst.msk [vmem:[#allocation2 + $0xe0] sm:$0xf] %vm386, 0
        %v396 = vld [vmem:[%s384 + $0xc] sm:$0xf]
        %v397 = vld [vmem:[%s384 + $0x10] sm:$0xf]
        %v398 = vld [vmem:[%s384 + $0x14] sm:$0xf]
        %v399 = vld [vmem:[%s384 + $0x18] sm:$0xf]
        %v400 = vld [vmem:[%s384 + $0x1c] sm:$0xf]
        %v401 = vld [vmem:[%s384 + $0x20] sm:$0xf]
        %v402 = vld [vmem:[%s384 + $0x24] sm:$0xf]
        %v403 = vld [vmem:[%s384 + $0x28] sm:$0xf]
        %v404 = vld [vmem:[%s384 + $0x2c] sm:$0xf]
        %v405 = vld [vmem:[%s384 + $0x30] sm:$0xf]
        %v406 = vld [vmem:[%s384 + $0x34] sm:$0xf]
        %v407 = vld [vmem:[%s384 + $0x38] sm:$0xf]
        %v408 = vld [vmem:[%s384 + $0x3c] sm:$0xf]
        %v409 = vld [vmem:[%s384 + $0x40] sm:$0xf]
        %v410 = vld [vmem:[%s384 + $0x44] sm:$0xf]
        %v411 = vld [vmem:[%s384 + $0x48] sm:$0xf]
        %v412 = vld [vmem:[%s384 + $0x4c] sm:$0xf]
        %v413 = vld [vmem:[%s384 + $0x50] sm:$0xf]
        %v414 = vld [vmem:[%s384 + $0x54] sm:$0xf]
        %v415 = vld [vmem:[%s384 + $0x58] sm:$0xf]
        %v416 = vld [vmem:[%s384 + $0x5c] sm:$0xf]
        %v417 = vld [vmem:[%s384 + $0x60] sm:$0xf]
        %v418 = vld [vmem:[%s384 + $0x64] sm:$0xf]
        %v419 = vld [vmem:[%s384 + $0x68] sm:$0xf]
        %v420 = vld [vmem:[%s384 + $0x6c] sm:$0xf]
        %v421 = vld [vmem:[%s384 + $0x70] sm:$0xf]
        %v422 = vld [vmem:[%s384 + $0x74] sm:$0xf]
        %v423 = vld [vmem:[%s384 + $0x78] sm:$0xf]
        %v424 = vld [vmem:[%s384 + $0x7c] sm:$0xf]
        %v425 = vld [vmem:[%s384 + $0x80] sm:$0xf]
        %v426 = vld [vmem:[%s384 + $0x84] sm:$0xf]
        %v427 = vld [vmem:[%s384 + $0x88] sm:$0xf]
        %v428 = vld [vmem:[%s384 + $0x8c] sm:$0xf]
        %v429 = vld [vmem:[%s384 + $0x90] sm:$0xf]
        %v430 = vld [vmem:[%s384 + $0x94] sm:$0xf]
        %v431 = vld [vmem:[%s384 + $0x98] sm:$0xf]
        %v432 = vld [vmem:[%s384 + $0x9c] sm:$0xf]
        %v433 = vld [vmem:[%s384 + $0xa0] sm:$0xf]
        %v434 = vld [vmem:[%s384 + $0xa4] sm:$0xf]
        %v435 = vld [vmem:[%s384 + $0xa8] sm:$0xf]
        %v436 = vld [vmem:[%s384 + $0xac] sm:$0xf]
        %v437 = vld [vmem:[%s384 + $0xb0] sm:$0xf]
        %v438 = vld [vmem:[%s384 + $0xb4] sm:$0xf]
        %v439 = vld [vmem:[%s384 + $0xb8] sm:$0xf]
        %v440 = vld [vmem:[%s384 + $0xbc] sm:$0xf]
        %v441 = vld [vmem:[%s384 + $0xc0] sm:$0xf]
        %v442 = vld [vmem:[%s384 + $0xc4] sm:$0xf]
        %v443 = vld [vmem:[%s384 + $0xc8] sm:$0xf]
        %v444 = vld [vmem:[%s2] sm:$0xf]
        %v445 = vld [vmem:[%s2 + $0x4] sm:$0xf]
        %v446 = vld [vmem:[%s2 + $0x8] sm:$0xf]
        %v447 = vld [vmem:[%s2 + $0xc] sm:$0xf]
        %v448 = vld [vmem:[%s2 + $0x10] sm:$0xf]
        %v449 = vld [vmem:[%s2 + $0x14] sm:$0xf]
        %v450 = vld [vmem:[%s2 + $0x18] sm:$0xf]
        %v451 = vld [vmem:[%s2 + $0x1c] sm:$0xf]
        %v452 = vld [vmem:[%s2 + $0x20] sm:$0xf]
        %v453 = vld [vmem:[%s2 + $0x24] sm:$0xf]
        %v454 = vld [vmem:[%s2 + $0x28] sm:$0xf]
        %v455 = vld [vmem:[%s2 + $0x2c] sm:$0xf]
        %v456 = vld [vmem:[%s2 + $0x30] sm:$0xf]
        %v457 = vld [vmem:[%s2 + $0x34] sm:$0xf]
        %v458 = vld [vmem:[%s2 + $0x38] sm:$0xf]
        %v459 = vld [vmem:[%s2 + $0x3c] sm:$0xf]
        %v508 = vunpack.c.l.b16 %v396
        %v509 = vunpack.c.l.b16 %v397
        %v510 = vunpack.c.l.b16 %v398
        %v511 = vunpack.c.l.b16 %v399
        %v512 = vunpack.c.l.b16 %v400
        %v513 = vunpack.c.l.b16 %v401
        %v514 = vunpack.c.l.b16 %v402
        %v515 = vunpack.c.l.b16 %v403
        %v516 = vunpack.c.l.b16 %v404
        %v517 = vunpack.c.l.b16 %v405
        %v518 = vunpack.c.l.b16 %v406
        %v519 = vunpack.c.l.b16 %v407
        %v520 = vunpack.c.l.b16 %v408
        %v521 = vunpack.c.l.b16 %v409
        %v522 = vunpack.c.l.b16 %v410
        %v523 = vunpack.c.l.b16 %v411
        %v524 = vunpack.c.l.b16 %v412
        %v525 = vunpack.c.l.b16 %v413
        %v526 = vunpack.c.l.b16 %v414
        %v527 = vunpack.c.l.b16 %v415
        %v528 = vunpack.c.l.b16 %v416
        %v529 = vunpack.c.l.b16 %v417
        %v530 = vunpack.c.l.b16 %v418
        %v531 = vunpack.c.l.b16 %v419
        %v532 = vunpack.c.l.b16 %v420
        %v533 = vunpack.c.l.b16 %v421
        %v534 = vunpack.c.l.b16 %v422
        %v535 = vunpack.c.l.b16 %v423
        %v536 = vunpack.c.l.b16 %v424
        %v537 = vunpack.c.l.b16 %v425
        %v538 = vunpack.c.l.b16 %v426
        %v539 = vunpack.c.l.b16 %v427
        %v540 = vunpack.c.l.b16 %v428
        %v541 = vunpack.c.l.b16 %v429
        %v542 = vunpack.c.l.b16 %v430
        %v543 = vunpack.c.l.b16 %v431
        %v544 = vunpack.c.l.b16 %v432
        %v545 = vunpack.c.l.b16 %v433
        %v546 = vunpack.c.l.b16 %v434
        %v547 = vunpack.c.l.b16 %v435
        %v548 = vunpack.c.l.b16 %v436
        %v549 = vunpack.c.l.b16 %v437
        %v550 = vunpack.c.l.b16 %v438
        %v551 = vunpack.c.l.b16 %v439
        %v552 = vunpack.c.l.b16 %v440
        %v553 = vunpack.c.l.b16 %v441
        %v554 = vunpack.c.l.b16 %v442
        %v555 = vunpack.c.l.b16 %v443
        %v556 = vpack.c.b16 %v509, %v508
        %v557 = vpack.c.b16 %v511, %v510
        %v558 = vpack.c.b16 %v513, %v512
        %v559 = vpack.c.b16 %v515, %v514
        %v560 = vpack.c.b16 %v517, %v516
        %v561 = vpack.c.b16 %v519, %v518
        %v562 = vpack.c.b16 %v521, %v520
        %v563 = vpack.c.b16 %v523, %v522
        %v564 = vpack.c.b16 %v525, %v524
        %v565 = vpack.c.b16 %v527, %v526
        %v566 = vpack.c.b16 %v529, %v528
        %v567 = vpack.c.b16 %v531, %v530
        %v568 = vpack.c.b16 %v533, %v532
        %v569 = vpack.c.b16 %v535, %v534
        %v570 = vpack.c.b16 %v537, %v536
        %v571 = vpack.c.b16 %v539, %v538
        %v572 = vpack.c.b16 %v541, %v540
        %v573 = vpack.c.b16 %v543, %v542
        %v574 = vpack.c.b16 %v545, %v544
        %v575 = vpack.c.b16 %v547, %v546
        %v576 = vpack.c.b16 %v549, %v548
        %v577 = vpack.c.b16 %v551, %v550
        %v578 = vpack.c.b16 %v553, %v552
        %v579 = vpack.c.b16 %v555, %v554
        %v620 = vunpack.c.l.b16 %v444
        %v621 = vunpack.c.l.b16 %v445
        %v622 = vunpack.c.l.b16 %v446
        %v623 = vunpack.c.l.b16 %v447
        %v624 = vunpack.c.l.b16 %v448
        %v625 = vunpack.c.l.b16 %v449
        %v626 = vunpack.c.l.b16 %v450
        %v627 = vunpack.c.l.b16 %v451
        %v628 = vunpack.c.l.b16 %v452
        %v629 = vunpack.c.l.b16 %v453
        %v630 = vunpack.c.l.b16 %v454
        %v631 = vunpack.c.l.b16 %v455
        %v632 = vunpack.c.l.b16 %v456
        %v633 = vunpack.c.l.b16 %v457
        %v634 = vunpack.c.l.b16 %v458
        %v635 = vunpack.c.l.b16 %v459
        %v636 = vpack.c.b16 %v621, %v620
        %v637 = vpack.c.b16 %v623, %v622
        %v638 = vpack.c.b16 %v625, %v624
        %v639 = vpack.c.b16 %v627, %v626
        %v640 = vpack.c.b16 %v629, %v628
        %v641 = vpack.c.b16 %v631, %v630
        %v642 = vpack.c.b16 %v633, %v632
        %v643 = vpack.c.b16 %v635, %v634
        %652 = vmatprep.subr.bf16.mxu0 0
        %653 = vmatpush1.bf16.msra.mxu0 %v636
        %654 = vmatprep.subr.bf16.mxu0 0
        %655 = vmatpush1.bf16.msra.mxu0 %v637
        %656 = vmatprep.subr.bf16.mxu0 0
        %657 = vmatpush1.bf16.msra.mxu0 %v638
        %658 = vmatprep.subr.bf16.mxu0 0
        %659 = vmatpush1.bf16.msra.mxu0 %v639
        %660 = vmatprep.subr.bf16.mxu0 0
        %661 = vmatpush1.bf16.msra.mxu0 %v640
        %662 = vmatprep.subr.bf16.mxu0 0
        %663 = vmatpush1.bf16.msra.mxu0 %v641
        %664 = vmatprep.subr.bf16.mxu0 0
        %665 = vmatpush1.bf16.msra.mxu0 %v642
        %666 = vmatprep.subr.bf16.mxu0 0
        %667 = vmatpush1.bf16.msra.mxu0 %v643
        %668 = vmatprep.subr.bf16.mxu0 0
        %669 = vmatpush1.bf16.msra.mxu0 0
        %670 = vmatprep.subr.bf16.mxu0 0
        %671 = vmatpush1.bf16.msra.mxu0 0
        %672 = vmatprep.subr.bf16.mxu0 0
        %673 = vmatpush1.bf16.msra.mxu0 0
        %674 = vmatprep.subr.bf16.mxu0 0
        %675 = vmatpush1.bf16.msra.mxu0 0
        %676 = vmatprep.subr.bf16.mxu0 0
        %677 = vmatpush1.bf16.msra.mxu0 0
        %678 = vmatprep.subr.bf16.mxu0 0
        %679 = vmatpush1.bf16.msra.mxu0 0
        %680 = vmatprep.subr.bf16.mxu0 0
        %681 = vmatpush1.bf16.msra.mxu0 0
        %682 = vmatprep.subr.bf16.mxu0 0
        %683 = vmatpush1.bf16.msra.mxu0 0
        %684 = vmatprep.mubr.bf16.mxu0 0
        %685 = vmatmul.mubr.bf16.gmra.mrb[0].mxu0 %v556
        %v686 = vpop.f32.mrb[0].mxu0
        %v687 = vadd.f32 0.0, %v686
        %v688 = vpop.f32.mrb[0].mxu0
        %v689 = vpop.f32.mrb[0].mxu0
        %v690 = vadd.f32 0.0, %v689
        %v691 = vpop.f32.mrb[0].mxu0
        %692 = vmatprep.mubr.bf16.mxu0 0
        %693 = vmatmul.mubr.bf16.gmra.mrb[0].mxu0 %v557
        %v694 = vpop.f32.mrb[0].mxu0
        %v695 = vadd.f32 0.0, %v694
        %v696 = vpop.f32.mrb[0].mxu0
        %v697 = vpop.f32.mrb[0].mxu0
        %v698 = vadd.f32 0.0, %v697
        %v699 = vpop.f32.mrb[0].mxu0
        %700 = vmatprep.mubr.bf16.mxu0 0
        %701 = vmatmul.mubr.bf16.gmra.mrb[0].mxu0 %v558
        %v702 = vpop.f32.mrb[0].mxu0
        %v703 = vadd.f32 0.0, %v702
        %v704 = vpop.f32.mrb[0].mxu0
        %v705 = vpop.f32.mrb[0].mxu0
        %v706 = vadd.f32 0.0, %v705
        %v707 = vpop.f32.mrb[0].mxu0
        %708 = vmatprep.mubr.bf16.mxu0 0
        %709 = vmatmul.mubr.bf16.gmra.mrb[0].mxu0 %v559
        %v710 = vpop.f32.mrb[0].mxu0
        %v711 = vadd.f32 0.0, %v710
        %v712 = vpop.f32.mrb[0].mxu0
        %v713 = vpop.f32.mrb[0].mxu0
        %v714 = vadd.f32 0.0, %v713
        %v715 = vpop.f32.mrb[0].mxu0
        %716 = vmatprep.mubr.bf16.mxu0 0
        %717 = vmatmul.mubr.bf16.gmra.mrb[0].mxu0 %v560
        %v718 = vpop.f32.mrb[0].mxu0
        %v719 = vadd.f32 0.0, %v718
        %v720 = vpop.f32.mrb[0].mxu0
        %v721 = vpop.f32.mrb[0].mxu0
        %v722 = vadd.f32 0.0, %v721
        %v723 = vpop.f32.mrb[0].mxu0
        %724 = vmatprep.mubr.bf16.mxu0 0
        %725 = vmatmul.mubr.bf16.gmra.mrb[0].mxu0 %v561
        %v726 = vpop.f32.mrb[0].mxu0
        %v727 = vadd.f32 0.0, %v726
        %v728 = vpop.f32.mrb[0].mxu0
        %v729 = vpop.f32.mrb[0].mxu0
        %v730 = vadd.f32 0.0, %v729
        %v731 = vpop.f32.mrb[0].mxu0
        %732 = vmatprep.mubr.bf16.mxu0 0
        %733 = vmatmul.mubr.bf16.gmra.mrb[0].mxu0 %v562
        %v734 = vpop.f32.mrb[0].mxu0
        %v735 = vadd.f32 0.0, %v734
        %v736 = vpop.f32.mrb[0].mxu0
        %v737 = vpop.f32.mrb[0].mxu0
        %v738 = vadd.f32 0.0, %v737
        %v739 = vpop.f32.mrb[0].mxu0
        %740 = vmatprep.mubr.bf16.mxu0 0
        %741 = vmatmul.mubr.bf16.gmra.mrb[0].mxu0 %v563
        %v742 = vpop.f32.mrb[0].mxu0
        %v743 = vadd.f32 0.0, %v742
        %v744 = vpop.f32.mrb[0].mxu0
        %v745 = vpop.f32.mrb[0].mxu0
        %v746 = vadd.f32 0.0, %v745
        %v747 = vpop.f32.mrb[0].mxu0
        %748 = vmatprep.mubr.bf16.mxu0 0
        %749 = vmatmul.mubr.bf16.gmra.mrb[0].mxu0 %v564
        %v750 = vpop.f32.mrb[0].mxu0
        %v751 = vadd.f32 0.0, %v750
        %v752 = vpop.f32.mrb[0].mxu0
        %v753 = vpop.f32.mrb[0].mxu0
        %v754 = vadd.f32 0.0, %v753
        %v755 = vpop.f32.mrb[0].mxu0
        %756 = vmatprep.mubr.bf16.mxu0 0
        %757 = vmatmul.mubr.bf16.gmra.mrb[0].mxu0 %v565
        %v758 = vpop.f32.mrb[0].mxu0
        %v759 = vadd.f32 0.0, %v758
        %v760 = vpop.f32.mrb[0].mxu0
        %v761 = vpop.f32.mrb[0].mxu0
        %v762 = vadd.f32 0.0, %v761
        %v763 = vpop.f32.mrb[0].mxu0
        %764 = vmatprep.mubr.bf16.mxu0 0
        %765 = vmatmul.mubr.bf16.gmra.mrb[0].mxu0 %v566
        %v766 = vpop.f32.mrb[0].mxu0
        %v767 = vadd.f32 0.0, %v766
        %v768 = vpop.f32.mrb[0].mxu0
        %v769 = vpop.f32.mrb[0].mxu0
        %v770 = vadd.f32 0.0, %v769
        %v771 = vpop.f32.mrb[0].mxu0
        %772 = vmatprep.mubr.bf16.mxu0 0
        %773 = vmatmul.mubr.bf16.gmra.mrb[0].mxu0 %v567
        %v774 = vpop.f32.mrb[0].mxu0
        %v775 = vadd.f32 0.0, %v774
        %v776 = vpop.f32.mrb[0].mxu0
        %v777 = vpop.f32.mrb[0].mxu0
        %v778 = vadd.f32 0.0, %v777
        %v779 = vpop.f32.mrb[0].mxu0
        %780 = vmatprep.mubr.bf16.mxu0 0
        %781 = vmatmul.mubr.bf16.gmra.mrb[0].mxu0 %v568
        %v782 = vpop.f32.mrb[0].mxu0
        %v783 = vadd.f32 0.0, %v782
        %v784 = vpop.f32.mrb[0].mxu0
        %v785 = vpop.f32.mrb[0].mxu0
        %v786 = vadd.f32 0.0, %v785
        %v787 = vpop.f32.mrb[0].mxu0
        %788 = vmatprep.mubr.bf16.mxu0 0
        %789 = vmatmul.mubr.bf16.gmra.mrb[0].mxu0 %v569
        %v790 = vpop.f32.mrb[0].mxu0
        %v791 = vadd.f32 0.0, %v790
        %v792 = vpop.f32.mrb[0].mxu0
        %v793 = vpop.f32.mrb[0].mxu0
        %v794 = vadd.f32 0.0, %v793
        %v795 = vpop.f32.mrb[0].mxu0
        %796 = vmatprep.mubr.bf16.mxu0 0
        %797 = vmatmul.mubr.bf16.gmra.mrb[0].mxu0 %v570
        %v798 = vpop.f32.mrb[0].mxu0
        %v799 = vadd.f32 0.0, %v798
        %v800 = vpop.f32.mrb[0].mxu0
        %v801 = vpop.f32.mrb[0].mxu0
        %v802 = vadd.f32 0.0, %v801
        %v803 = vpop.f32.mrb[0].mxu0
        %804 = vmatprep.mubr.bf16.mxu0 0
        %805 = vmatmul.mubr.bf16.gmra.mrb[0].mxu0 %v571
        %v806 = vpop.f32.mrb[0].mxu0
        %v807 = vadd.f32 0.0, %v806
        %v808 = vpop.f32.mrb[0].mxu0
        %v809 = vpop.f32.mrb[0].mxu0
        %v810 = vadd.f32 0.0, %v809
        %v811 = vpop.f32.mrb[0].mxu0
        %812 = vmatprep.mubr.bf16.mxu0 0
        %813 = vmatmul.mubr.bf16.gmra.mrb[0].mxu0 %v572
        %v814 = vpop.f32.mrb[0].mxu0
        %v815 = vadd.f32 0.0, %v814
        %v816 = vpop.f32.mrb[0].mxu0
        %v817 = vpop.f32.mrb[0].mxu0
        %v818 = vadd.f32 0.0, %v817
        %v819 = vpop.f32.mrb[0].mxu0
        %820 = vmatprep.mubr.bf16.mxu0 0
        %821 = vmatmul.mubr.bf16.gmra.mrb[0].mxu0 %v573
        %v822 = vpop.f32.mrb[0].mxu0
        %v823 = vadd.f32 0.0, %v822
        %v824 = vpop.f32.mrb[0].mxu0
        %v825 = vpop.f32.mrb[0].mxu0
        %v826 = vadd.f32 0.0, %v825
        %v827 = vpop.f32.mrb[0].mxu0
        %828 = vmatprep.mubr.bf16.mxu0 0
        %829 = vmatmul.mubr.bf16.gmra.mrb[0].mxu0 %v574
        %v830 = vpop.f32.mrb[0].mxu0
        %v831 = vadd.f32 0.0, %v830
        %v832 = vpop.f32.mrb[0].mxu0
        %v833 = vpop.f32.mrb[0].mxu0
        %v834 = vadd.f32 0.0, %v833
        %v835 = vpop.f32.mrb[0].mxu0
        %836 = vmatprep.mubr.bf16.mxu0 0
        %837 = vmatmul.mubr.bf16.gmra.mrb[0].mxu0 %v575
        %v838 = vpop.f32.mrb[0].mxu0
        %v839 = vadd.f32 0.0, %v838
        %v840 = vpop.f32.mrb[0].mxu0
        %v841 = vpop.f32.mrb[0].mxu0
        %v842 = vadd.f32 0.0, %v841
        %v843 = vpop.f32.mrb[0].mxu0
        %844 = vmatprep.mubr.bf16.mxu0 0
        %845 = vmatmul.mubr.bf16.gmra.mrb[0].mxu0 %v576
        %v846 = vpop.f32.mrb[0].mxu0
        %v847 = vadd.f32 0.0, %v846
        %v848 = vpop.f32.mrb[0].mxu0
        %v849 = vpop.f32.mrb[0].mxu0
        %v850 = vadd.f32 0.0, %v849
        %v851 = vpop.f32.mrb[0].mxu0
        %852 = vmatprep.mubr.bf16.mxu0 0
        %853 = vmatmul.mubr.bf16.gmra.mrb[0].mxu0 %v577
        %v854 = vpop.f32.mrb[0].mxu0
        %v855 = vadd.f32 0.0, %v854
        %v856 = vpop.f32.mrb[0].mxu0
        %v857 = vpop.f32.mrb[0].mxu0
        %v858 = vadd.f32 0.0, %v857
        %v859 = vpop.f32.mrb[0].mxu0
        %860 = vmatprep.mubr.bf16.mxu0 0
        %861 = vmatmul.mubr.bf16.gmra.mrb[0].mxu0 %v578
        %v862 = vpop.f32.mrb[0].mxu0
        %v863 = vadd.f32 0.0, %v862
        %v864 = vpop.f32.mrb[0].mxu0
        %v865 = vpop.f32.mrb[0].mxu0
        %v866 = vadd.f32 0.0, %v865
        %v867 = vpop.f32.mrb[0].mxu0
        %868 = vmatprep.mubr.bf16.mxu0 0
        %869 = vmatmul.mubr.bf16.gmra.mrb[0].mxu0 %v579
        %v870 = vpop.f32.mrb[0].mxu0
        %v871 = vadd.f32 0.0, %v870
        %v872 = vpop.f32.mrb[0].mxu0
        %v873 = vpop.f32.mrb[0].mxu0
        %v874 = vadd.f32 0.0, %v873
        %v875 = vpop.f32.mrb[0].mxu0
        %876 = vdwg.mxu0
        %v877 = vld [vmem:[%s3] sm:$0x1]
        %v879 = vlaneseq
        %v880 = vshrl.u32 %v879, 7
        %v881 = vsub.s32 0, %v880
        %v882 = vrot.slane %v877, %v881
        %v884 = vmul.f32 %v687, %v882
        %v885 = vmul.f32 %v690, %v882
        %v886 = vmul.f32 %v695, %v882
        %v887 = vmul.f32 %v698, %v882
        %v888 = vmul.f32 %v703, %v882
        %v889 = vmul.f32 %v706, %v882
        %v890 = vmul.f32 %v711, %v882
        %v891 = vmul.f32 %v714, %v882
        %v892 = vmul.f32 %v719, %v882
        %v893 = vmul.f32 %v722, %v882
        %v894 = vmul.f32 %v727, %v882
        %v895 = vmul.f32 %v730, %v882
        %v896 = vmul.f32 %v735, %v882
        %v897 = vmul.f32 %v738, %v882
        %v898 = vmul.f32 %v743, %v882
        %v899 = vmul.f32 %v746, %v882
        %v900 = vmul.f32 %v751, %v882
        %v901 = vmul.f32 %v754, %v882
        %v902 = vmul.f32 %v759, %v882
        %v903 = vmul.f32 %v762, %v882
        %v904 = vmul.f32 %v767, %v882
        %v905 = vmul.f32 %v770, %v882
        %v906 = vmul.f32 %v775, %v882
        %v907 = vmul.f32 %v778, %v882
        %v908 = vmul.f32 %v783, %v882
        %v909 = vmul.f32 %v786, %v882
        %v910 = vmul.f32 %v791, %v882
        %v911 = vmul.f32 %v794, %v882
        %v912 = vmul.f32 %v799, %v882
        %v913 = vmul.f32 %v802, %v882
        %v914 = vmul.f32 %v807, %v882
        %v915 = vmul.f32 %v810, %v882
        %v916 = vmul.f32 %v815, %v882
        %v917 = vmul.f32 %v818, %v882
        %v918 = vmul.f32 %v823, %v882
        %v919 = vmul.f32 %v826, %v882
        %v920 = vmul.f32 %v831, %v882
        %v921 = vmul.f32 %v834, %v882
        %v922 = vmul.f32 %v839, %v882
        %v923 = vmul.f32 %v842, %v882
        %v924 = vmul.f32 %v847, %v882
        %v925 = vmul.f32 %v850, %v882
        %v926 = vmul.f32 %v855, %v882
        %v927 = vmul.f32 %v858, %v882
        %v928 = vmul.f32 %v863, %v882
        %v929 = vmul.f32 %v866, %v882
        %v930 = vmul.f32 %v871, %v882
        %v931 = vmul.f32 %v874, %v882
        %v932 = vld [vmem:[%s4] sm:$0x1]
        %v934 = vlaneseq
        %v935 = vshrl.u32 %v934, 7
        %v936 = vsub.s32 0, %v935
        %v937 = vrot.slane %v932, %v936
        %v939 = vadd.f32 %v884, %v937
        %v940 = vadd.f32 %v885, %v937
        %v941 = vadd.f32 %v886, %v937
        %v942 = vadd.f32 %v887, %v937
        %v943 = vadd.f32 %v888, %v937
        %v944 = vadd.f32 %v889, %v937
        %v945 = vadd.f32 %v890, %v937
        %v946 = vadd.f32 %v891, %v937
        %v947 = vadd.f32 %v892, %v937
        %v948 = vadd.f32 %v893, %v937
        %v949 = vadd.f32 %v894, %v937
        %v950 = vadd.f32 %v895, %v937
        %v951 = vadd.f32 %v896, %v937
        %v952 = vadd.f32 %v897, %v937
        %v953 = vadd.f32 %v898, %v937
        %v954 = vadd.f32 %v899, %v937
        %v955 = vadd.f32 %v900, %v937
        %v956 = vadd.f32 %v901, %v937
        %v957 = vadd.f32 %v902, %v937
        %v958 = vadd.f32 %v903, %v937
        %v959 = vadd.f32 %v904, %v937
        %v960 = vadd.f32 %v905, %v937
        %v961 = vadd.f32 %v906, %v937
        %v962 = vadd.f32 %v907, %v937
        %v963 = vadd.f32 %v908, %v937
        %v964 = vadd.f32 %v909, %v937
        %v965 = vadd.f32 %v910, %v937
        %v966 = vadd.f32 %v911, %v937
        %v967 = vadd.f32 %v912, %v937
        %v968 = vadd.f32 %v913, %v937
        %v969 = vadd.f32 %v914, %v937
        %v970 = vadd.f32 %v915, %v937
        %v971 = vadd.f32 %v916, %v937
        %v972 = vadd.f32 %v917, %v937
        %v973 = vadd.f32 %v918, %v937
        %v974 = vadd.f32 %v919, %v937
        %v975 = vadd.f32 %v920, %v937
        %v976 = vadd.f32 %v921, %v937
        %v977 = vadd.f32 %v922, %v937
        %v978 = vadd.f32 %v923, %v937
        %v979 = vadd.f32 %v924, %v937
        %v980 = vadd.f32 %v925, %v937
        %v981 = vadd.f32 %v926, %v937
        %v982 = vadd.f32 %v927, %v937
        %v983 = vadd.f32 %v928, %v937
        %v984 = vadd.f32 %v929, %v937
        %v985 = vadd.f32 %v930, %v937
        %v986 = vadd.f32 %v931, %v937
        %v987 = vmax.f32 %v939, 0.0
        %v988 = vmax.f32 %v940, 0.0
        %v989 = vmax.f32 %v941, 0.0
        %v990 = vmax.f32 %v942, 0.0
        %v991 = vmax.f32 %v943, 0.0
        %v992 = vmax.f32 %v944, 0.0
        %v993 = vmax.f32 %v945, 0.0
        %v994 = vmax.f32 %v946, 0.0
        %v995 = vmax.f32 %v947, 0.0
        %v996 = vmax.f32 %v948, 0.0
        %v997 = vmax.f32 %v949, 0.0
        %v998 = vmax.f32 %v950, 0.0
        %v999 = vmax.f32 %v951, 0.0
        %v1000 = vmax.f32 %v952, 0.0
        %v1001 = vmax.f32 %v953, 0.0
        %v1002 = vmax.f32 %v954, 0.0
        %v1003 = vmax.f32 %v955, 0.0
        %v1004 = vmax.f32 %v956, 0.0
        %v1005 = vmax.f32 %v957, 0.0
        %v1006 = vmax.f32 %v958, 0.0
        %v1007 = vmax.f32 %v959, 0.0
        %v1008 = vmax.f32 %v960, 0.0
        %v1009 = vmax.f32 %v961, 0.0
        %v1010 = vmax.f32 %v962, 0.0
        %v1011 = vmax.f32 %v963, 0.0
        %v1012 = vmax.f32 %v964, 0.0
        %v1013 = vmax.f32 %v965, 0.0
        %v1014 = vmax.f32 %v966, 0.0
        %v1015 = vmax.f32 %v967, 0.0
        %v1016 = vmax.f32 %v968, 0.0
        %v1017 = vmax.f32 %v969, 0.0
        %v1018 = vmax.f32 %v970, 0.0
        %v1019 = vmax.f32 %v971, 0.0
        %v1020 = vmax.f32 %v972, 0.0
        %v1021 = vmax.f32 %v973, 0.0
        %v1022 = vmax.f32 %v974, 0.0
        %v1023 = vmax.f32 %v975, 0.0
        %v1024 = vmax.f32 %v976, 0.0
        %v1025 = vmax.f32 %v977, 0.0
        %v1026 = vmax.f32 %v978, 0.0
        %v1027 = vmax.f32 %v979, 0.0
        %v1028 = vmax.f32 %v980, 0.0
        %v1029 = vmax.f32 %v981, 0.0
        %v1030 = vmax.f32 %v982, 0.0
        %v1031 = vmax.f32 %v983, 0.0
        %v1032 = vmax.f32 %v984, 0.0
        %v1033 = vmax.f32 %v985, 0.0
        %v1034 = vmax.f32 %v986, 0.0
        %v1035 = vld [vmem:[%s1] sm:$0xff]
        %v1036 = vld [vmem:[%s1 + $0x8] sm:$0xff]
        %v1037 = vld [vmem:[%s1 + $0x10] sm:$0xff]
        %v1038 = vld [vmem:[%s1 + $0x18] sm:$0xff]
        %v1039 = vld [vmem:[%s1 + $0x20] sm:$0xff]
        %v1040 = vld [vmem:[%s1 + $0x28] sm:$0xff]
        %v1041 = vld [vmem:[%s1 + $0x30] sm:$0xff]
        %v1042 = vld [vmem:[%s1 + $0x38] sm:$0xff]
        %v1043 = vld [vmem:[%s1 + $0x40] sm:$0xff]
        %v1044 = vld [vmem:[%s1 + $0x48] sm:$0xff]
        %v1045 = vld [vmem:[%s1 + $0x50] sm:$0xff]
        %v1046 = vld [vmem:[%s1 + $0x58] sm:$0xff]
        %v1047 = vld [vmem:[%s1 + $0x60] sm:$0xff]
        %v1048 = vld [vmem:[%s1 + $0x68] sm:$0xff]
        %v1049 = vld [vmem:[%s1 + $0x70] sm:$0xff]
        %v1050 = vld [vmem:[%s1 + $0x78] sm:$0xff]
        %v1051 = vld [vmem:[%s1 + $0x80] sm:$0xff]
        %v1052 = vld [vmem:[%s1 + $0x88] sm:$0xff]
        %v1053 = vld [vmem:[%s1 + $0x90] sm:$0xff]
        %v1054 = vld [vmem:[%s1 + $0x98] sm:$0xff]
        %v1055 = vld [vmem:[%s1 + $0xa0] sm:$0xff]
        %v1056 = vld [vmem:[%s1 + $0xa8] sm:$0xff]
        %v1057 = vld [vmem:[%s1 + $0xb0] sm:$0xff]
        %v1058 = vld [vmem:[%s1 + $0xb8] sm:$0xff]
        %v1059 = vld [vmem:[%s1 + $0xc0] sm:$0xff]
        %v1060 = vld [vmem:[%s1 + $0xc8] sm:$0xff]
        %v1061 = vld [vmem:[%s1 + $0xd0] sm:$0xff]
        %v1062 = vld [vmem:[%s1 + $0xd8] sm:$0xff]
        %v1063 = vld [vmem:[%s1 + $0xe0] sm:$0xff]
        %v1064 = vld [vmem:[%s1 + $0xe8] sm:$0xff]
        %v1065 = vld [vmem:[%s1 + $0xf0] sm:$0xff]
        %v1066 = vld [vmem:[%s1 + $0xf8] sm:$0xff]
        %v1067 = vld [vmem:[%s1 + $0x100] sm:$0xff]
        %v1068 = vld [vmem:[%s1 + $0x108] sm:$0xff]
        %v1069 = vld [vmem:[%s1 + $0x110] sm:$0xff]
        %v1070 = vld [vmem:[%s1 + $0x118] sm:$0xff]
        %v1071 = vld [vmem:[%s1 + $0x120] sm:$0xff]
        %v1072 = vld [vmem:[%s1 + $0x128] sm:$0xff]
        %v1073 = vld [vmem:[%s1 + $0x130] sm:$0xff]
        %v1074 = vld [vmem:[%s1 + $0x138] sm:$0xff]
        %v1075 = vld [vmem:[%s1 + $0x140] sm:$0xff]
        %v1076 = vld [vmem:[%s1 + $0x148] sm:$0xff]
        %v1077 = vld [vmem:[%s1 + $0x150] sm:$0xff]
        %v1078 = vld [vmem:[%s1 + $0x158] sm:$0xff]
        %v1079 = vld [vmem:[%s1 + $0x160] sm:$0xff]
        %v1080 = vld [vmem:[%s1 + $0x168] sm:$0xff]
        %v1081 = vld [vmem:[%s1 + $0x170] sm:$0xff]
        %v1082 = vld [vmem:[%s1 + $0x178] sm:$0xff]
        %1084 = vset.pattern.permute.xlu0 0
        %1085 = vperm.xlu0 %1084, %v1035
        %v1086 = vpop.permute.xlu0 %1085
        %1089 = vset.pattern.permute.xlu0 0
        %1090 = vperm.xlu0 %1089, %v1036
        %v1091 = vpop.permute.xlu0 %1090
        %1094 = vset.pattern.permute.xlu0 0
        %1095 = vperm.xlu0 %1094, %v1037
        %v1096 = vpop.permute.xlu0 %1095
        %1099 = vset.pattern.permute.xlu0 0
        %1100 = vperm.xlu0 %1099, %v1038
        %v1101 = vpop.permute.xlu0 %1100
        %1104 = vset.pattern.permute.xlu0 0
        %1105 = vperm.xlu0 %1104, %v1039
        %v1106 = vpop.permute.xlu0 %1105
        %1109 = vset.pattern.permute.xlu0 0
        %1110 = vperm.xlu0 %1109, %v1040
        %v1111 = vpop.permute.xlu0 %1110
        %1114 = vset.pattern.permute.xlu0 0
        %1115 = vperm.xlu0 %1114, %v1041
        %v1116 = vpop.permute.xlu0 %1115
        %1119 = vset.pattern.permute.xlu0 0
        %1120 = vperm.xlu0 %1119, %v1042
        %v1121 = vpop.permute.xlu0 %1120
        %1124 = vset.pattern.permute.xlu0 0
        %1125 = vperm.xlu0 %1124, %v1043
        %v1126 = vpop.permute.xlu0 %1125
        %1129 = vset.pattern.permute.xlu0 0
        %1130 = vperm.xlu0 %1129, %v1044
        %v1131 = vpop.permute.xlu0 %1130
        %1134 = vset.pattern.permute.xlu0 0
        %1135 = vperm.xlu0 %1134, %v1045
        %v1136 = vpop.permute.xlu0 %1135
        %1139 = vset.pattern.permute.xlu0 0
        %1140 = vperm.xlu0 %1139, %v1046
        %v1141 = vpop.permute.xlu0 %1140
        %1144 = vset.pattern.permute.xlu0 0
        %1145 = vperm.xlu0 %1144, %v1047
        %v1146 = vpop.permute.xlu0 %1145
        %1149 = vset.pattern.permute.xlu0 0
        %1150 = vperm.xlu0 %1149, %v1048
        %v1151 = vpop.permute.xlu0 %1150
        %1154 = vset.pattern.permute.xlu0 0
        %1155 = vperm.xlu0 %1154, %v1049
        %v1156 = vpop.permute.xlu0 %1155
        %1159 = vset.pattern.permute.xlu0 0
        %1160 = vperm.xlu0 %1159, %v1050
        %v1161 = vpop.permute.xlu0 %1160
        %1164 = vset.pattern.permute.xlu0 0
        %1165 = vperm.xlu0 %1164, %v1051
        %v1166 = vpop.permute.xlu0 %1165
        %1169 = vset.pattern.permute.xlu0 0
        %1170 = vperm.xlu0 %1169, %v1052
        %v1171 = vpop.permute.xlu0 %1170
        %1174 = vset.pattern.permute.xlu0 0
        %1175 = vperm.xlu0 %1174, %v1053
        %v1176 = vpop.permute.xlu0 %1175
        %1179 = vset.pattern.permute.xlu0 0
        %1180 = vperm.xlu0 %1179, %v1054
        %v1181 = vpop.permute.xlu0 %1180
        %1184 = vset.pattern.permute.xlu0 0
        %1185 = vperm.xlu0 %1184, %v1055
        %v1186 = vpop.permute.xlu0 %1185
        %1189 = vset.pattern.permute.xlu0 0
        %1190 = vperm.xlu0 %1189, %v1056
        %v1191 = vpop.permute.xlu0 %1190
        %1194 = vset.pattern.permute.xlu0 0
        %1195 = vperm.xlu0 %1194, %v1057
        %v1196 = vpop.permute.xlu0 %1195
        %1199 = vset.pattern.permute.xlu0 0
        %1200 = vperm.xlu0 %1199, %v1058
        %v1201 = vpop.permute.xlu0 %1200
        %1204 = vset.pattern.permute.xlu0 0
        %1205 = vperm.xlu0 %1204, %v1059
        %v1206 = vpop.permute.xlu0 %1205
        %1209 = vset.pattern.permute.xlu0 0
        %1210 = vperm.xlu0 %1209, %v1060
        %v1211 = vpop.permute.xlu0 %1210
        %1214 = vset.pattern.permute.xlu0 0
        %1215 = vperm.xlu0 %1214, %v1061
        %v1216 = vpop.permute.xlu0 %1215
        %1219 = vset.pattern.permute.xlu0 0
        %1220 = vperm.xlu0 %1219, %v1062
        %v1221 = vpop.permute.xlu0 %1220
        %1224 = vset.pattern.permute.xlu0 0
        %1225 = vperm.xlu0 %1224, %v1063
        %v1226 = vpop.permute.xlu0 %1225
        %1229 = vset.pattern.permute.xlu0 0
        %1230 = vperm.xlu0 %1229, %v1064
        %v1231 = vpop.permute.xlu0 %1230
        %1234 = vset.pattern.permute.xlu0 0
        %1235 = vperm.xlu0 %1234, %v1065
        %v1236 = vpop.permute.xlu0 %1235
        %1239 = vset.pattern.permute.xlu0 0
        %1240 = vperm.xlu0 %1239, %v1066
        %v1241 = vpop.permute.xlu0 %1240
        %1244 = vset.pattern.permute.xlu0 0
        %1245 = vperm.xlu0 %1244, %v1067
        %v1246 = vpop.permute.xlu0 %1245
        %1249 = vset.pattern.permute.xlu0 0
        %1250 = vperm.xlu0 %1249, %v1068
        %v1251 = vpop.permute.xlu0 %1250
        %1254 = vset.pattern.permute.xlu0 0
        %1255 = vperm.xlu0 %1254, %v1069
        %v1256 = vpop.permute.xlu0 %1255
        %1259 = vset.pattern.permute.xlu0 0
        %1260 = vperm.xlu0 %1259, %v1070
        %v1261 = vpop.permute.xlu0 %1260
        %1264 = vset.pattern.permute.xlu0 0
        %1265 = vperm.xlu0 %1264, %v1071
        %v1266 = vpop.permute.xlu0 %1265
        %1269 = vset.pattern.permute.xlu0 0
        %1270 = vperm.xlu0 %1269, %v1072
        %v1271 = vpop.permute.xlu0 %1270
        %1274 = vset.pattern.permute.xlu0 0
        %1275 = vperm.xlu0 %1274, %v1073
        %v1276 = vpop.permute.xlu0 %1275
        %1279 = vset.pattern.permute.xlu0 0
        %1280 = vperm.xlu0 %1279, %v1074
        %v1281 = vpop.permute.xlu0 %1280
        %1284 = vset.pattern.permute.xlu0 0
        %1285 = vperm.xlu0 %1284, %v1075
        %v1286 = vpop.permute.xlu0 %1285
        %1289 = vset.pattern.permute.xlu0 0
        %1290 = vperm.xlu0 %1289, %v1076
        %v1291 = vpop.permute.xlu0 %1290
        %1294 = vset.pattern.permute.xlu0 0
        %1295 = vperm.xlu0 %1294, %v1077
        %v1296 = vpop.permute.xlu0 %1295
        %1299 = vset.pattern.permute.xlu0 0
        %1300 = vperm.xlu0 %1299, %v1078
        %v1301 = vpop.permute.xlu0 %1300
        %1304 = vset.pattern.permute.xlu0 0
        %1305 = vperm.xlu0 %1304, %v1079
        %v1306 = vpop.permute.xlu0 %1305
        %1309 = vset.pattern.permute.xlu0 0
        %1310 = vperm.xlu0 %1309, %v1080
        %v1311 = vpop.permute.xlu0 %1310
        %1314 = vset.pattern.permute.xlu0 0
        %1315 = vperm.xlu0 %1314, %v1081
        %v1316 = vpop.permute.xlu0 %1315
        %1319 = vset.pattern.permute.xlu0 0
        %1320 = vperm.xlu0 %1319, %v1082
        %v1321 = vpop.permute.xlu0 %1320
        %v1323 = vmul.f32 %v987, %v1086
        %v1324 = vmul.f32 %v988, %v1091
        %v1325 = vmul.f32 %v989, %v1096
        %v1326 = vmul.f32 %v990, %v1101
        %v1327 = vmul.f32 %v991, %v1106
        %v1328 = vmul.f32 %v992, %v1111
        %v1329 = vmul.f32 %v993, %v1116
        %v1330 = vmul.f32 %v994, %v1121
        %v1331 = vmul.f32 %v995, %v1126
        %v1332 = vmul.f32 %v996, %v1131
        %v1333 = vmul.f32 %v997, %v1136
        %v1334 = vmul.f32 %v998, %v1141
        %v1335 = vmul.f32 %v999, %v1146
        %v1336 = vmul.f32 %v1000, %v1151
        %v1337 = vmul.f32 %v1001, %v1156
        %v1338 = vmul.f32 %v1002, %v1161
        %v1339 = vmul.f32 %v1003, %v1166
        %v1340 = vmul.f32 %v1004, %v1171
        %v1341 = vmul.f32 %v1005, %v1176
        %v1342 = vmul.f32 %v1006, %v1181
        %v1343 = vmul.f32 %v1007, %v1186
        %v1344 = vmul.f32 %v1008, %v1191
        %v1345 = vmul.f32 %v1009, %v1196
        %v1346 = vmul.f32 %v1010, %v1201
        %v1347 = vmul.f32 %v1011, %v1206
        %v1348 = vmul.f32 %v1012, %v1211
        %v1349 = vmul.f32 %v1013, %v1216
        %v1350 = vmul.f32 %v1014, %v1221
        %v1351 = vmul.f32 %v1015, %v1226
        %v1352 = vmul.f32 %v1016, %v1231
        %v1353 = vmul.f32 %v1017, %v1236
        %v1354 = vmul.f32 %v1018, %v1241
        %v1355 = vmul.f32 %v1019, %v1246
        %v1356 = vmul.f32 %v1020, %v1251
        %v1357 = vmul.f32 %v1021, %v1256
        %v1358 = vmul.f32 %v1022, %v1261
        %v1359 = vmul.f32 %v1023, %v1266
        %v1360 = vmul.f32 %v1024, %v1271
        %v1361 = vmul.f32 %v1025, %v1276
        %v1362 = vmul.f32 %v1026, %v1281
        %v1363 = vmul.f32 %v1027, %v1286
        %v1364 = vmul.f32 %v1028, %v1291
        %v1365 = vmul.f32 %v1029, %v1296
        %v1366 = vmul.f32 %v1030, %v1301
        %v1367 = vmul.f32 %v1031, %v1306
        %v1368 = vmul.f32 %v1032, %v1311
        %v1369 = vmul.f32 %v1033, %v1316
        %v1370 = vmul.f32 %v1034, %v1321
        %v1371 = vpack.c.bf16 %v1324, %v1323
        %v1372 = vpack.c.bf16 %v1326, %v1325
        %v1373 = vpack.c.bf16 %v1328, %v1327
        %v1374 = vpack.c.bf16 %v1330, %v1329
        %v1375 = vpack.c.bf16 %v1332, %v1331
        %v1376 = vpack.c.bf16 %v1334, %v1333
        %v1377 = vpack.c.bf16 %v1336, %v1335
        %v1378 = vpack.c.bf16 %v1338, %v1337
        %v1379 = vpack.c.bf16 %v1340, %v1339
        %v1380 = vpack.c.bf16 %v1342, %v1341
        %v1381 = vpack.c.bf16 %v1344, %v1343
        %v1382 = vpack.c.bf16 %v1346, %v1345
        %v1383 = vpack.c.bf16 %v1348, %v1347
        %v1384 = vpack.c.bf16 %v1350, %v1349
        %v1385 = vpack.c.bf16 %v1352, %v1351
        %v1386 = vpack.c.bf16 %v1354, %v1353
        %v1387 = vpack.c.bf16 %v1356, %v1355
        %v1388 = vpack.c.bf16 %v1358, %v1357
        %v1389 = vpack.c.bf16 %v1360, %v1359
        %v1390 = vpack.c.bf16 %v1362, %v1361
        %v1391 = vpack.c.bf16 %v1364, %v1363
        %v1392 = vpack.c.bf16 %v1366, %v1365
        %v1393 = vpack.c.bf16 %v1368, %v1367
        %v1394 = vpack.c.bf16 %v1370, %v1369
        %v1419 = vunpack.c.l.b16 %v1371
        %v1420 = vunpack.c.h.b16 %v1371
        %v1421 = vunpack.c.l.b16 %v1372
        %v1422 = vunpack.c.h.b16 %v1372
        %v1423 = vunpack.c.l.b16 %v1373
        %v1424 = vunpack.c.h.b16 %v1373
        %v1425 = vunpack.c.l.b16 %v1374
        %v1426 = vunpack.c.h.b16 %v1374
        %v1427 = vunpack.c.l.b16 %v1375
        %v1428 = vunpack.c.h.b16 %v1375
        %v1429 = vunpack.c.l.b16 %v1376
        %v1430 = vunpack.c.h.b16 %v1376
        %v1431 = vunpack.c.l.b16 %v1377
        %v1432 = vunpack.c.h.b16 %v1377
        %v1433 = vunpack.c.l.b16 %v1378
        %v1434 = vunpack.c.h.b16 %v1378
        %v1435 = vunpack.c.l.b16 %v1379
        %v1436 = vunpack.c.h.b16 %v1379
        %v1437 = vunpack.c.l.b16 %v1380
        %v1438 = vunpack.c.h.b16 %v1380
        %v1439 = vunpack.c.l.b16 %v1381
        %v1440 = vunpack.c.h.b16 %v1381
        %v1441 = vunpack.c.l.b16 %v1382
        %v1442 = vunpack.c.h.b16 %v1382
        %v1443 = vunpack.c.l.b16 %v1383
        %v1444 = vunpack.c.h.b16 %v1383
        %v1445 = vunpack.c.l.b16 %v1384
        %v1446 = vunpack.c.h.b16 %v1384
        %v1447 = vunpack.c.l.b16 %v1385
        %v1448 = vunpack.c.h.b16 %v1385
        %v1449 = vunpack.c.l.b16 %v1386
        %v1450 = vunpack.c.h.b16 %v1386
        %v1451 = vunpack.c.l.b16 %v1387
        %v1452 = vunpack.c.h.b16 %v1387
        %v1453 = vunpack.c.l.b16 %v1388
        %v1454 = vunpack.c.h.b16 %v1388
        %v1455 = vunpack.c.l.b16 %v1389
        %v1456 = vunpack.c.h.b16 %v1389
        %v1457 = vunpack.c.l.b16 %v1390
        %v1458 = vunpack.c.h.b16 %v1390
        %v1459 = vunpack.c.l.b16 %v1391
        %v1460 = vunpack.c.h.b16 %v1391
        %v1461 = vunpack.c.l.b16 %v1392
        %v1462 = vunpack.c.h.b16 %v1392
        %v1463 = vunpack.c.l.b16 %v1393
        %v1464 = vunpack.c.h.b16 %v1393
        %v1465 = vunpack.c.l.b16 %v1394
        %v1466 = vunpack.c.h.b16 %v1394
        %v1467 = vpack.c.b16 %v1419, %v1419
        %v1468 = vpack.c.b16 %v1420, %v1420
        %v1469 = vpack.c.b16 %v1421, %v1421
        %v1470 = vpack.c.b16 %v1422, %v1422
        %v1471 = vpack.c.b16 %v1423, %v1423
        %v1472 = vpack.c.b16 %v1424, %v1424
        %v1473 = vpack.c.b16 %v1425, %v1425
        %v1474 = vpack.c.b16 %v1426, %v1426
        %v1475 = vpack.c.b16 %v1427, %v1427
        %v1476 = vpack.c.b16 %v1428, %v1428
        %v1477 = vpack.c.b16 %v1429, %v1429
        %v1478 = vpack.c.b16 %v1430, %v1430
        %v1479 = vpack.c.b16 %v1431, %v1431
        %v1480 = vpack.c.b16 %v1432, %v1432
        %v1481 = vpack.c.b16 %v1433, %v1433
        %v1482 = vpack.c.b16 %v1434, %v1434
        %v1483 = vpack.c.b16 %v1435, %v1435
        %v1484 = vpack.c.b16 %v1436, %v1436
        %v1485 = vpack.c.b16 %v1437, %v1437
        %v1486 = vpack.c.b16 %v1438, %v1438
        %v1487 = vpack.c.b16 %v1439, %v1439
        %v1488 = vpack.c.b16 %v1440, %v1440
        %v1489 = vpack.c.b16 %v1441, %v1441
        %v1490 = vpack.c.b16 %v1442, %v1442
        %v1491 = vpack.c.b16 %v1443, %v1443
        %v1492 = vpack.c.b16 %v1444, %v1444
        %v1493 = vpack.c.b16 %v1445, %v1445
        %v1494 = vpack.c.b16 %v1446, %v1446
        %v1495 = vpack.c.b16 %v1447, %v1447
        %v1496 = vpack.c.b16 %v1448, %v1448
        %v1497 = vpack.c.b16 %v1449, %v1449
        %v1498 = vpack.c.b16 %v1450, %v1450
        %v1499 = vpack.c.b16 %v1451, %v1451
        %v1500 = vpack.c.b16 %v1452, %v1452
        %v1501 = vpack.c.b16 %v1453, %v1453
        %v1502 = vpack.c.b16 %v1454, %v1454
        %v1503 = vpack.c.b16 %v1455, %v1455
        %v1504 = vpack.c.b16 %v1456, %v1456
        %v1505 = vpack.c.b16 %v1457, %v1457
        %v1506 = vpack.c.b16 %v1458, %v1458
        %v1507 = vpack.c.b16 %v1459, %v1459
        %v1508 = vpack.c.b16 %v1460, %v1460
        %v1509 = vpack.c.b16 %v1461, %v1461
        %v1510 = vpack.c.b16 %v1462, %v1462
        %v1511 = vpack.c.b16 %v1463, %v1463
        %v1512 = vpack.c.b16 %v1464, %v1464
        %v1513 = vpack.c.b16 %v1465, %v1465
        %v1514 = vpack.c.b16 %v1466, %v1466
        %1563 = vst.msk [vmem:[#allocation2 + $0xc] sm:$0xf] %vm386, %v1467
        %1564 = vst.msk [vmem:[#allocation2 + $0x10] sm:$0xf] %vm386, %v1468
        %1565 = vst.msk [vmem:[#allocation2 + $0x14] sm:$0xf] %vm386, %v1469
        %1566 = vst.msk [vmem:[#allocation2 + $0x18] sm:$0xf] %vm386, %v1470
        %1567 = vst.msk [vmem:[#allocation2 + $0x1c] sm:$0xf] %vm386, %v1471
        %1568 = vst.msk [vmem:[#allocation2 + $0x20] sm:$0xf] %vm386, %v1472
        %1569 = vst.msk [vmem:[#allocation2 + $0x24] sm:$0xf] %vm386, %v1473
        %1570 = vst.msk [vmem:[#allocation2 + $0x28] sm:$0xf] %vm386, %v1474
        %1571 = vst.msk [vmem:[#allocation2 + $0x2c] sm:$0xf] %vm386, %v1475
        %1572 = vst.msk [vmem:[#allocation2 + $0x30] sm:$0xf] %vm386, %v1476
        %1573 = vst.msk [vmem:[#allocation2 + $0x34] sm:$0xf] %vm386, %v1477
        %1574 = vst.msk [vmem:[#allocation2 + $0x38] sm:$0xf] %vm386, %v1478
        %1575 = vst.msk [vmem:[#allocation2 + $0x3c] sm:$0xf] %vm386, %v1479
        %1576 = vst.msk [vmem:[#allocation2 + $0x40] sm:$0xf] %vm386, %v1480
        %1577 = vst.msk [vmem:[#allocation2 + $0x44] sm:$0xf] %vm386, %v1481
        %1578 = vst.msk [vmem:[#allocation2 + $0x48] sm:$0xf] %vm386, %v1482
        %1579 = vst.msk [vmem:[#allocation2 + $0x4c] sm:$0xf] %vm386, %v1483
        %1580 = vst.msk [vmem:[#allocation2 + $0x50] sm:$0xf] %vm386, %v1484
        %1581 = vst.msk [vmem:[#allocation2 + $0x54] sm:$0xf] %vm386, %v1485
        %1582 = vst.msk [vmem:[#allocation2 + $0x58] sm:$0xf] %vm386, %v1486
        %1583 = vst.msk [vmem:[#allocation2 + $0x5c] sm:$0xf] %vm386, %v1487
        %1584 = vst.msk [vmem:[#allocation2 + $0x60] sm:$0xf] %vm386, %v1488
        %1585 = vst.msk [vmem:[#allocation2 + $0x64] sm:$0xf] %vm386, %v1489
        %1586 = vst.msk [vmem:[#allocation2 + $0x68] sm:$0xf] %vm386, %v1490
        %1587 = vst.msk [vmem:[#allocation2 + $0x6c] sm:$0xf] %vm386, %v1491
        %1588 = vst.msk [vmem:[#allocation2 + $0x70] sm:$0xf] %vm386, %v1492
        %1589 = vst.msk [vmem:[#allocation2 + $0x74] sm:$0xf] %vm386, %v1493
        %1590 = vst.msk [vmem:[#allocation2 + $0x78] sm:$0xf] %vm386, %v1494
        %1591 = vst.msk [vmem:[#allocation2 + $0x7c] sm:$0xf] %vm386, %v1495
        %1592 = vst.msk [vmem:[#allocation2 + $0x80] sm:$0xf] %vm386, %v1496
        %1593 = vst.msk [vmem:[#allocation2 + $0x84] sm:$0xf] %vm386, %v1497
        %1594 = vst.msk [vmem:[#allocation2 + $0x88] sm:$0xf] %vm386, %v1498
        %1595 = vst.msk [vmem:[#allocation2 + $0x8c] sm:$0xf] %vm386, %v1499
        %1596 = vst.msk [vmem:[#allocation2 + $0x90] sm:$0xf] %vm386, %v1500
        %1597 = vst.msk [vmem:[#allocation2 + $0x94] sm:$0xf] %vm386, %v1501
        %1598 = vst.msk [vmem:[#allocation2 + $0x98] sm:$0xf] %vm386, %v1502
        %1599 = vst.msk [vmem:[#allocation2 + $0x9c] sm:$0xf] %vm386, %v1503
        %1600 = vst.msk [vmem:[#allocation2 + $0xa0] sm:$0xf] %vm386, %v1504
        %1601 = vst.msk [vmem:[#allocation2 + $0xa4] sm:$0xf] %vm386, %v1505
        %1602 = vst.msk [vmem:[#allocation2 + $0xa8] sm:$0xf] %vm386, %v1506
        %1603 = vst.msk [vmem:[#allocation2 + $0xac] sm:$0xf] %vm386, %v1507
        %1604 = vst.msk [vmem:[#allocation2 + $0xb0] sm:$0xf] %vm386, %v1508
        %1605 = vst.msk [vmem:[#allocation2 + $0xb4] sm:$0xf] %vm386, %v1509
        %1606 = vst.msk [vmem:[#allocation2 + $0xb8] sm:$0xf] %vm386, %v1510
        %1607 = vst.msk [vmem:[#allocation2 + $0xbc] sm:$0xf] %vm386, %v1511
        %1608 = vst.msk [vmem:[#allocation2 + $0xc0] sm:$0xf] %vm386, %v1512
        %1609 = vst.msk [vmem:[#allocation2 + $0xc4] sm:$0xf] %vm386, %v1513
        %1610 = vst.msk [vmem:[#allocation2 + $0xc8] sm:$0xf] %vm386, %v1514
        %v1611 = vld [vmem:[#allocation2] sm:$0xf]
        %v1612 = vld [vmem:[#allocation2 + $0x4] sm:$0xf]
        %v1613 = vld [vmem:[#allocation2 + $0x8] sm:$0xf]
        %v1614 = vld [vmem:[#allocation2 + $0xc] sm:$0xf]
        %v1615 = vld [vmem:[#allocation2 + $0x10] sm:$0xf]
        %v1616 = vld [vmem:[#allocation2 + $0x14] sm:$0xf]
        %v1617 = vld [vmem:[#allocation2 + $0x18] sm:$0xf]
        %v1618 = vld [vmem:[#allocation2 + $0x1c] sm:$0xf]
        %v1619 = vld [vmem:[#allocation2 + $0x20] sm:$0xf]
        %v1620 = vld [vmem:[#allocation2 + $0x24] sm:$0xf]
        %v1621 = vld [vmem:[#allocation2 + $0x28] sm:$0xf]
        %v1622 = vld [vmem:[#allocation2 + $0x2c] sm:$0xf]
        %v1623 = vld [vmem:[#allocation2 + $0x30] sm:$0xf]
        %v1624 = vld [vmem:[#allocation2 + $0x34] sm:$0xf]
        %v1625 = vld [vmem:[#allocation2 + $0x38] sm:$0xf]
        %v1626 = vld [vmem:[#allocation2 + $0x3c] sm:$0xf]
        %v1627 = vld [vmem:[#allocation2 + $0x40] sm:$0xf]
        %v1628 = vld [vmem:[#allocation2 + $0x44] sm:$0xf]
        %v1629 = vld [vmem:[#allocation2 + $0x48] sm:$0xf]
        %v1630 = vld [vmem:[#allocation2 + $0x4c] sm:$0xf]
        %v1631 = vld [vmem:[#allocation2 + $0x50] sm:$0xf]
        %v1632 = vld [vmem:[#allocation2 + $0x54] sm:$0xf]
        %v1633 = vld [vmem:[#allocation2 + $0x58] sm:$0xf]
        %v1634 = vld [vmem:[#allocation2 + $0x5c] sm:$0xf]
        %v1635 = vld [vmem:[#allocation2 + $0x60] sm:$0xf]
        %v1636 = vld [vmem:[#allocation2 + $0x64] sm:$0xf]
        %v1637 = vld [vmem:[#allocation2 + $0x68] sm:$0xf]
        %v1638 = vld [vmem:[#allocation2 + $0x6c] sm:$0xf]
        %v1639 = vld [vmem:[#allocation2 + $0x70] sm:$0xf]
        %v1640 = vld [vmem:[#allocation2 + $0x74] sm:$0xf]
        %v1641 = vld [vmem:[#allocation2 + $0x78] sm:$0xf]
        %v1642 = vld [vmem:[#allocation2 + $0x7c] sm:$0xf]
        %v1643 = vld [vmem:[#allocation2 + $0x80] sm:$0xf]
        %v1644 = vld [vmem:[#allocation2 + $0x84] sm:$0xf]
        %v1645 = vld [vmem:[#allocation2 + $0x88] sm:$0xf]
        %v1646 = vld [vmem:[#allocation2 + $0x8c] sm:$0xf]
        %v1647 = vld [vmem:[#allocation2 + $0x90] sm:$0xf]
        %v1648 = vld [vmem:[#allocation2 + $0x94] sm:$0xf]
        %v1649 = vld [vmem:[#allocation2 + $0x98] sm:$0xf]
        %v1650 = vld [vmem:[#allocation2 + $0x9c] sm:$0xf]
        %v1651 = vld [vmem:[#allocation2 + $0xa0] sm:$0xf]
        %v1652 = vld [vmem:[#allocation2 + $0xa4] sm:$0xf]
        %v1653 = vld [vmem:[#allocation2 + $0xa8] sm:$0xf]
        %v1654 = vld [vmem:[#allocation2 + $0xac] sm:$0xf]
        %v1655 = vld [vmem:[#allocation2 + $0xb0] sm:$0xf]
        %v1656 = vld [vmem:[#allocation2 + $0xb4] sm:$0xf]
        %v1657 = vld [vmem:[#allocation2 + $0xb8] sm:$0xf]
        %v1658 = vld [vmem:[#allocation2 + $0xbc] sm:$0xf]
        %v1707 = vunpack.c.l.b16 %v1611
        %v1708 = vunpack.c.l.b16 %v1612
        %v1709 = vunpack.c.l.b16 %v1613
        %v1710 = vunpack.c.l.b16 %v1614
        %v1711 = vunpack.c.l.b16 %v1615
        %v1712 = vunpack.c.l.b16 %v1616
        %v1713 = vunpack.c.l.b16 %v1617
        %v1714 = vunpack.c.l.b16 %v1618
        %v1715 = vunpack.c.l.b16 %v1619
        %v1716 = vunpack.c.l.b16 %v1620
        %v1717 = vunpack.c.l.b16 %v1621
        %v1718 = vunpack.c.l.b16 %v1622
        %v1719 = vunpack.c.l.b16 %v1623
        %v1720 = vunpack.c.l.b16 %v1624
        %v1721 = vunpack.c.l.b16 %v1625
        %v1722 = vunpack.c.l.b16 %v1626
        %v1723 = vunpack.c.l.b16 %v1627
        %v1724 = vunpack.c.l.b16 %v1628
        %v1725 = vunpack.c.l.b16 %v1629
        %v1726 = vunpack.c.l.b16 %v1630
        %v1727 = vunpack.c.l.b16 %v1631
        %v1728 = vunpack.c.l.b16 %v1632
        %v1729 = vunpack.c.l.b16 %v1633
        %v1730 = vunpack.c.l.b16 %v1634
        %v1731 = vunpack.c.l.b16 %v1635
        %v1732 = vunpack.c.l.b16 %v1636
        %v1733 = vunpack.c.l.b16 %v1637
        %v1734 = vunpack.c.l.b16 %v1638
        %v1735 = vunpack.c.l.b16 %v1639
        %v1736 = vunpack.c.l.b16 %v1640
        %v1737 = vunpack.c.l.b16 %v1641
        %v1738 = vunpack.c.l.b16 %v1642
        %v1739 = vunpack.c.l.b16 %v1643
        %v1740 = vunpack.c.l.b16 %v1644
        %v1741 = vunpack.c.l.b16 %v1645
        %v1742 = vunpack.c.l.b16 %v1646
        %v1743 = vunpack.c.l.b16 %v1647
        %v1744 = vunpack.c.l.b16 %v1648
        %v1745 = vunpack.c.l.b16 %v1649
        %v1746 = vunpack.c.l.b16 %v1650
        %v1747 = vunpack.c.l.b16 %v1651
        %v1748 = vunpack.c.l.b16 %v1652
        %v1749 = vunpack.c.l.b16 %v1653
        %v1750 = vunpack.c.l.b16 %v1654
        %v1751 = vunpack.c.l.b16 %v1655
        %v1752 = vunpack.c.l.b16 %v1656
        %v1753 = vunpack.c.l.b16 %v1657
        %v1754 = vunpack.c.l.b16 %v1658
        %v1755 = vpack.c.b16 %v1708, %v1707
        %v1756 = vpack.c.b16 %v1710, %v1709
        %v1757 = vpack.c.b16 %v1712, %v1711
        %v1758 = vpack.c.b16 %v1714, %v1713
        %v1759 = vpack.c.b16 %v1716, %v1715
        %v1760 = vpack.c.b16 %v1718, %v1717
        %v1761 = vpack.c.b16 %v1720, %v1719
        %v1762 = vpack.c.b16 %v1722, %v1721
        %v1763 = vpack.c.b16 %v1724, %v1723
        %v1764 = vpack.c.b16 %v1726, %v1725
        %v1765 = vpack.c.b16 %v1728, %v1727
        %v1766 = vpack.c.b16 %v1730, %v1729
        %v1767 = vpack.c.b16 %v1732, %v1731
        %v1768 = vpack.c.b16 %v1734, %v1733
        %v1769 = vpack.c.b16 %v1736, %v1735
        %v1770 = vpack.c.b16 %v1738, %v1737
        %v1771 = vpack.c.b16 %v1740, %v1739
        %v1772 = vpack.c.b16 %v1742, %v1741
        %v1773 = vpack.c.b16 %v1744, %v1743
        %v1774 = vpack.c.b16 %v1746, %v1745
        %v1775 = vpack.c.b16 %v1748, %v1747
        %v1776 = vpack.c.b16 %v1750, %v1749
        %v1777 = vpack.c.b16 %v1752, %v1751
        %v1778 = vpack.c.b16 %v1754, %v1753
        %vm1803 = vcmask 261120
        %1804 = vst.msk [vmem:[#allocation3] sm:$0xff] %vm1803, %v1755
        %1805 = vst.msk [vmem:[#allocation3 + $0x18] sm:$0xff] %vm1803, %v1756
        %1806 = vst.msk [vmem:[#allocation3 + $0x30] sm:$0xff] %vm1803, %v1757
        %1807 = vst.msk [vmem:[#allocation3 + $0x48] sm:$0xff] %vm1803, %v1758
        %1808 = vst.msk [vmem:[#allocation3 + $0x60] sm:$0xff] %vm1803, %v1759
        %1809 = vst.msk [vmem:[#allocation3 + $0x78] sm:$0xff] %vm1803, %v1760
        %1810 = vst.msk [vmem:[#allocation3 + $0x90] sm:$0xff] %vm1803, %v1761
        %1811 = vst.msk [vmem:[#allocation3 + $0xa8] sm:$0xff] %vm1803, %v1762
        %1812 = vst.msk [vmem:[#allocation3 + $0xc0] sm:$0xff] %vm1803, %v1763
        %1813 = vst.msk [vmem:[#allocation3 + $0xd8] sm:$0xff] %vm1803, %v1764
        %1814 = vst.msk [vmem:[#allocation3 + $0xf0] sm:$0xff] %vm1803, %v1765
        %1815 = vst.msk [vmem:[#allocation3 + $0x108] sm:$0xff] %vm1803, %v1766
        %1816 = vst.msk [vmem:[#allocation3 + $0x120] sm:$0xff] %vm1803, %v1767
        %1817 = vst.msk [vmem:[#allocation3 + $0x138] sm:$0xff] %vm1803, %v1768
        %1818 = vst.msk [vmem:[#allocation3 + $0x150] sm:$0xff] %vm1803, %v1769
        %1819 = vst.msk [vmem:[#allocation3 + $0x168] sm:$0xff] %vm1803, %v1770
        %1820 = vst.msk [vmem:[#allocation3 + $0x180] sm:$0xff] %vm1803, %v1771
        %1821 = vst.msk [vmem:[#allocation3 + $0x198] sm:$0xff] %vm1803, %v1772
        %1822 = vst.msk [vmem:[#allocation3 + $0x1b0] sm:$0xff] %vm1803, %v1773
        %1823 = vst.msk [vmem:[#allocation3 + $0x1c8] sm:$0xff] %vm1803, %v1774
        %1824 = vst.msk [vmem:[#allocation3 + $0x1e0] sm:$0xff] %vm1803, %v1775
        %1825 = vst.msk [vmem:[#allocation3 + $0x1f8] sm:$0xff] %vm1803, %v1776
        %1826 = vst.msk [vmem:[#allocation3 + $0x210] sm:$0xff] %vm1803, %v1777
        %1827 = vst.msk [vmem:[#allocation3 + $0x228] sm:$0xff] %vm1803, %v1778
        %v1828 = vld [vmem:[#allocation2] sm:$0xf]
        %v1829 = vld [vmem:[#allocation2 + $0x4] sm:$0xf]
        %v1830 = vld [vmem:[#allocation2 + $0x8] sm:$0xf]
        %v1831 = vld [vmem:[#allocation2 + $0xc] sm:$0xf]
        %v1832 = vld [vmem:[#allocation2 + $0x10] sm:$0xf]
        %v1833 = vld [vmem:[#allocation2 + $0x14] sm:$0xf]
        %v1834 = vld [vmem:[#allocation2 + $0x18] sm:$0xf]
        %v1835 = vld [vmem:[#allocation2 + $0x1c] sm:$0xf]
        %v1836 = vld [vmem:[#allocation2 + $0x20] sm:$0xf]
        %v1837 = vld [vmem:[#allocation2 + $0x24] sm:$0xf]
        %v1838 = vld [vmem:[#allocation2 + $0x28] sm:$0xf]
        %v1839 = vld [vmem:[#allocation2 + $0x2c] sm:$0xf]
        %v1840 = vld [vmem:[#allocation2 + $0x30] sm:$0xf]
        %v1841 = vld [vmem:[#allocation2 + $0x34] sm:$0xf]
        %v1842 = vld [vmem:[#allocation2 + $0x38] sm:$0xf]
        %v1843 = vld [vmem:[#allocation2 + $0x3c] sm:$0xf]
        %v1844 = vld [vmem:[#allocation2 + $0x40] sm:$0xf]
        %v1845 = vld [vmem:[#allocation2 + $0x44] sm:$0xf]
        %v1846 = vld [vmem:[#allocation2 + $0x48] sm:$0xf]
        %v1847 = vld [vmem:[#allocation2 + $0x4c] sm:$0xf]
        %v1848 = vld [vmem:[#allocation2 + $0x50] sm:$0xf]
        %v1849 = vld [vmem:[#allocation2 + $0x54] sm:$0xf]
        %v1850 = vld [vmem:[#allocation2 + $0x58] sm:$0xf]
        %v1851 = vld [vmem:[#allocation2 + $0x5c] sm:$0xf]
        %v1852 = vld [vmem:[#allocation2 + $0x60] sm:$0xf]
        %v1853 = vld [vmem:[#allocation2 + $0x64] sm:$0xf]
        %v1854 = vld [vmem:[#allocation2 + $0x68] sm:$0xf]
        %v1855 = vld [vmem:[#allocation2 + $0x6c] sm:$0xf]
        %v1856 = vld [vmem:[#allocation2 + $0x70] sm:$0xf]
        %v1857 = vld [vmem:[#allocation2 + $0x74] sm:$0xf]
        %v1858 = vld [vmem:[#allocation2 + $0x78] sm:$0xf]
        %v1859 = vld [vmem:[#allocation2 + $0x7c] sm:$0xf]
        %v1860 = vld [vmem:[#allocation2 + $0x80] sm:$0xf]
        %v1861 = vld [vmem:[#allocation2 + $0x84] sm:$0xf]
        %v1862 = vld [vmem:[#allocation2 + $0x88] sm:$0xf]
        %v1863 = vld [vmem:[#allocation2 + $0x8c] sm:$0xf]
        %v1864 = vld [vmem:[#allocation2 + $0x90] sm:$0xf]
        %v1865 = vld [vmem:[#allocation2 + $0x94] sm:$0xf]
        %v1866 = vld [vmem:[#allocation2 + $0x98] sm:$0xf]
        %v1867 = vld [vmem:[#allocation2 + $0x9c] sm:$0xf]
        %v1868 = vld [vmem:[#allocation2 + $0xa0] sm:$0xf]
        %v1869 = vld [vmem:[#allocation2 + $0xa4] sm:$0xf]
        %v1870 = vld [vmem:[#allocation2 + $0xa8] sm:$0xf]
        %v1871 = vld [vmem:[#allocation2 + $0xac] sm:$0xf]
        %v1872 = vld [vmem:[#allocation2 + $0xb0] sm:$0xf]
        %v1873 = vld [vmem:[#allocation2 + $0xb4] sm:$0xf]
        %v1874 = vld [vmem:[#allocation2 + $0xb8] sm:$0xf]
        %v1875 = vld [vmem:[#allocation2 + $0xbc] sm:$0xf]
        %v1876 = vld [vmem:[#allocation2 + $0xc0] sm:$0x1]
        %v1926 = vunpack.c.l.b16 %v1828
        %v1927 = vunpack.c.l.b16 %v1829
        %v1928 = vunpack.c.l.b16 %v1830
        %v1929 = vunpack.c.l.b16 %v1831
        %v1930 = vunpack.c.l.b16 %v1832
        %v1931 = vunpack.c.l.b16 %v1833
        %v1932 = vunpack.c.l.b16 %v1834
        %v1933 = vunpack.c.l.b16 %v1835
        %v1934 = vunpack.c.l.b16 %v1836
        %v1935 = vunpack.c.l.b16 %v1837
        %v1936 = vunpack.c.l.b16 %v1838
        %v1937 = vunpack.c.l.b16 %v1839
        %v1938 = vunpack.c.l.b16 %v1840
        %v1939 = vunpack.c.l.b16 %v1841
        %v1940 = vunpack.c.l.b16 %v1842
        %v1941 = vunpack.c.l.b16 %v1843
        %v1942 = vunpack.c.l.b16 %v1844
        %v1943 = vunpack.c.l.b16 %v1845
        %v1944 = vunpack.c.l.b16 %v1846
        %v1945 = vunpack.c.l.b16 %v1847
        %v1946 = vunpack.c.l.b16 %v1848
        %v1947 = vunpack.c.l.b16 %v1849
        %v1948 = vunpack.c.l.b16 %v1850
        %v1949 = vunpack.c.l.b16 %v1851
        %v1950 = vunpack.c.l.b16 %v1852
        %v1951 = vunpack.c.l.b16 %v1853
        %v1952 = vunpack.c.l.b16 %v1854
        %v1953 = vunpack.c.l.b16 %v1855
        %v1954 = vunpack.c.l.b16 %v1856
        %v1955 = vunpack.c.l.b16 %v1857
        %v1956 = vunpack.c.l.b16 %v1858
        %v1957 = vunpack.c.l.b16 %v1859
        %v1958 = vunpack.c.l.b16 %v1860
        %v1959 = vunpack.c.l.b16 %v1861
        %v1960 = vunpack.c.l.b16 %v1862
        %v1961 = vunpack.c.l.b16 %v1863
        %v1962 = vunpack.c.l.b16 %v1864
        %v1963 = vunpack.c.l.b16 %v1865
        %v1964 = vunpack.c.l.b16 %v1866
        %v1965 = vunpack.c.l.b16 %v1867
        %v1966 = vunpack.c.l.b16 %v1868
        %v1967 = vunpack.c.l.b16 %v1869
        %v1968 = vunpack.c.l.b16 %v1870
        %v1969 = vunpack.c.l.b16 %v1871
        %v1970 = vunpack.c.l.b16 %v1872
        %v1971 = vunpack.c.l.b16 %v1873
        %v1972 = vunpack.c.l.b16 %v1874
        %v1973 = vunpack.c.l.b16 %v1875
        %v1974 = vunpack.c.l.b16 %v1876
        %v1975 = vpack.c.b16 %v1927, %v1926
        %v1976 = vpack.c.b16 %v1929, %v1928
        %v1977 = vpack.c.b16 %v1931, %v1930
        %v1978 = vpack.c.b16 %v1933, %v1932
        %v1979 = vpack.c.b16 %v1935, %v1934
        %v1980 = vpack.c.b16 %v1937, %v1936
        %v1981 = vpack.c.b16 %v1939, %v1938
        %v1982 = vpack.c.b16 %v1941, %v1940
        %v1983 = vpack.c.b16 %v1943, %v1942
        %v1984 = vpack.c.b16 %v1945, %v1944
        %v1985 = vpack.c.b16 %v1947, %v1946
        %v1986 = vpack.c.b16 %v1949, %v1948
        %v1987 = vpack.c.b16 %v1951, %v1950
        %v1988 = vpack.c.b16 %v1953, %v1952
        %v1989 = vpack.c.b16 %v1955, %v1954
        %v1990 = vpack.c.b16 %v1957, %v1956
        %v1991 = vpack.c.b16 %v1959, %v1958
        %v1992 = vpack.c.b16 %v1961, %v1960
        %v1993 = vpack.c.b16 %v1963, %v1962
        %v1994 = vpack.c.b16 %v1965, %v1964
        %v1995 = vpack.c.b16 %v1967, %v1966
        %v1996 = vpack.c.b16 %v1969, %v1968
        %v1997 = vpack.c.b16 %v1971, %v1970
        %v1998 = vpack.c.b16 %v1973, %v1972
        %v1999 = vpack.c.b16 %v1974, %v1974
        %vm2000 = vsmask.f32 7424
        %v2002 = vshrl.u32 %v1975, 16
        %v2004 = vshll.u32 %v1975, 16
        %v2006 = vrot.slane %v2004, 1
        %v2007 = vor.u32 %v2002, %v2006
        %v2009 = vshll.u32 %v1976, 16
        %v2011 = vrot.slane %v2009, 1
        %v2012 = vsel %vm2000, %v2007, %v2011
        %v2013 = vshrl.u32 %v1976, 16
        %v2015 = vor.u32 %v2013, %v2011
        %v2017 = vshll.u32 %v1977, 16
        %v2019 = vrot.slane %v2017, 1
        %v2020 = vsel %vm2000, %v2015, %v2019
        %v2021 = vshrl.u32 %v1977, 16
        %v2023 = vor.u32 %v2021, %v2019
        %v2025 = vshll.u32 %v1978, 16
        %v2027 = vrot.slane %v2025, 1
        %v2028 = vsel %vm2000, %v2023, %v2027
        %v2029 = vshrl.u32 %v1978, 16
        %v2031 = vor.u32 %v2029, %v2027
        %v2033 = vshll.u32 %v1979, 16
        %v2035 = vrot.slane %v2033, 1
        %v2036 = vsel %vm2000, %v2031, %v2035
        %v2037 = vshrl.u32 %v1979, 16
        %v2039 = vor.u32 %v2037, %v2035
        %v2041 = vshll.u32 %v1980, 16
        %v2043 = vrot.slane %v2041, 1
        %v2044 = vsel %vm2000, %v2039, %v2043
        %v2045 = vshrl.u32 %v1980, 16
        %v2047 = vor.u32 %v2045, %v2043
        %v2049 = vshll.u32 %v1981, 16
        %v2051 = vrot.slane %v2049, 1
        %v2052 = vsel %vm2000, %v2047, %v2051
        %v2053 = vshrl.u32 %v1981, 16
        %v2055 = vor.u32 %v2053, %v2051
        %v2057 = vshll.u32 %v1982, 16
        %v2059 = vrot.slane %v2057, 1
        %v2060 = vsel %vm2000, %v2055, %v2059
        %v2061 = vshrl.u32 %v1982, 16
        %v2063 = vor.u32 %v2061, %v2059
        %v2065 = vshll.u32 %v1983, 16
        %v2067 = vrot.slane %v2065, 1
        %v2068 = vsel %vm2000, %v2063, %v2067
        %v2069 = vshrl.u32 %v1983, 16
        %v2071 = vor.u32 %v2069, %v2067
        %v2073 = vshll.u32 %v1984, 16
        %v2075 = vrot.slane %v2073, 1
        %v2076 = vsel %vm2000, %v2071, %v2075
        %v2077 = vshrl.u32 %v1984, 16
        %v2079 = vor.u32 %v2077, %v2075
        %v2081 = vshll.u32 %v1985, 16
        %v2083 = vrot.slane %v2081, 1
        %v2084 = vsel %vm2000, %v2079, %v2083
        %v2085 = vshrl.u32 %v1985, 16
        %v2087 = vor.u32 %v2085, %v2083
        %v2089 = vshll.u32 %v1986, 16
        %v2091 = vrot.slane %v2089, 1
        %v2092 = vsel %vm2000, %v2087, %v2091
        %v2093 = vshrl.u32 %v1986, 16
        %v2095 = vor.u32 %v2093, %v2091
        %v2097 = vshll.u32 %v1987, 16
        %v2099 = vrot.slane %v2097, 1
        %v2100 = vsel %vm2000, %v2095, %v2099
        %v2101 = vshrl.u32 %v1987, 16
        %v2103 = vor.u32 %v2101, %v2099
        %v2105 = vshll.u32 %v1988, 16
        %v2107 = vrot.slane %v2105, 1
        %v2108 = vsel %vm2000, %v2103, %v2107
        %v2109 = vshrl.u32 %v1988, 16
        %v2111 = vor.u32 %v2109, %v2107
        %v2113 = vshll.u32 %v1989, 16
        %v2115 = vrot.slane %v2113, 1
        %v2116 = vsel %vm2000, %v2111, %v2115
        %v2117 = vshrl.u32 %v1989, 16
        %v2119 = vor.u32 %v2117, %v2115
        %v2121 = vshll.u32 %v1990, 16
        %v2123 = vrot.slane %v2121, 1
        %v2124 = vsel %vm2000, %v2119, %v2123
        %v2125 = vshrl.u32 %v1990, 16
        %v2127 = vor.u32 %v2125, %v2123
        %v2129 = vshll.u32 %v1991, 16
        %v2131 = vrot.slane %v2129, 1
        %v2132 = vsel %vm2000, %v2127, %v2131
        %v2133 = vshrl.u32 %v1991, 16
        %v2135 = vor.u32 %v2133, %v2131
        %v2137 = vshll.u32 %v1992, 16
        %v2139 = vrot.slane %v2137, 1
        %v2140 = vsel %vm2000, %v2135, %v2139
        %v2141 = vshrl.u32 %v1992, 16
        %v2143 = vor.u32 %v2141, %v2139
        %v2145 = vshll.u32 %v1993, 16
        %v2147 = vrot.slane %v2145, 1
        %v2148 = vsel %vm2000, %v2143, %v2147
        %v2149 = vshrl.u32 %v1993, 16
        %v2151 = vor.u32 %v2149, %v2147
        %v2153 = vshll.u32 %v1994, 16
        %v2155 = vrot.slane %v2153, 1
        %v2156 = vsel %vm2000, %v2151, %v2155
        %v2157 = vshrl.u32 %v1994, 16
        %v2159 = vor.u32 %v2157, %v2155
        %v2161 = vshll.u32 %v1995, 16
        %v2163 = vrot.slane %v2161, 1
        %v2164 = vsel %vm2000, %v2159, %v2163
        %v2165 = vshrl.u32 %v1995, 16
        %v2167 = vor.u32 %v2165, %v2163
        %v2169 = vshll.u32 %v1996, 16
        %v2171 = vrot.slane %v2169, 1
        %v2172 = vsel %vm2000, %v2167, %v2171
        %v2173 = vshrl.u32 %v1996, 16
        %v2175 = vor.u32 %v2173, %v2171
        %v2177 = vshll.u32 %v1997, 16
        %v2179 = vrot.slane %v2177, 1
        %v2180 = vsel %vm2000, %v2175, %v2179
        %v2181 = vshrl.u32 %v1997, 16
        %v2183 = vor.u32 %v2181, %v2179
        %v2185 = vshll.u32 %v1998, 16
        %v2187 = vrot.slane %v2185, 1
        %v2188 = vsel %vm2000, %v2183, %v2187
        %v2189 = vshrl.u32 %v1998, 16
        %v2191 = vor.u32 %v2189, %v2187
        %v2193 = vshll.u32 %v1999, 16
        %v2195 = vrot.slane %v2193, 1
        %v2196 = vsel %vm2000, %v2191, %v2195
        %2197 = vrot.lane.b32.xlu0 %v2012, 32
        %v2198 = vpop.permute.xlu0 %2197
        %2199 = vrot.lane.b32.xlu0 %v2020, 32
        %v2200 = vpop.permute.xlu0 %2199
        %2201 = vrot.lane.b32.xlu0 %v2028, 32
        %v2202 = vpop.permute.xlu0 %2201
        %2203 = vrot.lane.b32.xlu0 %v2036, 32
        %v2204 = vpop.permute.xlu0 %2203
        %2205 = vrot.lane.b32.xlu0 %v2044, 32
        %v2206 = vpop.permute.xlu0 %2205
        %2207 = vrot.lane.b32.xlu0 %v2052, 32
        %v2208 = vpop.permute.xlu0 %2207
        %2209 = vrot.lane.b32.xlu0 %v2060, 32
        %v2210 = vpop.permute.xlu0 %2209
        %2211 = vrot.lane.b32.xlu0 %v2068, 32
        %v2212 = vpop.permute.xlu0 %2211
        %2213 = vrot.lane.b32.xlu0 %v2076, 32
        %v2214 = vpop.permute.xlu0 %2213
        %2215 = vrot.lane.b32.xlu0 %v2084, 32
        %v2216 = vpop.permute.xlu0 %2215
        %2217 = vrot.lane.b32.xlu0 %v2092, 32
        %v2218 = vpop.permute.xlu0 %2217
        %2219 = vrot.lane.b32.xlu0 %v2100, 32
        %v2220 = vpop.permute.xlu0 %2219
        %2221 = vrot.lane.b32.xlu0 %v2108, 32
        %v2222 = vpop.permute.xlu0 %2221
        %2223 = vrot.lane.b32.xlu0 %v2116, 32
        %v2224 = vpop.permute.xlu0 %2223
        %2225 = vrot.lane.b32.xlu0 %v2124, 32
        %v2226 = vpop.permute.xlu0 %2225
        %2227 = vrot.lane.b32.xlu0 %v2132, 32
        %v2228 = vpop.permute.xlu0 %2227
        %2229 = vrot.lane.b32.xlu0 %v2140, 32
        %v2230 = vpop.permute.xlu0 %2229
        %2231 = vrot.lane.b32.xlu0 %v2148, 32
        %v2232 = vpop.permute.xlu0 %2231
        %2233 = vrot.lane.b32.xlu0 %v2156, 32
        %v2234 = vpop.permute.xlu0 %2233
        %2235 = vrot.lane.b32.xlu0 %v2164, 32
        %v2236 = vpop.permute.xlu0 %2235
        %2237 = vrot.lane.b32.xlu0 %v2172, 32
        %v2238 = vpop.permute.xlu0 %2237
        %2239 = vrot.lane.b32.xlu0 %v2180, 32
        %v2240 = vpop.permute.xlu0 %2239
        %2241 = vrot.lane.b32.xlu0 %v2188, 32
        %v2242 = vpop.permute.xlu0 %2241
        %2243 = vrot.lane.b32.xlu0 %v2196, 32
        %v2244 = vpop.permute.xlu0 %2243
        %vm2269 = vcmask 523520
        %2270 = vst.msk [vmem:[#allocation3] sm:$0xff] %vm2269, %v2198
        %2271 = vst.msk [vmem:[#allocation3 + $0x18] sm:$0xff] %vm2269, %v2200
        %2272 = vst.msk [vmem:[#allocation3 + $0x30] sm:$0xff] %vm2269, %v2202
        %2273 = vst.msk [vmem:[#allocation3 + $0x48] sm:$0xff] %vm2269, %v2204
        %2274 = vst.msk [vmem:[#allocation3 + $0x60] sm:$0xff] %vm2269, %v2206
        %2275 = vst.msk [vmem:[#allocation3 + $0x78] sm:$0xff] %vm2269, %v2208
        %2276 = vst.msk [vmem:[#allocation3 + $0x90] sm:$0xff] %vm2269, %v2210
        %2277 = vst.msk [vmem:[#allocation3 + $0xa8] sm:$0xff] %vm2269, %v2212
        %2278 = vst.msk [vmem:[#allocation3 + $0xc0] sm:$0xff] %vm2269, %v2214
        %2279 = vst.msk [vmem:[#allocation3 + $0xd8] sm:$0xff] %vm2269, %v2216
        %2280 = vst.msk [vmem:[#allocation3 + $0xf0] sm:$0xff] %vm2269, %v2218
        %2281 = vst.msk [vmem:[#allocation3 + $0x108] sm:$0xff] %vm2269, %v2220
        %2282 = vst.msk [vmem:[#allocation3 + $0x120] sm:$0xff] %vm2269, %v2222
        %2283 = vst.msk [vmem:[#allocation3 + $0x138] sm:$0xff] %vm2269, %v2224
        %2284 = vst.msk [vmem:[#allocation3 + $0x150] sm:$0xff] %vm2269, %v2226
        %2285 = vst.msk [vmem:[#allocation3 + $0x168] sm:$0xff] %vm2269, %v2228
        %2286 = vst.msk [vmem:[#allocation3 + $0x180] sm:$0xff] %vm2269, %v2230
        %2287 = vst.msk [vmem:[#allocation3 + $0x198] sm:$0xff] %vm2269, %v2232
        %2288 = vst.msk [vmem:[#allocation3 + $0x1b0] sm:$0xff] %vm2269, %v2234
        %2289 = vst.msk [vmem:[#allocation3 + $0x1c8] sm:$0xff] %vm2269, %v2236
        %2290 = vst.msk [vmem:[#allocation3 + $0x1e0] sm:$0xff] %vm2269, %v2238
        %2291 = vst.msk [vmem:[#allocation3 + $0x1f8] sm:$0xff] %vm2269, %v2240
        %2292 = vst.msk [vmem:[#allocation3 + $0x210] sm:$0xff] %vm2269, %v2242
        %2293 = vst.msk [vmem:[#allocation3 + $0x228] sm:$0xff] %vm2269, %v2244
        %v2294 = vld [vmem:[#allocation2] sm:$0xe]
        %v2295 = vld [vmem:[#allocation2 + $0x4] sm:$0xf]
        %v2296 = vld [vmem:[#allocation2 + $0x8] sm:$0xf]
        %v2297 = vld [vmem:[#allocation2 + $0xc] sm:$0xf]
        %v2298 = vld [vmem:[#allocation2 + $0x10] sm:$0xf]
        %v2299 = vld [vmem:[#allocation2 + $0x14] sm:$0xf]
        %v2300 = vld [vmem:[#allocation2 + $0x18] sm:$0xf]
        %v2301 = vld [vmem:[#allocation2 + $0x1c] sm:$0xf]
        %v2302 = vld [vmem:[#allocation2 + $0x20] sm:$0xf]
        %v2303 = vld [vmem:[#allocation2 + $0x24] sm:$0xf]
        %v2304 = vld [vmem:[#allocation2 + $0x28] sm:$0xf]
        %v2305 = vld [vmem:[#allocation2 + $0x2c] sm:$0xf]
        %v2306 = vld [vmem:[#allocation2 + $0x30] sm:$0xf]
        %v2307 = vld [vmem:[#allocation2 + $0x34] sm:$0xf]
        %v2308 = vld [vmem:[#allocation2 + $0x38] sm:$0xf]
        %v2309 = vld [vmem:[#allocation2 + $0x3c] sm:$0xf]
        %v2310 = vld [vmem:[#allocation2 + $0x40] sm:$0xf]
        %v2311 = vld [vmem:[#allocation2 + $0x44] sm:$0xf]
        %v2312 = vld [vmem:[#allocation2 + $0x48] sm:$0xf]
        %v2313 = vld [vmem:[#allocation2 + $0x4c] sm:$0xf]
        %v2314 = vld [vmem:[#allocation2 + $0x50] sm:$0xf]
        %v2315 = vld [vmem:[#allocation2 + $0x54] sm:$0xf]
        %v2316 = vld [vmem:[#allocation2 + $0x58] sm:$0xf]
        %v2317 = vld [vmem:[#allocation2 + $0x5c] sm:$0xf]
        %v2318 = vld [vmem:[#allocation2 + $0x60] sm:$0xf]
        %v2319 = vld [vmem:[#allocation2 + $0x64] sm:$0xf]
        %v2320 = vld [vmem:[#allocation2 + $0x68] sm:$0xf]
        %v2321 = vld [vmem:[#allocation2 + $0x6c] sm:$0xf]
        %v2322 = vld [vmem:[#allocation2 + $0x70] sm:$0xf]
        %v2323 = vld [vmem:[#allocation2 + $0x74] sm:$0xf]
        %v2324 = vld [vmem:[#allocation2 + $0x78] sm:$0xf]
        %v2325 = vld [vmem:[#allocation2 + $0x7c] sm:$0xf]
        %v2326 = vld [vmem:[#allocation2 + $0x80] sm:$0xf]
        %v2327 = vld [vmem:[#allocation2 + $0x84] sm:$0xf]
        %v2328 = vld [vmem:[#allocation2 + $0x88] sm:$0xf]
        %v2329 = vld [vmem:[#allocation2 + $0x8c] sm:$0xf]
        %v2330 = vld [vmem:[#allocation2 + $0x90] sm:$0xf]
        %v2331 = vld [vmem:[#allocation2 + $0x94] sm:$0xf]
        %v2332 = vld [vmem:[#allocation2 + $0x98] sm:$0xf]
        %v2333 = vld [vmem:[#allocation2 + $0x9c] sm:$0xf]
        %v2334 = vld [vmem:[#allocation2 + $0xa0] sm:$0xf]
        %v2335 = vld [vmem:[#allocation2 + $0xa4] sm:$0xf]
        %v2336 = vld [vmem:[#allocation2 + $0xa8] sm:$0xf]
        %v2337 = vld [vmem:[#allocation2 + $0xac] sm:$0xf]
        %v2338 = vld [vmem:[#allocation2 + $0xb0] sm:$0xf]
        %v2339 = vld [vmem:[#allocation2 + $0xb4] sm:$0xf]
        %v2340 = vld [vmem:[#allocation2 + $0xb8] sm:$0xf]
        %v2341 = vld [vmem:[#allocation2 + $0xbc] sm:$0xf]
        %v2342 = vld [vmem:[#allocation2 + $0xc0] sm:$0x1]
        %v2392 = vunpack.c.l.b16 %v2294
        %v2393 = vunpack.c.l.b16 %v2295
        %v2394 = vunpack.c.l.b16 %v2296
        %v2395 = vunpack.c.l.b16 %v2297
        %v2396 = vunpack.c.l.b16 %v2298
        %v2397 = vunpack.c.l.b16 %v2299
        %v2398 = vunpack.c.l.b16 %v2300
        %v2399 = vunpack.c.l.b16 %v2301
        %v2400 = vunpack.c.l.b16 %v2302
        %v2401 = vunpack.c.l.b16 %v2303
        %v2402 = vunpack.c.l.b16 %v2304
        %v2403 = vunpack.c.l.b16 %v2305
        %v2404 = vunpack.c.l.b16 %v2306
        %v2405 = vunpack.c.l.b16 %v2307
        %v2406 = vunpack.c.l.b16 %v2308
        %v2407 = vunpack.c.l.b16 %v2309
        %v2408 = vunpack.c.l.b16 %v2310
        %v2409 = vunpack.c.l.b16 %v2311
        %v2410 = vunpack.c.l.b16 %v2312
        %v2411 = vunpack.c.l.b16 %v2313
        %v2412 = vunpack.c.l.b16 %v2314
        %v2413 = vunpack.c.l.b16 %v2315
        %v2414 = vunpack.c.l.b16 %v2316
        %v2415 = vunpack.c.l.b16 %v2317
        %v2416 = vunpack.c.l.b16 %v2318
        %v2417 = vunpack.c.l.b16 %v2319
        %v2418 = vunpack.c.l.b16 %v2320
        %v2419 = vunpack.c.l.b16 %v2321
        %v2420 = vunpack.c.l.b16 %v2322
        %v2421 = vunpack.c.l.b16 %v2323
        %v2422 = vunpack.c.l.b16 %v2324
        %v2423 = vunpack.c.l.b16 %v2325
        %v2424 = vunpack.c.l.b16 %v2326
        %v2425 = vunpack.c.l.b16 %v2327
        %v2426 = vunpack.c.l.b16 %v2328
        %v2427 = vunpack.c.l.b16 %v2329
        %v2428 = vunpack.c.l.b16 %v2330
        %v2429 = vunpack.c.l.b16 %v2331
        %v2430 = vunpack.c.l.b16 %v2332
        %v2431 = vunpack.c.l.b16 %v2333
        %v2432 = vunpack.c.l.b16 %v2334
        %v2433 = vunpack.c.l.b16 %v2335
        %v2434 = vunpack.c.l.b16 %v2336
        %v2435 = vunpack.c.l.b16 %v2337
        %v2436 = vunpack.c.l.b16 %v2338
        %v2437 = vunpack.c.l.b16 %v2339
        %v2438 = vunpack.c.l.b16 %v2340
        %v2439 = vunpack.c.l.b16 %v2341
        %v2440 = vunpack.c.l.b16 %v2342
        %v2441 = vpack.c.b16 %v2393, %v2392
        %v2442 = vpack.c.b16 %v2395, %v2394
        %v2443 = vpack.c.b16 %v2397, %v2396
        %v2444 = vpack.c.b16 %v2399, %v2398
        %v2445 = vpack.c.b16 %v2401, %v2400
        %v2446 = vpack.c.b16 %v2403, %v2402
        %v2447 = vpack.c.b16 %v2405, %v2404
        %v2448 = vpack.c.b16 %v2407, %v2406
        %v2449 = vpack.c.b16 %v2409, %v2408
        %v2450 = vpack.c.b16 %v2411, %v2410
        %v2451 = vpack.c.b16 %v2413, %v2412
        %v2452 = vpack.c.b16 %v2415, %v2414
        %v2453 = vpack.c.b16 %v2417, %v2416
        %v2454 = vpack.c.b16 %v2419, %v2418
        %v2455 = vpack.c.b16 %v2421, %v2420
        %v2456 = vpack.c.b16 %v2423, %v2422
        %v2457 = vpack.c.b16 %v2425, %v2424
        %v2458 = vpack.c.b16 %v2427, %v2426
        %v2459 = vpack.c.b16 %v2429, %v2428
        %v2460 = vpack.c.b16 %v2431, %v2430
        %v2461 = vpack.c.b16 %v2433, %v2432
        %v2462 = vpack.c.b16 %v2435, %v2434
        %v2463 = vpack.c.b16 %v2437, %v2436
        %v2464 = vpack.c.b16 %v2439, %v2438
        %v2465 = vpack.c.b16 %v2440, %v2440
        %vm2466 = vcmask 1046528
        %v2467 = vrot.slane %v2441, 1
        %v2468 = vrot.slane %v2442, 1
        %v2469 = vsel %vm2466, %v2467, %v2468
        %v2470 = vrot.slane %v2443, 1
        %v2471 = vsel %vm2466, %v2468, %v2470
        %v2472 = vrot.slane %v2444, 1
        %v2473 = vsel %vm2466, %v2470, %v2472
        %v2474 = vrot.slane %v2445, 1
        %v2475 = vsel %vm2466, %v2472, %v2474
        %v2476 = vrot.slane %v2446, 1
        %v2477 = vsel %vm2466, %v2474, %v2476
        %v2478 = vrot.slane %v2447, 1
        %v2479 = vsel %vm2466, %v2476, %v2478
        %v2480 = vrot.slane %v2448, 1
        %v2481 = vsel %vm2466, %v2478, %v2480
        %v2482 = vrot.slane %v2449, 1
        %v2483 = vsel %vm2466, %v2480, %v2482
        %v2484 = vrot.slane %v2450, 1
        %v2485 = vsel %vm2466, %v2482, %v2484
        %v2486 = vrot.slane %v2451, 1
        %v2487 = vsel %vm2466, %v2484, %v2486
        %v2488 = vrot.slane %v2452, 1
        %v2489 = vsel %vm2466, %v2486, %v2488
        %v2490 = vrot.slane %v2453, 1
        %v2491 = vsel %vm2466, %v2488, %v2490
        %v2492 = vrot.slane %v2454, 1
        %v2493 = vsel %vm2466, %v2490, %v2492
        %v2494 = vrot.slane %v2455, 1
        %v2495 = vsel %vm2466, %v2492, %v2494
        %v2496 = vrot.slane %v2456, 1
        %v2497 = vsel %vm2466, %v2494, %v2496
        %v2498 = vrot.slane %v2457, 1
        %v2499 = vsel %vm2466, %v2496, %v2498
        %v2500 = vrot.slane %v2458, 1
        %v2501 = vsel %vm2466, %v2498, %v2500
        %v2502 = vrot.slane %v2459, 1
        %v2503 = vsel %vm2466, %v2500, %v2502
        %v2504 = vrot.slane %v2460, 1
        %v2505 = vsel %vm2466, %v2502, %v2504
        %v2506 = vrot.slane %v2461, 1
        %v2507 = vsel %vm2466, %v2504, %v2506
        %v2508 = vrot.slane %v2462, 1
        %v2509 = vsel %vm2466, %v2506, %v2508
        %v2510 = vrot.slane %v2463, 1
        %v2511 = vsel %vm2466, %v2508, %v2510
        %v2512 = vrot.slane %v2464, 1
        %v2513 = vsel %vm2466, %v2510, %v2512
        %v2514 = vrot.slane %v2465, 1
        %v2515 = vsel %vm2466, %v2512, %v2514
        %2516 = vrot.lane.b32.xlu0 %v2469, 64
        %v2517 = vpop.permute.xlu0 %2516
        %2518 = vrot.lane.b32.xlu0 %v2471, 64
        %v2519 = vpop.permute.xlu0 %2518
        %2520 = vrot.lane.b32.xlu0 %v2473, 64
        %v2521 = vpop.permute.xlu0 %2520
        %2522 = vrot.lane.b32.xlu0 %v2475, 64
        %v2523 = vpop.permute.xlu0 %2522
        %2524 = vrot.lane.b32.xlu0 %v2477, 64
        %v2525 = vpop.permute.xlu0 %2524
        %2526 = vrot.lane.b32.xlu0 %v2479, 64
        %v2527 = vpop.permute.xlu0 %2526
        %2528 = vrot.lane.b32.xlu0 %v2481, 64
        %v2529 = vpop.permute.xlu0 %2528
        %2530 = vrot.lane.b32.xlu0 %v2483, 64
        %v2531 = vpop.permute.xlu0 %2530
        %2532 = vrot.lane.b32.xlu0 %v2485, 64
        %v2533 = vpop.permute.xlu0 %2532
        %2534 = vrot.lane.b32.xlu0 %v2487, 64
        %v2535 = vpop.permute.xlu0 %2534
        %2536 = vrot.lane.b32.xlu0 %v2489, 64
        %v2537 = vpop.permute.xlu0 %2536
        %2538 = vrot.lane.b32.xlu0 %v2491, 64
        %v2539 = vpop.permute.xlu0 %2538
        %2540 = vrot.lane.b32.xlu0 %v2493, 64
        %v2541 = vpop.permute.xlu0 %2540
        %2542 = vrot.lane.b32.xlu0 %v2495, 64
        %v2543 = vpop.permute.xlu0 %2542
        %2544 = vrot.lane.b32.xlu0 %v2497, 64
        %v2545 = vpop.permute.xlu0 %2544
        %2546 = vrot.lane.b32.xlu0 %v2499, 64
        %v2547 = vpop.permute.xlu0 %2546
        %2548 = vrot.lane.b32.xlu0 %v2501, 64
        %v2549 = vpop.permute.xlu0 %2548
        %2550 = vrot.lane.b32.xlu0 %v2503, 64
        %v2551 = vpop.permute.xlu0 %2550
        %2552 = vrot.lane.b32.xlu0 %v2505, 64
        %v2553 = vpop.permute.xlu0 %2552
        %2554 = vrot.lane.b32.xlu0 %v2507, 64
        %v2555 = vpop.permute.xlu0 %2554
        %2556 = vrot.lane.b32.xlu0 %v2509, 64
        %v2557 = vpop.permute.xlu0 %2556
        %2558 = vrot.lane.b32.xlu0 %v2511, 64
        %v2559 = vpop.permute.xlu0 %2558
        %2560 = vrot.lane.b32.xlu0 %v2513, 64
        %v2561 = vpop.permute.xlu0 %2560
        %2562 = vrot.lane.b32.xlu0 %v2515, 64
        %v2563 = vpop.permute.xlu0 %2562
        %vm2588 = vcmask 785920
        %2589 = vst.msk [vmem:[#allocation3] sm:$0xff] %vm2588, %v2517
        %2590 = vst.msk [vmem:[#allocation3 + $0x18] sm:$0xff] %vm2588, %v2519
        %2591 = vst.msk [vmem:[#allocation3 + $0x30] sm:$0xff] %vm2588, %v2521
        %2592 = vst.msk [vmem:[#allocation3 + $0x48] sm:$0xff] %vm2588, %v2523
        %2593 = vst.msk [vmem:[#allocation3 + $0x60] sm:$0xff] %vm2588, %v2525
        %2594 = vst.msk [vmem:[#allocation3 + $0x78] sm:$0xff] %vm2588, %v2527
        %2595 = vst.msk [vmem:[#allocation3 + $0x90] sm:$0xff] %vm2588, %v2529
        %2596 = vst.msk [vmem:[#allocation3 + $0xa8] sm:$0xff] %vm2588, %v2531
        %2597 = vst.msk [vmem:[#allocation3 + $0xc0] sm:$0xff] %vm2588, %v2533
        %2598 = vst.msk [vmem:[#allocation3 + $0xd8] sm:$0xff] %vm2588, %v2535
        %2599 = vst.msk [vmem:[#allocation3 + $0xf0] sm:$0xff] %vm2588, %v2537
        %2600 = vst.msk [vmem:[#allocation3 + $0x108] sm:$0xff] %vm2588, %v2539
        %2601 = vst.msk [vmem:[#allocation3 + $0x120] sm:$0xff] %vm2588, %v2541
        %2602 = vst.msk [vmem:[#allocation3 + $0x138] sm:$0xff] %vm2588, %v2543
        %2603 = vst.msk [vmem:[#allocation3 + $0x150] sm:$0xff] %vm2588, %v2545
        %2604 = vst.msk [vmem:[#allocation3 + $0x168] sm:$0xff] %vm2588, %v2547
        %2605 = vst.msk [vmem:[#allocation3 + $0x180] sm:$0xff] %vm2588, %v2549
        %2606 = vst.msk [vmem:[#allocation3 + $0x198] sm:$0xff] %vm2588, %v2551
        %2607 = vst.msk [vmem:[#allocation3 + $0x1b0] sm:$0xff] %vm2588, %v2553
        %2608 = vst.msk [vmem:[#allocation3 + $0x1c8] sm:$0xff] %vm2588, %v2555
        %2609 = vst.msk [vmem:[#allocation3 + $0x1e0] sm:$0xff] %vm2588, %v2557
        %2610 = vst.msk [vmem:[#allocation3 + $0x1f8] sm:$0xff] %vm2588, %v2559
        %2611 = vst.msk [vmem:[#allocation3 + $0x210] sm:$0xff] %vm2588, %v2561
        %2612 = vst.msk [vmem:[#allocation3 + $0x228] sm:$0xff] %vm2588, %v2563
        %v2613 = vld [vmem:[#allocation2 + $0xc] sm:$0xf]
        %v2614 = vld [vmem:[#allocation2 + $0x10] sm:$0xf]
        %v2615 = vld [vmem:[#allocation2 + $0x14] sm:$0xf]
        %v2616 = vld [vmem:[#allocation2 + $0x18] sm:$0xf]
        %v2617 = vld [vmem:[#allocation2 + $0x1c] sm:$0xf]
        %v2618 = vld [vmem:[#allocation2 + $0x20] sm:$0xf]
        %v2619 = vld [vmem:[#allocation2 + $0x24] sm:$0xf]
        %v2620 = vld [vmem:[#allocation2 + $0x28] sm:$0xf]
        %v2621 = vld [vmem:[#allocation2 + $0x2c] sm:$0xf]
        %v2622 = vld [vmem:[#allocation2 + $0x30] sm:$0xf]
        %v2623 = vld [vmem:[#allocation2 + $0x34] sm:$0xf]
        %v2624 = vld [vmem:[#allocation2 + $0x38] sm:$0xf]
        %v2625 = vld [vmem:[#allocation2 + $0x3c] sm:$0xf]
        %v2626 = vld [vmem:[#allocation2 + $0x40] sm:$0xf]
        %v2627 = vld [vmem:[#allocation2 + $0x44] sm:$0xf]
        %v2628 = vld [vmem:[#allocation2 + $0x48] sm:$0xf]
        %v2629 = vld [vmem:[#allocation2 + $0x4c] sm:$0xf]
        %v2630 = vld [vmem:[#allocation2 + $0x50] sm:$0xf]
        %v2631 = vld [vmem:[#allocation2 + $0x54] sm:$0xf]
        %v2632 = vld [vmem:[#allocation2 + $0x58] sm:$0xf]
        %v2633 = vld [vmem:[#allocation2 + $0x5c] sm:$0xf]
        %v2634 = vld [vmem:[#allocation2 + $0x60] sm:$0xf]
        %v2635 = vld [vmem:[#allocation2 + $0x64] sm:$0xf]
        %v2636 = vld [vmem:[#allocation2 + $0x68] sm:$0xf]
        %v2637 = vld [vmem:[#allocation2 + $0x6c] sm:$0xf]
        %v2638 = vld [vmem:[#allocation2 + $0x70] sm:$0xf]
        %v2639 = vld [vmem:[#allocation2 + $0x74] sm:$0xf]
        %v2640 = vld [vmem:[#allocation2 + $0x78] sm:$0xf]
        %v2641 = vld [vmem:[#allocation2 + $0x7c] sm:$0xf]
        %v2642 = vld [vmem:[#allocation2 + $0x80] sm:$0xf]
        %v2643 = vld [vmem:[#allocation2 + $0x84] sm:$0xf]
        %v2644 = vld [vmem:[#allocation2 + $0x88] sm:$0xf]
        %v2645 = vld [vmem:[#allocation2 + $0x8c] sm:$0xf]
        %v2646 = vld [vmem:[#allocation2 + $0x90] sm:$0xf]
        %v2647 = vld [vmem:[#allocation2 + $0x94] sm:$0xf]
        %v2648 = vld [vmem:[#allocation2 + $0x98] sm:$0xf]
        %v2649 = vld [vmem:[#allocation2 + $0x9c] sm:$0xf]
        %v2650 = vld [vmem:[#allocation2 + $0xa0] sm:$0xf]
        %v2651 = vld [vmem:[#allocation2 + $0xa4] sm:$0xf]
        %v2652 = vld [vmem:[#allocation2 + $0xa8] sm:$0xf]
        %v2653 = vld [vmem:[#allocation2 + $0xac] sm:$0xf]
        %v2654 = vld [vmem:[#allocation2 + $0xb0] sm:$0xf]
        %v2655 = vld [vmem:[#allocation2 + $0xb4] sm:$0xf]
        %v2656 = vld [vmem:[#allocation2 + $0xb8] sm:$0xf]
        %v2657 = vld [vmem:[#allocation2 + $0xbc] sm:$0xf]
        %v2658 = vld [vmem:[#allocation2 + $0xc0] sm:$0xf]
        %v2659 = vld [vmem:[#allocation2 + $0xc4] sm:$0xf]
        %v2660 = vld [vmem:[#allocation2 + $0xc8] sm:$0xf]
        %v2709 = vunpack.c.l.b16 %v2613
        %v2710 = vunpack.c.l.b16 %v2614
        %v2711 = vunpack.c.l.b16 %v2615
        %v2712 = vunpack.c.l.b16 %v2616
        %v2713 = vunpack.c.l.b16 %v2617
        %v2714 = vunpack.c.l.b16 %v2618
        %v2715 = vunpack.c.l.b16 %v2619
        %v2716 = vunpack.c.l.b16 %v2620
        %v2717 = vunpack.c.l.b16 %v2621
        %v2718 = vunpack.c.l.b16 %v2622
        %v2719 = vunpack.c.l.b16 %v2623
        %v2720 = vunpack.c.l.b16 %v2624
        %v2721 = vunpack.c.l.b16 %v2625
        %v2722 = vunpack.c.l.b16 %v2626
        %v2723 = vunpack.c.l.b16 %v2627
        %v2724 = vunpack.c.l.b16 %v2628
        %v2725 = vunpack.c.l.b16 %v2629
        %v2726 = vunpack.c.l.b16 %v2630
        %v2727 = vunpack.c.l.b16 %v2631
        %v2728 = vunpack.c.l.b16 %v2632
        %v2729 = vunpack.c.l.b16 %v2633
        %v2730 = vunpack.c.l.b16 %v2634
        %v2731 = vunpack.c.l.b16 %v2635
        %v2732 = vunpack.c.l.b16 %v2636
        %v2733 = vunpack.c.l.b16 %v2637
        %v2734 = vunpack.c.l.b16 %v2638
        %v2735 = vunpack.c.l.b16 %v2639
        %v2736 = vunpack.c.l.b16 %v2640
        %v2737 = vunpack.c.l.b16 %v2641
        %v2738 = vunpack.c.l.b16 %v2642
        %v2739 = vunpack.c.l.b16 %v2643
        %v2740 = vunpack.c.l.b16 %v2644
        %v2741 = vunpack.c.l.b16 %v2645
        %v2742 = vunpack.c.l.b16 %v2646
        %v2743 = vunpack.c.l.b16 %v2647
        %v2744 = vunpack.c.l.b16 %v2648
        %v2745 = vunpack.c.l.b16 %v2649
        %v2746 = vunpack.c.l.b16 %v2650
        %v2747 = vunpack.c.l.b16 %v2651
        %v2748 = vunpack.c.l.b16 %v2652
        %v2749 = vunpack.c.l.b16 %v2653
        %v2750 = vunpack.c.l.b16 %v2654
        %v2751 = vunpack.c.l.b16 %v2655
        %v2752 = vunpack.c.l.b16 %v2656
        %v2753 = vunpack.c.l.b16 %v2657
        %v2754 = vunpack.c.l.b16 %v2658
        %v2755 = vunpack.c.l.b16 %v2659
        %v2756 = vunpack.c.l.b16 %v2660
        %v2757 = vpack.c.b16 %v2710, %v2709
        %v2758 = vpack.c.b16 %v2712, %v2711
        %v2759 = vpack.c.b16 %v2714, %v2713
        %v2760 = vpack.c.b16 %v2716, %v2715
        %v2761 = vpack.c.b16 %v2718, %v2717
        %v2762 = vpack.c.b16 %v2720, %v2719
        %v2763 = vpack.c.b16 %v2722, %v2721
        %v2764 = vpack.c.b16 %v2724, %v2723
        %v2765 = vpack.c.b16 %v2726, %v2725
        %v2766 = vpack.c.b16 %v2728, %v2727
        %v2767 = vpack.c.b16 %v2730, %v2729
        %v2768 = vpack.c.b16 %v2732, %v2731
        %v2769 = vpack.c.b16 %v2734, %v2733
        %v2770 = vpack.c.b16 %v2736, %v2735
        %v2771 = vpack.c.b16 %v2738, %v2737
        %v2772 = vpack.c.b16 %v2740, %v2739
        %v2773 = vpack.c.b16 %v2742, %v2741
        %v2774 = vpack.c.b16 %v2744, %v2743
        %v2775 = vpack.c.b16 %v2746, %v2745
        %v2776 = vpack.c.b16 %v2748, %v2747
        %v2777 = vpack.c.b16 %v2750, %v2749
        %v2778 = vpack.c.b16 %v2752, %v2751
        %v2779 = vpack.c.b16 %v2754, %v2753
        %v2780 = vpack.c.b16 %v2756, %v2755
        %2781 = vrot.lane.b32.xlu0 %v2757, 96
        %v2782 = vpop.permute.xlu0 %2781
        %2783 = vrot.lane.b32.xlu0 %v2758, 96
        %v2784 = vpop.permute.xlu0 %2783
        %2785 = vrot.lane.b32.xlu0 %v2759, 96
        %v2786 = vpop.permute.xlu0 %2785
        %2787 = vrot.lane.b32.xlu0 %v2760, 96
        %v2788 = vpop.permute.xlu0 %2787
        %2789 = vrot.lane.b32.xlu0 %v2761, 96
        %v2790 = vpop.permute.xlu0 %2789
        %2791 = vrot.lane.b32.xlu0 %v2762, 96
        %v2792 = vpop.permute.xlu0 %2791
        %2793 = vrot.lane.b32.xlu0 %v2763, 96
        %v2794 = vpop.permute.xlu0 %2793
        %2795 = vrot.lane.b32.xlu0 %v2764, 96
        %v2796 = vpop.permute.xlu0 %2795
        %2797 = vrot.lane.b32.xlu0 %v2765, 96
        %v2798 = vpop.permute.xlu0 %2797
        %2799 = vrot.lane.b32.xlu0 %v2766, 96
        %v2800 = vpop.permute.xlu0 %2799
        %2801 = vrot.lane.b32.xlu0 %v2767, 96
        %v2802 = vpop.permute.xlu0 %2801
        %2803 = vrot.lane.b32.xlu0 %v2768, 96
        %v2804 = vpop.permute.xlu0 %2803
        %2805 = vrot.lane.b32.xlu0 %v2769, 96
        %v2806 = vpop.permute.xlu0 %2805
        %2807 = vrot.lane.b32.xlu0 %v2770, 96
        %v2808 = vpop.permute.xlu0 %2807
        %2809 = vrot.lane.b32.xlu0 %v2771, 96
        %v2810 = vpop.permute.xlu0 %2809
        %2811 = vrot.lane.b32.xlu0 %v2772, 96
        %v2812 = vpop.permute.xlu0 %2811
        %2813 = vrot.lane.b32.xlu0 %v2773, 96
        %v2814 = vpop.permute.xlu0 %2813
        %2815 = vrot.lane.b32.xlu0 %v2774, 96
        %v2816 = vpop.permute.xlu0 %2815
        %2817 = vrot.lane.b32.xlu0 %v2775, 96
        %v2818 = vpop.permute.xlu0 %2817
        %2819 = vrot.lane.b32.xlu0 %v2776, 96
        %v2820 = vpop.permute.xlu0 %2819
        %2821 = vrot.lane.b32.xlu0 %v2777, 96
        %v2822 = vpop.permute.xlu0 %2821
        %2823 = vrot.lane.b32.xlu0 %v2778, 96
        %v2824 = vpop.permute.xlu0 %2823
        %2825 = vrot.lane.b32.xlu0 %v2779, 96
        %v2826 = vpop.permute.xlu0 %2825
        %2827 = vrot.lane.b32.xlu0 %v2780, 96
        %v2828 = vpop.permute.xlu0 %2827
        %vm2853 = vcmask 1048320
        %2854 = vst.msk [vmem:[#allocation3] sm:$0xff] %vm2853, %v2782
        %2855 = vst.msk [vmem:[#allocation3 + $0x18] sm:$0xff] %vm2853, %v2784
        %2856 = vst.msk [vmem:[#allocation3 + $0x30] sm:$0xff] %vm2853, %v2786
        %2857 = vst.msk [vmem:[#allocation3 + $0x48] sm:$0xff] %vm2853, %v2788
        %2858 = vst.msk [vmem:[#allocation3 + $0x60] sm:$0xff] %vm2853, %v2790
        %2859 = vst.msk [vmem:[#allocation3 + $0x78] sm:$0xff] %vm2853, %v2792
        %2860 = vst.msk [vmem:[#allocation3 + $0x90] sm:$0xff] %vm2853, %v2794
        %2861 = vst.msk [vmem:[#allocation3 + $0xa8] sm:$0xff] %vm2853, %v2796
        %2862 = vst.msk [vmem:[#allocation3 + $0xc0] sm:$0xff] %vm2853, %v2798
        %2863 = vst.msk [vmem:[#allocation3 + $0xd8] sm:$0xff] %vm2853, %v2800
        %2864 = vst.msk [vmem:[#allocation3 + $0xf0] sm:$0xff] %vm2853, %v2802
        %2865 = vst.msk [vmem:[#allocation3 + $0x108] sm:$0xff] %vm2853, %v2804
        %2866 = vst.msk [vmem:[#allocation3 + $0x120] sm:$0xff] %vm2853, %v2806
        %2867 = vst.msk [vmem:[#allocation3 + $0x138] sm:$0xff] %vm2853, %v2808
        %2868 = vst.msk [vmem:[#allocation3 + $0x150] sm:$0xff] %vm2853, %v2810
        %2869 = vst.msk [vmem:[#allocation3 + $0x168] sm:$0xff] %vm2853, %v2812
        %2870 = vst.msk [vmem:[#allocation3 + $0x180] sm:$0xff] %vm2853, %v2814
        %2871 = vst.msk [vmem:[#allocation3 + $0x198] sm:$0xff] %vm2853, %v2816
        %2872 = vst.msk [vmem:[#allocation3 + $0x1b0] sm:$0xff] %vm2853, %v2818
        %2873 = vst.msk [vmem:[#allocation3 + $0x1c8] sm:$0xff] %vm2853, %v2820
        %2874 = vst.msk [vmem:[#allocation3 + $0x1e0] sm:$0xff] %vm2853, %v2822
        %2875 = vst.msk [vmem:[#allocation3 + $0x1f8] sm:$0xff] %vm2853, %v2824
        %2876 = vst.msk [vmem:[#allocation3 + $0x210] sm:$0xff] %vm2853, %v2826
        %2877 = vst.msk [vmem:[#allocation3 + $0x228] sm:$0xff] %vm2853, %v2828
        %v2878 = vld [vmem:[#allocation2 + $0xc] sm:$0xf]
        %v2879 = vld [vmem:[#allocation2 + $0x10] sm:$0xf]
        %v2880 = vld [vmem:[#allocation2 + $0x14] sm:$0xf]
        %v2881 = vld [vmem:[#allocation2 + $0x18] sm:$0xf]
        %v2882 = vld [vmem:[#allocation2 + $0x1c] sm:$0xf]
        %v2883 = vld [vmem:[#allocation2 + $0x20] sm:$0xf]
        %v2884 = vld [vmem:[#allocation2 + $0x24] sm:$0xf]
        %v2885 = vld [vmem:[#allocation2 + $0x28] sm:$0xf]
        %v2886 = vld [vmem:[#allocation2 + $0x2c] sm:$0xf]
        %v2887 = vld [vmem:[#allocation2 + $0x30] sm:$0xf]
        %v2888 = vld [vmem:[#allocation2 + $0x34] sm:$0xf]
        %v2889 = vld [vmem:[#allocation2 + $0x38] sm:$0xf]
        %v2890 = vld [vmem:[#allocation2 + $0x3c] sm:$0xf]
        %v2891 = vld [vmem:[#allocation2 + $0x40] sm:$0xf]
        %v2892 = vld [vmem:[#allocation2 + $0x44] sm:$0xf]
        %v2893 = vld [vmem:[#allocation2 + $0x48] sm:$0xf]
        %v2894 = vld [vmem:[#allocation2 + $0x4c] sm:$0xf]
        %v2895 = vld [vmem:[#allocation2 + $0x50] sm:$0xf]
        %v2896 = vld [vmem:[#allocation2 + $0x54] sm:$0xf]
        %v2897 = vld [vmem:[#allocation2 + $0x58] sm:$0xf]
        %v2898 = vld [vmem:[#allocation2 + $0x5c] sm:$0xf]
        %v2899 = vld [vmem:[#allocation2 + $0x60] sm:$0xf]
        %v2900 = vld [vmem:[#allocation2 + $0x64] sm:$0xf]
        %v2901 = vld [vmem:[#allocation2 + $0x68] sm:$0xf]
        %v2902 = vld [vmem:[#allocation2 + $0x6c] sm:$0xf]
        %v2903 = vld [vmem:[#allocation2 + $0x70] sm:$0xf]
        %v2904 = vld [vmem:[#allocation2 + $0x74] sm:$0xf]
        %v2905 = vld [vmem:[#allocation2 + $0x78] sm:$0xf]
        %v2906 = vld [vmem:[#allocation2 + $0x7c] sm:$0xf]
        %v2907 = vld [vmem:[#allocation2 + $0x80] sm:$0xf]
        %v2908 = vld [vmem:[#allocation2 + $0x84] sm:$0xf]
        %v2909 = vld [vmem:[#allocation2 + $0x88] sm:$0xf]
        %v2910 = vld [vmem:[#allocation2 + $0x8c] sm:$0xf]
        %v2911 = vld [vmem:[#allocation2 + $0x90] sm:$0xf]
        %v2912 = vld [vmem:[#allocation2 + $0x94] sm:$0xf]
        %v2913 = vld [vmem:[#allocation2 + $0x98] sm:$0xf]
        %v2914 = vld [vmem:[#allocation2 + $0x9c] sm:$0xf]
        %v2915 = vld [vmem:[#allocation2 + $0xa0] sm:$0xf]
        %v2916 = vld [vmem:[#allocation2 + $0xa4] sm:$0xf]
        %v2917 = vld [vmem:[#allocation2 + $0xa8] sm:$0xf]
        %v2918 = vld [vmem:[#allocation2 + $0xac] sm:$0xf]
        %v2919 = vld [vmem:[#allocation2 + $0xb0] sm:$0xf]
        %v2920 = vld [vmem:[#allocation2 + $0xb4] sm:$0xf]
        %v2921 = vld [vmem:[#allocation2 + $0xb8] sm:$0xf]
        %v2922 = vld [vmem:[#allocation2 + $0xbc] sm:$0xf]
        %v2923 = vld [vmem:[#allocation2 + $0xc0] sm:$0xf]
        %v2924 = vld [vmem:[#allocation2 + $0xc4] sm:$0xf]
        %v2925 = vld [vmem:[#allocation2 + $0xc8] sm:$0xf]
        %v2926 = vld [vmem:[#allocation2 + $0xcc] sm:$0x1]
        %v2976 = vunpack.c.l.b16 %v2878
        %v2977 = vunpack.c.l.b16 %v2879
        %v2978 = vunpack.c.l.b16 %v2880
        %v2979 = vunpack.c.l.b16 %v2881
        %v2980 = vunpack.c.l.b16 %v2882
        %v2981 = vunpack.c.l.b16 %v2883
        %v2982 = vunpack.c.l.b16 %v2884
        %v2983 = vunpack.c.l.b16 %v2885
        %v2984 = vunpack.c.l.b16 %v2886
        %v2985 = vunpack.c.l.b16 %v2887
        %v2986 = vunpack.c.l.b16 %v2888
        %v2987 = vunpack.c.l.b16 %v2889
        %v2988 = vunpack.c.l.b16 %v2890
        %v2989 = vunpack.c.l.b16 %v2891
        %v2990 = vunpack.c.l.b16 %v2892
        %v2991 = vunpack.c.l.b16 %v2893
        %v2992 = vunpack.c.l.b16 %v2894
        %v2993 = vunpack.c.l.b16 %v2895
        %v2994 = vunpack.c.l.b16 %v2896
        %v2995 = vunpack.c.l.b16 %v2897
        %v2996 = vunpack.c.l.b16 %v2898
        %v2997 = vunpack.c.l.b16 %v2899
        %v2998 = vunpack.c.l.b16 %v2900
        %v2999 = vunpack.c.l.b16 %v2901
        %v3000 = vunpack.c.l.b16 %v2902
        %v3001 = vunpack.c.l.b16 %v2903
        %v3002 = vunpack.c.l.b16 %v2904
        %v3003 = vunpack.c.l.b16 %v2905
        %v3004 = vunpack.c.l.b16 %v2906
        %v3005 = vunpack.c.l.b16 %v2907
        %v3006 = vunpack.c.l.b16 %v2908
        %v3007 = vunpack.c.l.b16 %v2909
        %v3008 = vunpack.c.l.b16 %v2910
        %v3009 = vunpack.c.l.b16 %v2911
        %v3010 = vunpack.c.l.b16 %v2912
        %v3011 = vunpack.c.l.b16 %v2913
        %v3012 = vunpack.c.l.b16 %v2914
        %v3013 = vunpack.c.l.b16 %v2915
        %v3014 = vunpack.c.l.b16 %v2916
        %v3015 = vunpack.c.l.b16 %v2917
        %v3016 = vunpack.c.l.b16 %v2918
        %v3017 = vunpack.c.l.b16 %v2919
        %v3018 = vunpack.c.l.b16 %v2920
        %v3019 = vunpack.c.l.b16 %v2921
        %v3020 = vunpack.c.l.b16 %v2922
        %v3021 = vunpack.c.l.b16 %v2923
        %v3022 = vunpack.c.l.b16 %v2924
        %v3023 = vunpack.c.l.b16 %v2925
        %v3024 = vunpack.c.l.b16 %v2926
        %v3025 = vpack.c.b16 %v2977, %v2976
        %v3026 = vpack.c.b16 %v2979, %v2978
        %v3027 = vpack.c.b16 %v2981, %v2980
        %v3028 = vpack.c.b16 %v2983, %v2982
        %v3029 = vpack.c.b16 %v2985, %v2984
        %v3030 = vpack.c.b16 %v2987, %v2986
        %v3031 = vpack.c.b16 %v2989, %v2988
        %v3032 = vpack.c.b16 %v2991, %v2990
        %v3033 = vpack.c.b16 %v2993, %v2992
        %v3034 = vpack.c.b16 %v2995, %v2994
        %v3035 = vpack.c.b16 %v2997, %v2996
        %v3036 = vpack.c.b16 %v2999, %v2998
        %v3037 = vpack.c.b16 %v3001, %v3000
        %v3038 = vpack.c.b16 %v3003, %v3002
        %v3039 = vpack.c.b16 %v3005, %v3004
        %v3040 = vpack.c.b16 %v3007, %v3006
        %v3041 = vpack.c.b16 %v3009, %v3008
        %v3042 = vpack.c.b16 %v3011, %v3010
        %v3043 = vpack.c.b16 %v3013, %v3012
        %v3044 = vpack.c.b16 %v3015, %v3014
        %v3045 = vpack.c.b16 %v3017, %v3016
        %v3046 = vpack.c.b16 %v3019, %v3018
        %v3047 = vpack.c.b16 %v3021, %v3020
        %v3048 = vpack.c.b16 %v3023, %v3022
        %v3049 = vpack.c.b16 %v3024, %v3024
        %v3051 = vshrl.u32 %v3025, 16
        %v3053 = vshll.u32 %v3025, 16
        %v3055 = vrot.slane %v3053, 1
        %v3056 = vor.u32 %v3051, %v3055
        %v3058 = vshll.u32 %v3026, 16
        %v3060 = vrot.slane %v3058, 1
        %v3061 = vsel %vm2000, %v3056, %v3060
        %v3062 = vshrl.u32 %v3026, 16
        %v3064 = vor.u32 %v3062, %v3060
        %v3066 = vshll.u32 %v3027, 16
        %v3068 = vrot.slane %v3066, 1
        %v3069 = vsel %vm2000, %v3064, %v3068
        %v3070 = vshrl.u32 %v3027, 16
        %v3072 = vor.u32 %v3070, %v3068
        %v3074 = vshll.u32 %v3028, 16
        %v3076 = vrot.slane %v3074, 1
        %v3077 = vsel %vm2000, %v3072, %v3076
        %v3078 = vshrl.u32 %v3028, 16
        %v3080 = vor.u32 %v3078, %v3076
        %v3082 = vshll.u32 %v3029, 16
        %v3084 = vrot.slane %v3082, 1
        %v3085 = vsel %vm2000, %v3080, %v3084
        %v3086 = vshrl.u32 %v3029, 16
        %v3088 = vor.u32 %v3086, %v3084
        %v3090 = vshll.u32 %v3030, 16
        %v3092 = vrot.slane %v3090, 1
        %v3093 = vsel %vm2000, %v3088, %v3092
        %v3094 = vshrl.u32 %v3030, 16
        %v3096 = vor.u32 %v3094, %v3092
        %v3098 = vshll.u32 %v3031, 16
        %v3100 = vrot.slane %v3098, 1
        %v3101 = vsel %vm2000, %v3096, %v3100
        %v3102 = vshrl.u32 %v3031, 16
        %v3104 = vor.u32 %v3102, %v3100
        %v3106 = vshll.u32 %v3032, 16
        %v3108 = vrot.slane %v3106, 1
        %v3109 = vsel %vm2000, %v3104, %v3108
        %v3110 = vshrl.u32 %v3032, 16
        %v3112 = vor.u32 %v3110, %v3108
        %v3114 = vshll.u32 %v3033, 16
        %v3116 = vrot.slane %v3114, 1
        %v3117 = vsel %vm2000, %v3112, %v3116
        %v3118 = vshrl.u32 %v3033, 16
        %v3120 = vor.u32 %v3118, %v3116
        %v3122 = vshll.u32 %v3034, 16
        %v3124 = vrot.slane %v3122, 1
        %v3125 = vsel %vm2000, %v3120, %v3124
        %v3126 = vshrl.u32 %v3034, 16
        %v3128 = vor.u32 %v3126, %v3124
        %v3130 = vshll.u32 %v3035, 16
        %v3132 = vrot.slane %v3130, 1
        %v3133 = vsel %vm2000, %v3128, %v3132
        %v3134 = vshrl.u32 %v3035, 16
        %v3136 = vor.u32 %v3134, %v3132
        %v3138 = vshll.u32 %v3036, 16
        %v3140 = vrot.slane %v3138, 1
        %v3141 = vsel %vm2000, %v3136, %v3140
        %v3142 = vshrl.u32 %v3036, 16
        %v3144 = vor.u32 %v3142, %v3140
        %v3146 = vshll.u32 %v3037, 16
        %v3148 = vrot.slane %v3146, 1
        %v3149 = vsel %vm2000, %v3144, %v3148
        %v3150 = vshrl.u32 %v3037, 16
        %v3152 = vor.u32 %v3150, %v3148
        %v3154 = vshll.u32 %v3038, 16
        %v3156 = vrot.slane %v3154, 1
        %v3157 = vsel %vm2000, %v3152, %v3156
        %v3158 = vshrl.u32 %v3038, 16
        %v3160 = vor.u32 %v3158, %v3156
        %v3162 = vshll.u32 %v3039, 16
        %v3164 = vrot.slane %v3162, 1
        %v3165 = vsel %vm2000, %v3160, %v3164
        %v3166 = vshrl.u32 %v3039, 16
        %v3168 = vor.u32 %v3166, %v3164
        %v3170 = vshll.u32 %v3040, 16
        %v3172 = vrot.slane %v3170, 1
        %v3173 = vsel %vm2000, %v3168, %v3172
        %v3174 = vshrl.u32 %v3040, 16
        %v3176 = vor.u32 %v3174, %v3172
        %v3178 = vshll.u32 %v3041, 16
        %v3180 = vrot.slane %v3178, 1
        %v3181 = vsel %vm2000, %v3176, %v3180
        %v3182 = vshrl.u32 %v3041, 16
        %v3184 = vor.u32 %v3182, %v3180
        %v3186 = vshll.u32 %v3042, 16
        %v3188 = vrot.slane %v3186, 1
        %v3189 = vsel %vm2000, %v3184, %v3188
        %v3190 = vshrl.u32 %v3042, 16
        %v3192 = vor.u32 %v3190, %v3188
        %v3194 = vshll.u32 %v3043, 16
        %v3196 = vrot.slane %v3194, 1
        %v3197 = vsel %vm2000, %v3192, %v3196
        %v3198 = vshrl.u32 %v3043, 16
        %v3200 = vor.u32 %v3198, %v3196
        %v3202 = vshll.u32 %v3044, 16
        %v3204 = vrot.slane %v3202, 1
        %v3205 = vsel %vm2000, %v3200, %v3204
        %v3206 = vshrl.u32 %v3044, 16
        %v3208 = vor.u32 %v3206, %v3204
        %v3210 = vshll.u32 %v3045, 16
        %v3212 = vrot.slane %v3210, 1
        %v3213 = vsel %vm2000, %v3208, %v3212
        %v3214 = vshrl.u32 %v3045, 16
        %v3216 = vor.u32 %v3214, %v3212
        %v3218 = vshll.u32 %v3046, 16
        %v3220 = vrot.slane %v3218, 1
        %v3221 = vsel %vm2000, %v3216, %v3220
        %v3222 = vshrl.u32 %v3046, 16
        %v3224 = vor.u32 %v3222, %v3220
        %v3226 = vshll.u32 %v3047, 16
        %v3228 = vrot.slane %v3226, 1
        %v3229 = vsel %vm2000, %v3224, %v3228
        %v3230 = vshrl.u32 %v3047, 16
        %v3232 = vor.u32 %v3230, %v3228
        %v3234 = vshll.u32 %v3048, 16
        %v3236 = vrot.slane %v3234, 1
        %v3237 = vsel %vm2000, %v3232, %v3236
        %v3238 = vshrl.u32 %v3048, 16
        %v3240 = vor.u32 %v3238, %v3236
        %v3242 = vshll.u32 %v3049, 16
        %v3244 = vrot.slane %v3242, 1
        %v3245 = vsel %vm2000, %v3240, %v3244
        %3270 = vst.msk [vmem:[#allocation3 + $0x8] sm:$0xff] %vm1803, %v3061
        %3271 = vst.msk [vmem:[#allocation3 + $0x20] sm:$0xff] %vm1803, %v3069
        %3272 = vst.msk [vmem:[#allocation3 + $0x38] sm:$0xff] %vm1803, %v3077
        %3273 = vst.msk [vmem:[#allocation3 + $0x50] sm:$0xff] %vm1803, %v3085
        %3274 = vst.msk [vmem:[#allocation3 + $0x68] sm:$0xff] %vm1803, %v3093
        %3275 = vst.msk [vmem:[#allocation3 + $0x80] sm:$0xff] %vm1803, %v3101
        %3276 = vst.msk [vmem:[#allocation3 + $0x98] sm:$0xff] %vm1803, %v3109
        %3277 = vst.msk [vmem:[#allocation3 + $0xb0] sm:$0xff] %vm1803, %v3117
        %3278 = vst.msk [vmem:[#allocation3 + $0xc8] sm:$0xff] %vm1803, %v3125
        %3279 = vst.msk [vmem:[#allocation3 + $0xe0] sm:$0xff] %vm1803, %v3133
        %3280 = vst.msk [vmem:[#allocation3 + $0xf8] sm:$0xff] %vm1803, %v3141
        %3281 = vst.msk [vmem:[#allocation3 + $0x110] sm:$0xff] %vm1803, %v3149
        %3282 = vst.msk [vmem:[#allocation3 + $0x128] sm:$0xff] %vm1803, %v3157
        %3283 = vst.msk [vmem:[#allocation3 + $0x140] sm:$0xff] %vm1803, %v3165
        %3284 = vst.msk [vmem:[#allocation3 + $0x158] sm:$0xff] %vm1803, %v3173
        %3285 = vst.msk [vmem:[#allocation3 + $0x170] sm:$0xff] %vm1803, %v3181
        %3286 = vst.msk [vmem:[#allocation3 + $0x188] sm:$0xff] %vm1803, %v3189
        %3287 = vst.msk [vmem:[#allocation3 + $0x1a0] sm:$0xff] %vm1803, %v3197
        %3288 = vst.msk [vmem:[#allocation3 + $0x1b8] sm:$0xff] %vm1803, %v3205
        %3289 = vst.msk [vmem:[#allocation3 + $0x1d0] sm:$0xff] %vm1803, %v3213
        %3290 = vst.msk [vmem:[#allocation3 + $0x1e8] sm:$0xff] %vm1803, %v3221
        %3291 = vst.msk [vmem:[#allocation3 + $0x200] sm:$0xff] %vm1803, %v3229
        %3292 = vst.msk [vmem:[#allocation3 + $0x218] sm:$0xff] %vm1803, %v3237
        %3293 = vst.msk [vmem:[#allocation3 + $0x230] sm:$0xff] %vm1803, %v3245
        %v3294 = vld [vmem:[#allocation2 + $0xc] sm:$0xe]
        %v3295 = vld [vmem:[#allocation2 + $0x10] sm:$0xf]
        %v3296 = vld [vmem:[#allocation2 + $0x14] sm:$0xf]
        %v3297 = vld [vmem:[#allocation2 + $0x18] sm:$0xf]
        %v3298 = vld [vmem:[#allocation2 + $0x1c] sm:$0xf]
        %v3299 = vld [vmem:[#allocation2 + $0x20] sm:$0xf]
        %v3300 = vld [vmem:[#allocation2 + $0x24] sm:$0xf]
        %v3301 = vld [vmem:[#allocation2 + $0x28] sm:$0xf]
        %v3302 = vld [vmem:[#allocation2 + $0x2c] sm:$0xf]
        %v3303 = vld [vmem:[#allocation2 + $0x30] sm:$0xf]
        %v3304 = vld [vmem:[#allocation2 + $0x34] sm:$0xf]
        %v3305 = vld [vmem:[#allocation2 + $0x38] sm:$0xf]
        %v3306 = vld [vmem:[#allocation2 + $0x3c] sm:$0xf]
        %v3307 = vld [vmem:[#allocation2 + $0x40] sm:$0xf]
        %v3308 = vld [vmem:[#allocation2 + $0x44] sm:$0xf]
        %v3309 = vld [vmem:[#allocation2 + $0x48] sm:$0xf]
        %v3310 = vld [vmem:[#allocation2 + $0x4c] sm:$0xf]
        %v3311 = vld [vmem:[#allocation2 + $0x50] sm:$0xf]
        %v3312 = vld [vmem:[#allocation2 + $0x54] sm:$0xf]
        %v3313 = vld [vmem:[#allocation2 + $0x58] sm:$0xf]
        %v3314 = vld [vmem:[#allocation2 + $0x5c] sm:$0xf]
        %v3315 = vld [vmem:[#allocation2 + $0x60] sm:$0xf]
        %v3316 = vld [vmem:[#allocation2 + $0x64] sm:$0xf]
        %v3317 = vld [vmem:[#allocation2 + $0x68] sm:$0xf]
        %v3318 = vld [vmem:[#allocation2 + $0x6c] sm:$0xf]
        %v3319 = vld [vmem:[#allocation2 + $0x70] sm:$0xf]
        %v3320 = vld [vmem:[#allocation2 + $0x74] sm:$0xf]
        %v3321 = vld [vmem:[#allocation2 + $0x78] sm:$0xf]
        %v3322 = vld [vmem:[#allocation2 + $0x7c] sm:$0xf]
        %v3323 = vld [vmem:[#allocation2 + $0x80] sm:$0xf]
        %v3324 = vld [vmem:[#allocation2 + $0x84] sm:$0xf]
        %v3325 = vld [vmem:[#allocation2 + $0x88] sm:$0xf]
        %v3326 = vld [vmem:[#allocation2 + $0x8c] sm:$0xf]
        %v3327 = vld [vmem:[#allocation2 + $0x90] sm:$0xf]
        %v3328 = vld [vmem:[#allocation2 + $0x94] sm:$0xf]
        %v3329 = vld [vmem:[#allocation2 + $0x98] sm:$0xf]
        %v3330 = vld [vmem:[#allocation2 + $0x9c] sm:$0xf]
        %v3331 = vld [vmem:[#allocation2 + $0xa0] sm:$0xf]
        %v3332 = vld [vmem:[#allocation2 + $0xa4] sm:$0xf]
        %v3333 = vld [vmem:[#allocation2 + $0xa8] sm:$0xf]
        %v3334 = vld [vmem:[#allocation2 + $0xac] sm:$0xf]
        %v3335 = vld [vmem:[#allocation2 + $0xb0] sm:$0xf]
        %v3336 = vld [vmem:[#allocation2 + $0xb4] sm:$0xf]
        %v3337 = vld [vmem:[#allocation2 + $0xb8] sm:$0xf]
        %v3338 = vld [vmem:[#allocation2 + $0xbc] sm:$0xf]
        %v3339 = vld [vmem:[#allocation2 + $0xc0] sm:$0xf]
        %v3340 = vld [vmem:[#allocation2 + $0xc4] sm:$0xf]
        %v3341 = vld [vmem:[#allocation2 + $0xc8] sm:$0xf]
        %v3342 = vld [vmem:[#allocation2 + $0xcc] sm:$0x1]
        %v3392 = vunpack.c.l.b16 %v3294
        %v3393 = vunpack.c.l.b16 %v3295
        %v3394 = vunpack.c.l.b16 %v3296
        %v3395 = vunpack.c.l.b16 %v3297
        %v3396 = vunpack.c.l.b16 %v3298
        %v3397 = vunpack.c.l.b16 %v3299
        %v3398 = vunpack.c.l.b16 %v3300
        %v3399 = vunpack.c.l.b16 %v3301
        %v3400 = vunpack.c.l.b16 %v3302
        %v3401 = vunpack.c.l.b16 %v3303
        %v3402 = vunpack.c.l.b16 %v3304
        %v3403 = vunpack.c.l.b16 %v3305
        %v3404 = vunpack.c.l.b16 %v3306
        %v3405 = vunpack.c.l.b16 %v3307
        %v3406 = vunpack.c.l.b16 %v3308
        %v3407 = vunpack.c.l.b16 %v3309
        %v3408 = vunpack.c.l.b16 %v3310
        %v3409 = vunpack.c.l.b16 %v3311
        %v3410 = vunpack.c.l.b16 %v3312
        %v3411 = vunpack.c.l.b16 %v3313
        %v3412 = vunpack.c.l.b16 %v3314
        %v3413 = vunpack.c.l.b16 %v3315
        %v3414 = vunpack.c.l.b16 %v3316
        %v3415 = vunpack.c.l.b16 %v3317
        %v3416 = vunpack.c.l.b16 %v3318
        %v3417 = vunpack.c.l.b16 %v3319
        %v3418 = vunpack.c.l.b16 %v3320
        %v3419 = vunpack.c.l.b16 %v3321
        %v3420 = vunpack.c.l.b16 %v3322
        %v3421 = vunpack.c.l.b16 %v3323
        %v3422 = vunpack.c.l.b16 %v3324
        %v3423 = vunpack.c.l.b16 %v3325
        %v3424 = vunpack.c.l.b16 %v3326
        %v3425 = vunpack.c.l.b16 %v3327
        %v3426 = vunpack.c.l.b16 %v3328
        %v3427 = vunpack.c.l.b16 %v3329
        %v3428 = vunpack.c.l.b16 %v3330
        %v3429 = vunpack.c.l.b16 %v3331
        %v3430 = vunpack.c.l.b16 %v3332
        %v3431 = vunpack.c.l.b16 %v3333
        %v3432 = vunpack.c.l.b16 %v3334
        %v3433 = vunpack.c.l.b16 %v3335
        %v3434 = vunpack.c.l.b16 %v3336
        %v3435 = vunpack.c.l.b16 %v3337
        %v3436 = vunpack.c.l.b16 %v3338
        %v3437 = vunpack.c.l.b16 %v3339
        %v3438 = vunpack.c.l.b16 %v3340
        %v3439 = vunpack.c.l.b16 %v3341
        %v3440 = vunpack.c.l.b16 %v3342
        %v3441 = vpack.c.b16 %v3393, %v3392
        %v3442 = vpack.c.b16 %v3395, %v3394
        %v3443 = vpack.c.b16 %v3397, %v3396
        %v3444 = vpack.c.b16 %v3399, %v3398
        %v3445 = vpack.c.b16 %v3401, %v3400
        %v3446 = vpack.c.b16 %v3403, %v3402
        %v3447 = vpack.c.b16 %v3405, %v3404
        %v3448 = vpack.c.b16 %v3407, %v3406
        %v3449 = vpack.c.b16 %v3409, %v3408
        %v3450 = vpack.c.b16 %v3411, %v3410
        %v3451 = vpack.c.b16 %v3413, %v3412
        %v3452 = vpack.c.b16 %v3415, %v3414
        %v3453 = vpack.c.b16 %v3417, %v3416
        %v3454 = vpack.c.b16 %v3419, %v3418
        %v3455 = vpack.c.b16 %v3421, %v3420
        %v3456 = vpack.c.b16 %v3423, %v3422
        %v3457 = vpack.c.b16 %v3425, %v3424
        %v3458 = vpack.c.b16 %v3427, %v3426
        %v3459 = vpack.c.b16 %v3429, %v3428
        %v3460 = vpack.c.b16 %v3431, %v3430
        %v3461 = vpack.c.b16 %v3433, %v3432
        %v3462 = vpack.c.b16 %v3435, %v3434
        %v3463 = vpack.c.b16 %v3437, %v3436
        %v3464 = vpack.c.b16 %v3439, %v3438
        %v3465 = vpack.c.b16 %v3440, %v3440
        %v3466 = vrot.slane %v3441, 1
        %v3467 = vrot.slane %v3442, 1
        %v3468 = vsel %vm2466, %v3466, %v3467
        %v3469 = vrot.slane %v3443, 1
        %v3470 = vsel %vm2466, %v3467, %v3469
        %v3471 = vrot.slane %v3444, 1
        %v3472 = vsel %vm2466, %v3469, %v3471
        %v3473 = vrot.slane %v3445, 1
        %v3474 = vsel %vm2466, %v3471, %v3473
        %v3475 = vrot.slane %v3446, 1
        %v3476 = vsel %vm2466, %v3473, %v3475
        %v3477 = vrot.slane %v3447, 1
        %v3478 = vsel %vm2466, %v3475, %v3477
        %v3479 = vrot.slane %v3448, 1
        %v3480 = vsel %vm2466, %v3477, %v3479
        %v3481 = vrot.slane %v3449, 1
        %v3482 = vsel %vm2466, %v3479, %v3481
        %v3483 = vrot.slane %v3450, 1
        %v3484 = vsel %vm2466, %v3481, %v3483
        %v3485 = vrot.slane %v3451, 1
        %v3486 = vsel %vm2466, %v3483, %v3485
        %v3487 = vrot.slane %v3452, 1
        %v3488 = vsel %vm2466, %v3485, %v3487
        %v3489 = vrot.slane %v3453, 1
        %v3490 = vsel %vm2466, %v3487, %v3489
        %v3491 = vrot.slane %v3454, 1
        %v3492 = vsel %vm2466, %v3489, %v3491
        %v3493 = vrot.slane %v3455, 1
        %v3494 = vsel %vm2466, %v3491, %v3493
        %v3495 = vrot.slane %v3456, 1
        %v3496 = vsel %vm2466, %v3493, %v3495
        %v3497 = vrot.slane %v3457, 1
        %v3498 = vsel %vm2466, %v3495, %v3497
        %v3499 = vrot.slane %v3458, 1
        %v3500 = vsel %vm2466, %v3497, %v3499
        %v3501 = vrot.slane %v3459, 1
        %v3502 = vsel %vm2466, %v3499, %v3501
        %v3503 = vrot.slane %v3460, 1
        %v3504 = vsel %vm2466, %v3501, %v3503
        %v3505 = vrot.slane %v3461, 1
        %v3506 = vsel %vm2466, %v3503, %v3505
        %v3507 = vrot.slane %v3462, 1
        %v3508 = vsel %vm2466, %v3505, %v3507
        %v3509 = vrot.slane %v3463, 1
        %v3510 = vsel %vm2466, %v3507, %v3509
        %v3511 = vrot.slane %v3464, 1
        %v3512 = vsel %vm2466, %v3509, %v3511
        %v3513 = vrot.slane %v3465, 1
        %v3514 = vsel %vm2466, %v3511, %v3513
        %3515 = vrot.lane.b32.xlu0 %v3468, 32
        %v3516 = vpop.permute.xlu0 %3515
        %3517 = vrot.lane.b32.xlu0 %v3470, 32
        %v3518 = vpop.permute.xlu0 %3517
        %3519 = vrot.lane.b32.xlu0 %v3472, 32
        %v3520 = vpop.permute.xlu0 %3519
        %3521 = vrot.lane.b32.xlu0 %v3474, 32
        %v3522 = vpop.permute.xlu0 %3521
        %3523 = vrot.lane.b32.xlu0 %v3476, 32
        %v3524 = vpop.permute.xlu0 %3523
        %3525 = vrot.lane.b32.xlu0 %v3478, 32
        %v3526 = vpop.permute.xlu0 %3525
        %3527 = vrot.lane.b32.xlu0 %v3480, 32
        %v3528 = vpop.permute.xlu0 %3527
        %3529 = vrot.lane.b32.xlu0 %v3482, 32
        %v3530 = vpop.permute.xlu0 %3529
        %3531 = vrot.lane.b32.xlu0 %v3484, 32
        %v3532 = vpop.permute.xlu0 %3531
        %3533 = vrot.lane.b32.xlu0 %v3486, 32
        %v3534 = vpop.permute.xlu0 %3533
        %3535 = vrot.lane.b32.xlu0 %v3488, 32
        %v3536 = vpop.permute.xlu0 %3535
        %3537 = vrot.lane.b32.xlu0 %v3490, 32
        %v3538 = vpop.permute.xlu0 %3537
        %3539 = vrot.lane.b32.xlu0 %v3492, 32
        %v3540 = vpop.permute.xlu0 %3539
        %3541 = vrot.lane.b32.xlu0 %v3494, 32
        %v3542 = vpop.permute.xlu0 %3541
        %3543 = vrot.lane.b32.xlu0 %v3496, 32
        %v3544 = vpop.permute.xlu0 %3543
        %3545 = vrot.lane.b32.xlu0 %v3498, 32
        %v3546 = vpop.permute.xlu0 %3545
        %3547 = vrot.lane.b32.xlu0 %v3500, 32
        %v3548 = vpop.permute.xlu0 %3547
        %3549 = vrot.lane.b32.xlu0 %v3502, 32
        %v3550 = vpop.permute.xlu0 %3549
        %3551 = vrot.lane.b32.xlu0 %v3504, 32
        %v3552 = vpop.permute.xlu0 %3551
        %3553 = vrot.lane.b32.xlu0 %v3506, 32
        %v3554 = vpop.permute.xlu0 %3553
        %3555 = vrot.lane.b32.xlu0 %v3508, 32
        %v3556 = vpop.permute.xlu0 %3555
        %3557 = vrot.lane.b32.xlu0 %v3510, 32
        %v3558 = vpop.permute.xlu0 %3557
        %3559 = vrot.lane.b32.xlu0 %v3512, 32
        %v3560 = vpop.permute.xlu0 %3559
        %3561 = vrot.lane.b32.xlu0 %v3514, 32
        %v3562 = vpop.permute.xlu0 %3561
        %3587 = vst.msk [vmem:[#allocation3 + $0x8] sm:$0xff] %vm2269, %v3516
        %3588 = vst.msk [vmem:[#allocation3 + $0x20] sm:$0xff] %vm2269, %v3518
        %3589 = vst.msk [vmem:[#allocation3 + $0x38] sm:$0xff] %vm2269, %v3520
        %3590 = vst.msk [vmem:[#allocation3 + $0x50] sm:$0xff] %vm2269, %v3522
        %3591 = vst.msk [vmem:[#allocation3 + $0x68] sm:$0xff] %vm2269, %v3524
        %3592 = vst.msk [vmem:[#allocation3 + $0x80] sm:$0xff] %vm2269, %v3526
        %3593 = vst.msk [vmem:[#allocation3 + $0x98] sm:$0xff] %vm2269, %v3528
        %3594 = vst.msk [vmem:[#allocation3 + $0xb0] sm:$0xff] %vm2269, %v3530
        %3595 = vst.msk [vmem:[#allocation3 + $0xc8] sm:$0xff] %vm2269, %v3532
        %3596 = vst.msk [vmem:[#allocation3 + $0xe0] sm:$0xff] %vm2269, %v3534
        %3597 = vst.msk [vmem:[#allocation3 + $0xf8] sm:$0xff] %vm2269, %v3536
        %3598 = vst.msk [vmem:[#allocation3 + $0x110] sm:$0xff] %vm2269, %v3538
        %3599 = vst.msk [vmem:[#allocation3 + $0x128] sm:$0xff] %vm2269, %v3540
        %3600 = vst.msk [vmem:[#allocation3 + $0x140] sm:$0xff] %vm2269, %v3542
        %3601 = vst.msk [vmem:[#allocation3 + $0x158] sm:$0xff] %vm2269, %v3544
        %3602 = vst.msk [vmem:[#allocation3 + $0x170] sm:$0xff] %vm2269, %v3546
        %3603 = vst.msk [vmem:[#allocation3 + $0x188] sm:$0xff] %vm2269, %v3548
        %3604 = vst.msk [vmem:[#allocation3 + $0x1a0] sm:$0xff] %vm2269, %v3550
        %3605 = vst.msk [vmem:[#allocation3 + $0x1b8] sm:$0xff] %vm2269, %v3552
        %3606 = vst.msk [vmem:[#allocation3 + $0x1d0] sm:$0xff] %vm2269, %v3554
        %3607 = vst.msk [vmem:[#allocation3 + $0x1e8] sm:$0xff] %vm2269, %v3556
        %3608 = vst.msk [vmem:[#allocation3 + $0x200] sm:$0xff] %vm2269, %v3558
        %3609 = vst.msk [vmem:[#allocation3 + $0x218] sm:$0xff] %vm2269, %v3560
        %3610 = vst.msk [vmem:[#allocation3 + $0x230] sm:$0xff] %vm2269, %v3562
        %v3611 = vld [vmem:[#allocation2 + $0x18] sm:$0xf]
        %v3612 = vld [vmem:[#allocation2 + $0x1c] sm:$0xf]
        %v3613 = vld [vmem:[#allocation2 + $0x20] sm:$0xf]
        %v3614 = vld [vmem:[#allocation2 + $0x24] sm:$0xf]
        %v3615 = vld [vmem:[#allocation2 + $0x28] sm:$0xf]
        %v3616 = vld [vmem:[#allocation2 + $0x2c] sm:$0xf]
        %v3617 = vld [vmem:[#allocation2 + $0x30] sm:$0xf]
        %v3618 = vld [vmem:[#allocation2 + $0x34] sm:$0xf]
        %v3619 = vld [vmem:[#allocation2 + $0x38] sm:$0xf]
        %v3620 = vld [vmem:[#allocation2 + $0x3c] sm:$0xf]
        %v3621 = vld [vmem:[#allocation2 + $0x40] sm:$0xf]
        %v3622 = vld [vmem:[#allocation2 + $0x44] sm:$0xf]
        %v3623 = vld [vmem:[#allocation2 + $0x48] sm:$0xf]
        %v3624 = vld [vmem:[#allocation2 + $0x4c] sm:$0xf]
        %v3625 = vld [vmem:[#allocation2 + $0x50] sm:$0xf]
        %v3626 = vld [vmem:[#allocation2 + $0x54] sm:$0xf]
        %v3627 = vld [vmem:[#allocation2 + $0x58] sm:$0xf]
        %v3628 = vld [vmem:[#allocation2 + $0x5c] sm:$0xf]
        %v3629 = vld [vmem:[#allocation2 + $0x60] sm:$0xf]
        %v3630 = vld [vmem:[#allocation2 + $0x64] sm:$0xf]
        %v3631 = vld [vmem:[#allocation2 + $0x68] sm:$0xf]
        %v3632 = vld [vmem:[#allocation2 + $0x6c] sm:$0xf]
        %v3633 = vld [vmem:[#allocation2 + $0x70] sm:$0xf]
        %v3634 = vld [vmem:[#allocation2 + $0x74] sm:$0xf]
        %v3635 = vld [vmem:[#allocation2 + $0x78] sm:$0xf]
        %v3636 = vld [vmem:[#allocation2 + $0x7c] sm:$0xf]
        %v3637 = vld [vmem:[#allocation2 + $0x80] sm:$0xf]
        %v3638 = vld [vmem:[#allocation2 + $0x84] sm:$0xf]
        %v3639 = vld [vmem:[#allocation2 + $0x88] sm:$0xf]
        %v3640 = vld [vmem:[#allocation2 + $0x8c] sm:$0xf]
        %v3641 = vld [vmem:[#allocation2 + $0x90] sm:$0xf]
        %v3642 = vld [vmem:[#allocation2 + $0x94] sm:$0xf]
        %v3643 = vld [vmem:[#allocation2 + $0x98] sm:$0xf]
        %v3644 = vld [vmem:[#allocation2 + $0x9c] sm:$0xf]
        %v3645 = vld [vmem:[#allocation2 + $0xa0] sm:$0xf]
        %v3646 = vld [vmem:[#allocation2 + $0xa4] sm:$0xf]
        %v3647 = vld [vmem:[#allocation2 + $0xa8] sm:$0xf]
        %v3648 = vld [vmem:[#allocation2 + $0xac] sm:$0xf]
        %v3649 = vld [vmem:[#allocation2 + $0xb0] sm:$0xf]
        %v3650 = vld [vmem:[#allocation2 + $0xb4] sm:$0xf]
        %v3651 = vld [vmem:[#allocation2 + $0xb8] sm:$0xf]
        %v3652 = vld [vmem:[#allocation2 + $0xbc] sm:$0xf]
        %v3653 = vld [vmem:[#allocation2 + $0xc0] sm:$0xf]
        %v3654 = vld [vmem:[#allocation2 + $0xc4] sm:$0xf]
        %v3655 = vld [vmem:[#allocation2 + $0xc8] sm:$0xf]
        %v3656 = vld [vmem:[#allocation2 + $0xcc] sm:$0xf]
        %v3657 = vld [vmem:[#allocation2 + $0xd0] sm:$0xf]
        %v3658 = vld [vmem:[#allocation2 + $0xd4] sm:$0xf]
        %v3707 = vunpack.c.l.b16 %v3611
        %v3708 = vunpack.c.l.b16 %v3612
        %v3709 = vunpack.c.l.b16 %v3613
        %v3710 = vunpack.c.l.b16 %v3614
        %v3711 = vunpack.c.l.b16 %v3615
        %v3712 = vunpack.c.l.b16 %v3616
        %v3713 = vunpack.c.l.b16 %v3617
        %v3714 = vunpack.c.l.b16 %v3618
        %v3715 = vunpack.c.l.b16 %v3619
        %v3716 = vunpack.c.l.b16 %v3620
        %v3717 = vunpack.c.l.b16 %v3621
        %v3718 = vunpack.c.l.b16 %v3622
        %v3719 = vunpack.c.l.b16 %v3623
        %v3720 = vunpack.c.l.b16 %v3624
        %v3721 = vunpack.c.l.b16 %v3625
        %v3722 = vunpack.c.l.b16 %v3626
        %v3723 = vunpack.c.l.b16 %v3627
        %v3724 = vunpack.c.l.b16 %v3628
        %v3725 = vunpack.c.l.b16 %v3629
        %v3726 = vunpack.c.l.b16 %v3630
        %v3727 = vunpack.c.l.b16 %v3631
        %v3728 = vunpack.c.l.b16 %v3632
        %v3729 = vunpack.c.l.b16 %v3633
        %v3730 = vunpack.c.l.b16 %v3634
        %v3731 = vunpack.c.l.b16 %v3635
        %v3732 = vunpack.c.l.b16 %v3636
        %v3733 = vunpack.c.l.b16 %v3637
        %v3734 = vunpack.c.l.b16 %v3638
        %v3735 = vunpack.c.l.b16 %v3639
        %v3736 = vunpack.c.l.b16 %v3640
        %v3737 = vunpack.c.l.b16 %v3641
        %v3738 = vunpack.c.l.b16 %v3642
        %v3739 = vunpack.c.l.b16 %v3643
        %v3740 = vunpack.c.l.b16 %v3644
        %v3741 = vunpack.c.l.b16 %v3645
        %v3742 = vunpack.c.l.b16 %v3646
        %v3743 = vunpack.c.l.b16 %v3647
        %v3744 = vunpack.c.l.b16 %v3648
        %v3745 = vunpack.c.l.b16 %v3649
        %v3746 = vunpack.c.l.b16 %v3650
        %v3747 = vunpack.c.l.b16 %v3651
        %v3748 = vunpack.c.l.b16 %v3652
        %v3749 = vunpack.c.l.b16 %v3653
        %v3750 = vunpack.c.l.b16 %v3654
        %v3751 = vunpack.c.l.b16 %v3655
        %v3752 = vunpack.c.l.b16 %v3656
        %v3753 = vunpack.c.l.b16 %v3657
        %v3754 = vunpack.c.l.b16 %v3658
        %v3755 = vpack.c.b16 %v3708, %v3707
        %v3756 = vpack.c.b16 %v3710, %v3709
        %v3757 = vpack.c.b16 %v3712, %v3711
        %v3758 = vpack.c.b16 %v3714, %v3713
        %v3759 = vpack.c.b16 %v3716, %v3715
        %v3760 = vpack.c.b16 %v3718, %v3717
        %v3761 = vpack.c.b16 %v3720, %v3719
        %v3762 = vpack.c.b16 %v3722, %v3721
        %v3763 = vpack.c.b16 %v3724, %v3723
        %v3764 = vpack.c.b16 %v3726, %v3725
        %v3765 = vpack.c.b16 %v3728, %v3727
        %v3766 = vpack.c.b16 %v3730, %v3729
        %v3767 = vpack.c.b16 %v3732, %v3731
        %v3768 = vpack.c.b16 %v3734, %v3733
        %v3769 = vpack.c.b16 %v3736, %v3735
        %v3770 = vpack.c.b16 %v3738, %v3737
        %v3771 = vpack.c.b16 %v3740, %v3739
        %v3772 = vpack.c.b16 %v3742, %v3741
        %v3773 = vpack.c.b16 %v3744, %v3743
        %v3774 = vpack.c.b16 %v3746, %v3745
        %v3775 = vpack.c.b16 %v3748, %v3747
        %v3776 = vpack.c.b16 %v3750, %v3749
        %v3777 = vpack.c.b16 %v3752, %v3751
        %v3778 = vpack.c.b16 %v3754, %v3753
        %3779 = vrot.lane.b32.xlu0 %v3755, 64
        %v3780 = vpop.permute.xlu0 %3779
        %3781 = vrot.lane.b32.xlu0 %v3756, 64
        %v3782 = vpop.permute.xlu0 %3781
        %3783 = vrot.lane.b32.xlu0 %v3757, 64
        %v3784 = vpop.permute.xlu0 %3783
        %3785 = vrot.lane.b32.xlu0 %v3758, 64
        %v3786 = vpop.permute.xlu0 %3785
        %3787 = vrot.lane.b32.xlu0 %v3759, 64
        %v3788 = vpop.permute.xlu0 %3787
        %3789 = vrot.lane.b32.xlu0 %v3760, 64
        %v3790 = vpop.permute.xlu0 %3789
        %3791 = vrot.lane.b32.xlu0 %v3761, 64
        %v3792 = vpop.permute.xlu0 %3791
        %3793 = vrot.lane.b32.xlu0 %v3762, 64
        %v3794 = vpop.permute.xlu0 %3793
        %3795 = vrot.lane.b32.xlu0 %v3763, 64
        %v3796 = vpop.permute.xlu0 %3795
        %3797 = vrot.lane.b32.xlu0 %v3764, 64
        %v3798 = vpop.permute.xlu0 %3797
        %3799 = vrot.lane.b32.xlu0 %v3765, 64
        %v3800 = vpop.permute.xlu0 %3799
        %3801 = vrot.lane.b32.xlu0 %v3766, 64
        %v3802 = vpop.permute.xlu0 %3801
        %3803 = vrot.lane.b32.xlu0 %v3767, 64
        %v3804 = vpop.permute.xlu0 %3803
        %3805 = vrot.lane.b32.xlu0 %v3768, 64
        %v3806 = vpop.permute.xlu0 %3805
        %3807 = vrot.lane.b32.xlu0 %v3769, 64
        %v3808 = vpop.permute.xlu0 %3807
        %3809 = vrot.lane.b32.xlu0 %v3770, 64
        %v3810 = vpop.permute.xlu0 %3809
        %3811 = vrot.lane.b32.xlu0 %v3771, 64
        %v3812 = vpop.permute.xlu0 %3811
        %3813 = vrot.lane.b32.xlu0 %v3772, 64
        %v3814 = vpop.permute.xlu0 %3813
        %3815 = vrot.lane.b32.xlu0 %v3773, 64
        %v3816 = vpop.permute.xlu0 %3815
        %3817 = vrot.lane.b32.xlu0 %v3774, 64
        %v3818 = vpop.permute.xlu0 %3817
        %3819 = vrot.lane.b32.xlu0 %v3775, 64
        %v3820 = vpop.permute.xlu0 %3819
        %3821 = vrot.lane.b32.xlu0 %v3776, 64
        %v3822 = vpop.permute.xlu0 %3821
        %3823 = vrot.lane.b32.xlu0 %v3777, 64
        %v3824 = vpop.permute.xlu0 %3823
        %3825 = vrot.lane.b32.xlu0 %v3778, 64
        %v3826 = vpop.permute.xlu0 %3825
        %3851 = vst.msk [vmem:[#allocation3 + $0x8] sm:$0xff] %vm2588, %v3780
        %3852 = vst.msk [vmem:[#allocation3 + $0x20] sm:$0xff] %vm2588, %v3782
        %3853 = vst.msk [vmem:[#allocation3 + $0x38] sm:$0xff] %vm2588, %v3784
        %3854 = vst.msk [vmem:[#allocation3 + $0x50] sm:$0xff] %vm2588, %v3786
        %3855 = vst.msk [vmem:[#allocation3 + $0x68] sm:$0xff] %vm2588, %v3788
        %3856 = vst.msk [vmem:[#allocation3 + $0x80] sm:$0xff] %vm2588, %v3790
        %3857 = vst.msk [vmem:[#allocation3 + $0x98] sm:$0xff] %vm2588, %v3792
        %3858 = vst.msk [vmem:[#allocation3 + $0xb0] sm:$0xff] %vm2588, %v3794
        %3859 = vst.msk [vmem:[#allocation3 + $0xc8] sm:$0xff] %vm2588, %v3796
        %3860 = vst.msk [vmem:[#allocation3 + $0xe0] sm:$0xff] %vm2588, %v3798
        %3861 = vst.msk [vmem:[#allocation3 + $0xf8] sm:$0xff] %vm2588, %v3800
        %3862 = vst.msk [vmem:[#allocation3 + $0x110] sm:$0xff] %vm2588, %v3802
        %3863 = vst.msk [vmem:[#allocation3 + $0x128] sm:$0xff] %vm2588, %v3804
        %3864 = vst.msk [vmem:[#allocation3 + $0x140] sm:$0xff] %vm2588, %v3806
        %3865 = vst.msk [vmem:[#allocation3 + $0x158] sm:$0xff] %vm2588, %v3808
        %3866 = vst.msk [vmem:[#allocation3 + $0x170] sm:$0xff] %vm2588, %v3810
        %3867 = vst.msk [vmem:[#allocation3 + $0x188] sm:$0xff] %vm2588, %v3812
        %3868 = vst.msk [vmem:[#allocation3 + $0x1a0] sm:$0xff] %vm2588, %v3814
        %3869 = vst.msk [vmem:[#allocation3 + $0x1b8] sm:$0xff] %vm2588, %v3816
        %3870 = vst.msk [vmem:[#allocation3 + $0x1d0] sm:$0xff] %vm2588, %v3818
        %3871 = vst.msk [vmem:[#allocation3 + $0x1e8] sm:$0xff] %vm2588, %v3820
        %3872 = vst.msk [vmem:[#allocation3 + $0x200] sm:$0xff] %vm2588, %v3822
        %3873 = vst.msk [vmem:[#allocation3 + $0x218] sm:$0xff] %vm2588, %v3824
        %3874 = vst.msk [vmem:[#allocation3 + $0x230] sm:$0xff] %vm2588, %v3826
        %v3875 = vld [vmem:[#allocation2 + $0x18] sm:$0xf]
        %v3876 = vld [vmem:[#allocation2 + $0x1c] sm:$0xf]
        %v3877 = vld [vmem:[#allocation2 + $0x20] sm:$0xf]
        %v3878 = vld [vmem:[#allocation2 + $0x24] sm:$0xf]
        %v3879 = vld [vmem:[#allocation2 + $0x28] sm:$0xf]
        %v3880 = vld [vmem:[#allocation2 + $0x2c] sm:$0xf]
        %v3881 = vld [vmem:[#allocation2 + $0x30] sm:$0xf]
        %v3882 = vld [vmem:[#allocation2 + $0x34] sm:$0xf]
        %v3883 = vld [vmem:[#allocation2 + $0x38] sm:$0xf]
        %v3884 = vld [vmem:[#allocation2 + $0x3c] sm:$0xf]
        %v3885 = vld [vmem:[#allocation2 + $0x40] sm:$0xf]
        %v3886 = vld [vmem:[#allocation2 + $0x44] sm:$0xf]
        %v3887 = vld [vmem:[#allocation2 + $0x48] sm:$0xf]
        %v3888 = vld [vmem:[#allocation2 + $0x4c] sm:$0xf]
        %v3889 = vld [vmem:[#allocation2 + $0x50] sm:$0xf]
        %v3890 = vld [vmem:[#allocation2 + $0x54] sm:$0xf]
        %v3891 = vld [vmem:[#allocation2 + $0x58] sm:$0xf]
        %v3892 = vld [vmem:[#allocation2 + $0x5c] sm:$0xf]
        %v3893 = vld [vmem:[#allocation2 + $0x60] sm:$0xf]
        %v3894 = vld [vmem:[#allocation2 + $0x64] sm:$0xf]
        %v3895 = vld [vmem:[#allocation2 + $0x68] sm:$0xf]
        %v3896 = vld [vmem:[#allocation2 + $0x6c] sm:$0xf]
        %v3897 = vld [vmem:[#allocation2 + $0x70] sm:$0xf]
        %v3898 = vld [vmem:[#allocation2 + $0x74] sm:$0xf]
        %v3899 = vld [vmem:[#allocation2 + $0x78] sm:$0xf]
        %v3900 = vld [vmem:[#allocation2 + $0x7c] sm:$0xf]
        %v3901 = vld [vmem:[#allocation2 + $0x80] sm:$0xf]
        %v3902 = vld [vmem:[#allocation2 + $0x84] sm:$0xf]
        %v3903 = vld [vmem:[#allocation2 + $0x88] sm:$0xf]
        %v3904 = vld [vmem:[#allocation2 + $0x8c] sm:$0xf]
        %v3905 = vld [vmem:[#allocation2 + $0x90] sm:$0xf]
        %v3906 = vld [vmem:[#allocation2 + $0x94] sm:$0xf]
        %v3907 = vld [vmem:[#allocation2 + $0x98] sm:$0xf]
        %v3908 = vld [vmem:[#allocation2 + $0x9c] sm:$0xf]
        %v3909 = vld [vmem:[#allocation2 + $0xa0] sm:$0xf]
        %v3910 = vld [vmem:[#allocation2 + $0xa4] sm:$0xf]
        %v3911 = vld [vmem:[#allocation2 + $0xa8] sm:$0xf]
        %v3912 = vld [vmem:[#allocation2 + $0xac] sm:$0xf]
        %v3913 = vld [vmem:[#allocation2 + $0xb0] sm:$0xf]
        %v3914 = vld [vmem:[#allocation2 + $0xb4] sm:$0xf]
        %v3915 = vld [vmem:[#allocation2 + $0xb8] sm:$0xf]
        %v3916 = vld [vmem:[#allocation2 + $0xbc] sm:$0xf]
        %v3917 = vld [vmem:[#allocation2 + $0xc0] sm:$0xf]
        %v3918 = vld [vmem:[#allocation2 + $0xc4] sm:$0xf]
        %v3919 = vld [vmem:[#allocation2 + $0xc8] sm:$0xf]
        %v3920 = vld [vmem:[#allocation2 + $0xcc] sm:$0xf]
        %v3921 = vld [vmem:[#allocation2 + $0xd0] sm:$0xf]
        %v3922 = vld [vmem:[#allocation2 + $0xd4] sm:$0xf]
        %v3923 = vld [vmem:[#allocation2 + $0xd8] sm:$0x1]
        %v3973 = vunpack.c.l.b16 %v3875
        %v3974 = vunpack.c.l.b16 %v3876
        %v3975 = vunpack.c.l.b16 %v3877
        %v3976 = vunpack.c.l.b16 %v3878
        %v3977 = vunpack.c.l.b16 %v3879
        %v3978 = vunpack.c.l.b16 %v3880
        %v3979 = vunpack.c.l.b16 %v3881
        %v3980 = vunpack.c.l.b16 %v3882
        %v3981 = vunpack.c.l.b16 %v3883
        %v3982 = vunpack.c.l.b16 %v3884
        %v3983 = vunpack.c.l.b16 %v3885
        %v3984 = vunpack.c.l.b16 %v3886
        %v3985 = vunpack.c.l.b16 %v3887
        %v3986 = vunpack.c.l.b16 %v3888
        %v3987 = vunpack.c.l.b16 %v3889
        %v3988 = vunpack.c.l.b16 %v3890
        %v3989 = vunpack.c.l.b16 %v3891
        %v3990 = vunpack.c.l.b16 %v3892
        %v3991 = vunpack.c.l.b16 %v3893
        %v3992 = vunpack.c.l.b16 %v3894
        %v3993 = vunpack.c.l.b16 %v3895
        %v3994 = vunpack.c.l.b16 %v3896
        %v3995 = vunpack.c.l.b16 %v3897
        %v3996 = vunpack.c.l.b16 %v3898
        %v3997 = vunpack.c.l.b16 %v3899
        %v3998 = vunpack.c.l.b16 %v3900
        %v3999 = vunpack.c.l.b16 %v3901
        %v4000 = vunpack.c.l.b16 %v3902
        %v4001 = vunpack.c.l.b16 %v3903
        %v4002 = vunpack.c.l.b16 %v3904
        %v4003 = vunpack.c.l.b16 %v3905
        %v4004 = vunpack.c.l.b16 %v3906
        %v4005 = vunpack.c.l.b16 %v3907
        %v4006 = vunpack.c.l.b16 %v3908
        %v4007 = vunpack.c.l.b16 %v3909
        %v4008 = vunpack.c.l.b16 %v3910
        %v4009 = vunpack.c.l.b16 %v3911
        %v4010 = vunpack.c.l.b16 %v3912
        %v4011 = vunpack.c.l.b16 %v3913
        %v4012 = vunpack.c.l.b16 %v3914
        %v4013 = vunpack.c.l.b16 %v3915
        %v4014 = vunpack.c.l.b16 %v3916
        %v4015 = vunpack.c.l.b16 %v3917
        %v4016 = vunpack.c.l.b16 %v3918
        %v4017 = vunpack.c.l.b16 %v3919
        %v4018 = vunpack.c.l.b16 %v3920
        %v4019 = vunpack.c.l.b16 %v3921
        %v4020 = vunpack.c.l.b16 %v3922
        %v4021 = vunpack.c.l.b16 %v3923
        %v4022 = vpack.c.b16 %v3974, %v3973
        %v4023 = vpack.c.b16 %v3976, %v3975
        %v4024 = vpack.c.b16 %v3978, %v3977
        %v4025 = vpack.c.b16 %v3980, %v3979
        %v4026 = vpack.c.b16 %v3982, %v3981
        %v4027 = vpack.c.b16 %v3984, %v3983
        %v4028 = vpack.c.b16 %v3986, %v3985
        %v4029 = vpack.c.b16 %v3988, %v3987
        %v4030 = vpack.c.b16 %v3990, %v3989
        %v4031 = vpack.c.b16 %v3992, %v3991
        %v4032 = vpack.c.b16 %v3994, %v3993
        %v4033 = vpack.c.b16 %v3996, %v3995
        %v4034 = vpack.c.b16 %v3998, %v3997
        %v4035 = vpack.c.b16 %v4000, %v3999
        %v4036 = vpack.c.b16 %v4002, %v4001
        %v4037 = vpack.c.b16 %v4004, %v4003
        %v4038 = vpack.c.b16 %v4006, %v4005
        %v4039 = vpack.c.b16 %v4008, %v4007
        %v4040 = vpack.c.b16 %v4010, %v4009
        %v4041 = vpack.c.b16 %v4012, %v4011
        %v4042 = vpack.c.b16 %v4014, %v4013
        %v4043 = vpack.c.b16 %v4016, %v4015
        %v4044 = vpack.c.b16 %v4018, %v4017
        %v4045 = vpack.c.b16 %v4020, %v4019
        %v4046 = vpack.c.b16 %v4021, %v4021
        %v4048 = vshrl.u32 %v4022, 16
        %v4050 = vshll.u32 %v4022, 16
        %v4052 = vrot.slane %v4050, 1
        %v4053 = vor.u32 %v4048, %v4052
        %v4055 = vshll.u32 %v4023, 16
        %v4057 = vrot.slane %v4055, 1
        %v4058 = vsel %vm2000, %v4053, %v4057
        %v4059 = vshrl.u32 %v4023, 16
        %v4061 = vor.u32 %v4059, %v4057
        %v4063 = vshll.u32 %v4024, 16
        %v4065 = vrot.slane %v4063, 1
        %v4066 = vsel %vm2000, %v4061, %v4065
        %v4067 = vshrl.u32 %v4024, 16
        %v4069 = vor.u32 %v4067, %v4065
        %v4071 = vshll.u32 %v4025, 16
        %v4073 = vrot.slane %v4071, 1
        %v4074 = vsel %vm2000, %v4069, %v4073
        %v4075 = vshrl.u32 %v4025, 16
        %v4077 = vor.u32 %v4075, %v4073
        %v4079 = vshll.u32 %v4026, 16
        %v4081 = vrot.slane %v4079, 1
        %v4082 = vsel %vm2000, %v4077, %v4081
        %v4083 = vshrl.u32 %v4026, 16
        %v4085 = vor.u32 %v4083, %v4081
        %v4087 = vshll.u32 %v4027, 16
        %v4089 = vrot.slane %v4087, 1
        %v4090 = vsel %vm2000, %v4085, %v4089
        %v4091 = vshrl.u32 %v4027, 16
        %v4093 = vor.u32 %v4091, %v4089
        %v4095 = vshll.u32 %v4028, 16
        %v4097 = vrot.slane %v4095, 1
        %v4098 = vsel %vm2000, %v4093, %v4097
        %v4099 = vshrl.u32 %v4028, 16
        %v4101 = vor.u32 %v4099, %v4097
        %v4103 = vshll.u32 %v4029, 16
        %v4105 = vrot.slane %v4103, 1
        %v4106 = vsel %vm2000, %v4101, %v4105
        %v4107 = vshrl.u32 %v4029, 16
        %v4109 = vor.u32 %v4107, %v4105
        %v4111 = vshll.u32 %v4030, 16
        %v4113 = vrot.slane %v4111, 1
        %v4114 = vsel %vm2000, %v4109, %v4113
        %v4115 = vshrl.u32 %v4030, 16
        %v4117 = vor.u32 %v4115, %v4113
        %v4119 = vshll.u32 %v4031, 16
        %v4121 = vrot.slane %v4119, 1
        %v4122 = vsel %vm2000, %v4117, %v4121
        %v4123 = vshrl.u32 %v4031, 16
        %v4125 = vor.u32 %v4123, %v4121
        %v4127 = vshll.u32 %v4032, 16
        %v4129 = vrot.slane %v4127, 1
        %v4130 = vsel %vm2000, %v4125, %v4129
        %v4131 = vshrl.u32 %v4032, 16
        %v4133 = vor.u32 %v4131, %v4129
        %v4135 = vshll.u32 %v4033, 16
        %v4137 = vrot.slane %v4135, 1
        %v4138 = vsel %vm2000, %v4133, %v4137
        %v4139 = vshrl.u32 %v4033, 16
        %v4141 = vor.u32 %v4139, %v4137
        %v4143 = vshll.u32 %v4034, 16
        %v4145 = vrot.slane %v4143, 1
        %v4146 = vsel %vm2000, %v4141, %v4145
        %v4147 = vshrl.u32 %v4034, 16
        %v4149 = vor.u32 %v4147, %v4145
        %v4151 = vshll.u32 %v4035, 16
        %v4153 = vrot.slane %v4151, 1
        %v4154 = vsel %vm2000, %v4149, %v4153
        %v4155 = vshrl.u32 %v4035, 16
        %v4157 = vor.u32 %v4155, %v4153
        %v4159 = vshll.u32 %v4036, 16
        %v4161 = vrot.slane %v4159, 1
        %v4162 = vsel %vm2000, %v4157, %v4161
        %v4163 = vshrl.u32 %v4036, 16
        %v4165 = vor.u32 %v4163, %v4161
        %v4167 = vshll.u32 %v4037, 16
        %v4169 = vrot.slane %v4167, 1
        %v4170 = vsel %vm2000, %v4165, %v4169
        %v4171 = vshrl.u32 %v4037, 16
        %v4173 = vor.u32 %v4171, %v4169
        %v4175 = vshll.u32 %v4038, 16
        %v4177 = vrot.slane %v4175, 1
        %v4178 = vsel %vm2000, %v4173, %v4177
        %v4179 = vshrl.u32 %v4038, 16
        %v4181 = vor.u32 %v4179, %v4177
        %v4183 = vshll.u32 %v4039, 16
        %v4185 = vrot.slane %v4183, 1
        %v4186 = vsel %vm2000, %v4181, %v4185
        %v4187 = vshrl.u32 %v4039, 16
        %v4189 = vor.u32 %v4187, %v4185
        %v4191 = vshll.u32 %v4040, 16
        %v4193 = vrot.slane %v4191, 1
        %v4194 = vsel %vm2000, %v4189, %v4193
        %v4195 = vshrl.u32 %v4040, 16
        %v4197 = vor.u32 %v4195, %v4193
        %v4199 = vshll.u32 %v4041, 16
        %v4201 = vrot.slane %v4199, 1
        %v4202 = vsel %vm2000, %v4197, %v4201
        %v4203 = vshrl.u32 %v4041, 16
        %v4205 = vor.u32 %v4203, %v4201
        %v4207 = vshll.u32 %v4042, 16
        %v4209 = vrot.slane %v4207, 1
        %v4210 = vsel %vm2000, %v4205, %v4209
        %v4211 = vshrl.u32 %v4042, 16
        %v4213 = vor.u32 %v4211, %v4209
        %v4215 = vshll.u32 %v4043, 16
        %v4217 = vrot.slane %v4215, 1
        %v4218 = vsel %vm2000, %v4213, %v4217
        %v4219 = vshrl.u32 %v4043, 16
        %v4221 = vor.u32 %v4219, %v4217
        %v4223 = vshll.u32 %v4044, 16
        %v4225 = vrot.slane %v4223, 1
        %v4226 = vsel %vm2000, %v4221, %v4225
        %v4227 = vshrl.u32 %v4044, 16
        %v4229 = vor.u32 %v4227, %v4225
        %v4231 = vshll.u32 %v4045, 16
        %v4233 = vrot.slane %v4231, 1
        %v4234 = vsel %vm2000, %v4229, %v4233
        %v4235 = vshrl.u32 %v4045, 16
        %v4237 = vor.u32 %v4235, %v4233
        %v4239 = vshll.u32 %v4046, 16
        %v4241 = vrot.slane %v4239, 1
        %v4242 = vsel %vm2000, %v4237, %v4241
        %4243 = vrot.lane.b32.xlu0 %v4058, 96
        %v4244 = vpop.permute.xlu0 %4243
        %4245 = vrot.lane.b32.xlu0 %v4066, 96
        %v4246 = vpop.permute.xlu0 %4245
        %4247 = vrot.lane.b32.xlu0 %v4074, 96
        %v4248 = vpop.permute.xlu0 %4247
        %4249 = vrot.lane.b32.xlu0 %v4082, 96
        %v4250 = vpop.permute.xlu0 %4249
        %4251 = vrot.lane.b32.xlu0 %v4090, 96
        %v4252 = vpop.permute.xlu0 %4251
        %4253 = vrot.lane.b32.xlu0 %v4098, 96
        %v4254 = vpop.permute.xlu0 %4253
        %4255 = vrot.lane.b32.xlu0 %v4106, 96
        %v4256 = vpop.permute.xlu0 %4255
        %4257 = vrot.lane.b32.xlu0 %v4114, 96
        %v4258 = vpop.permute.xlu0 %4257
        %4259 = vrot.lane.b32.xlu0 %v4122, 96
        %v4260 = vpop.permute.xlu0 %4259
        %4261 = vrot.lane.b32.xlu0 %v4130, 96
        %v4262 = vpop.permute.xlu0 %4261
        %4263 = vrot.lane.b32.xlu0 %v4138, 96
        %v4264 = vpop.permute.xlu0 %4263
        %4265 = vrot.lane.b32.xlu0 %v4146, 96
        %v4266 = vpop.permute.xlu0 %4265
        %4267 = vrot.lane.b32.xlu0 %v4154, 96
        %v4268 = vpop.permute.xlu0 %4267
        %4269 = vrot.lane.b32.xlu0 %v4162, 96
        %v4270 = vpop.permute.xlu0 %4269
        %4271 = vrot.lane.b32.xlu0 %v4170, 96
        %v4272 = vpop.permute.xlu0 %4271
        %4273 = vrot.lane.b32.xlu0 %v4178, 96
        %v4274 = vpop.permute.xlu0 %4273
        %4275 = vrot.lane.b32.xlu0 %v4186, 96
        %v4276 = vpop.permute.xlu0 %4275
        %4277 = vrot.lane.b32.xlu0 %v4194, 96
        %v4278 = vpop.permute.xlu0 %4277
        %4279 = vrot.lane.b32.xlu0 %v4202, 96
        %v4280 = vpop.permute.xlu0 %4279
        %4281 = vrot.lane.b32.xlu0 %v4210, 96
        %v4282 = vpop.permute.xlu0 %4281
        %4283 = vrot.lane.b32.xlu0 %v4218, 96
        %v4284 = vpop.permute.xlu0 %4283
        %4285 = vrot.lane.b32.xlu0 %v4226, 96
        %v4286 = vpop.permute.xlu0 %4285
        %4287 = vrot.lane.b32.xlu0 %v4234, 96
        %v4288 = vpop.permute.xlu0 %4287
        %4289 = vrot.lane.b32.xlu0 %v4242, 96
        %v4290 = vpop.permute.xlu0 %4289
        %4315 = vst.msk [vmem:[#allocation3 + $0x8] sm:$0xff] %vm2853, %v4244
        %4316 = vst.msk [vmem:[#allocation3 + $0x20] sm:$0xff] %vm2853, %v4246
        %4317 = vst.msk [vmem:[#allocation3 + $0x38] sm:$0xff] %vm2853, %v4248
        %4318 = vst.msk [vmem:[#allocation3 + $0x50] sm:$0xff] %vm2853, %v4250
        %4319 = vst.msk [vmem:[#allocation3 + $0x68] sm:$0xff] %vm2853, %v4252
        %4320 = vst.msk [vmem:[#allocation3 + $0x80] sm:$0xff] %vm2853, %v4254
        %4321 = vst.msk [vmem:[#allocation3 + $0x98] sm:$0xff] %vm2853, %v4256
        %4322 = vst.msk [vmem:[#allocation3 + $0xb0] sm:$0xff] %vm2853, %v4258
        %4323 = vst.msk [vmem:[#allocation3 + $0xc8] sm:$0xff] %vm2853, %v4260
        %4324 = vst.msk [vmem:[#allocation3 + $0xe0] sm:$0xff] %vm2853, %v4262
        %4325 = vst.msk [vmem:[#allocation3 + $0xf8] sm:$0xff] %vm2853, %v4264
        %4326 = vst.msk [vmem:[#allocation3 + $0x110] sm:$0xff] %vm2853, %v4266
        %4327 = vst.msk [vmem:[#allocation3 + $0x128] sm:$0xff] %vm2853, %v4268
        %4328 = vst.msk [vmem:[#allocation3 + $0x140] sm:$0xff] %vm2853, %v4270
        %4329 = vst.msk [vmem:[#allocation3 + $0x158] sm:$0xff] %vm2853, %v4272
        %4330 = vst.msk [vmem:[#allocation3 + $0x170] sm:$0xff] %vm2853, %v4274
        %4331 = vst.msk [vmem:[#allocation3 + $0x188] sm:$0xff] %vm2853, %v4276
        %4332 = vst.msk [vmem:[#allocation3 + $0x1a0] sm:$0xff] %vm2853, %v4278
        %4333 = vst.msk [vmem:[#allocation3 + $0x1b8] sm:$0xff] %vm2853, %v4280
        %4334 = vst.msk [vmem:[#allocation3 + $0x1d0] sm:$0xff] %vm2853, %v4282
        %4335 = vst.msk [vmem:[#allocation3 + $0x1e8] sm:$0xff] %vm2853, %v4284
        %4336 = vst.msk [vmem:[#allocation3 + $0x200] sm:$0xff] %vm2853, %v4286
        %4337 = vst.msk [vmem:[#allocation3 + $0x218] sm:$0xff] %vm2853, %v4288
        %4338 = vst.msk [vmem:[#allocation3 + $0x230] sm:$0xff] %vm2853, %v4290
        %v4339 = vld [vmem:[#allocation2 + $0x18] sm:$0xe]
        %v4340 = vld [vmem:[#allocation2 + $0x1c] sm:$0xf]
        %v4341 = vld [vmem:[#allocation2 + $0x20] sm:$0xf]
        %v4342 = vld [vmem:[#allocation2 + $0x24] sm:$0xf]
        %v4343 = vld [vmem:[#allocation2 + $0x28] sm:$0xf]
        %v4344 = vld [vmem:[#allocation2 + $0x2c] sm:$0xf]
        %v4345 = vld [vmem:[#allocation2 + $0x30] sm:$0xf]
        %v4346 = vld [vmem:[#allocation2 + $0x34] sm:$0xf]
        %v4347 = vld [vmem:[#allocation2 + $0x38] sm:$0xf]
        %v4348 = vld [vmem:[#allocation2 + $0x3c] sm:$0xf]
        %v4349 = vld [vmem:[#allocation2 + $0x40] sm:$0xf]
        %v4350 = vld [vmem:[#allocation2 + $0x44] sm:$0xf]
        %v4351 = vld [vmem:[#allocation2 + $0x48] sm:$0xf]
        %v4352 = vld [vmem:[#allocation2 + $0x4c] sm:$0xf]
        %v4353 = vld [vmem:[#allocation2 + $0x50] sm:$0xf]
        %v4354 = vld [vmem:[#allocation2 + $0x54] sm:$0xf]
        %v4355 = vld [vmem:[#allocation2 + $0x58] sm:$0xf]
        %v4356 = vld [vmem:[#allocation2 + $0x5c] sm:$0xf]
        %v4357 = vld [vmem:[#allocation2 + $0x60] sm:$0xf]
        %v4358 = vld [vmem:[#allocation2 + $0x64] sm:$0xf]
        %v4359 = vld [vmem:[#allocation2 + $0x68] sm:$0xf]
        %v4360 = vld [vmem:[#allocation2 + $0x6c] sm:$0xf]
        %v4361 = vld [vmem:[#allocation2 + $0x70] sm:$0xf]
        %v4362 = vld [vmem:[#allocation2 + $0x74] sm:$0xf]
        %v4363 = vld [vmem:[#allocation2 + $0x78] sm:$0xf]
        %v4364 = vld [vmem:[#allocation2 + $0x7c] sm:$0xf]
        %v4365 = vld [vmem:[#allocation2 + $0x80] sm:$0xf]
        %v4366 = vld [vmem:[#allocation2 + $0x84] sm:$0xf]
        %v4367 = vld [vmem:[#allocation2 + $0x88] sm:$0xf]
        %v4368 = vld [vmem:[#allocation2 + $0x8c] sm:$0xf]
        %v4369 = vld [vmem:[#allocation2 + $0x90] sm:$0xf]
        %v4370 = vld [vmem:[#allocation2 + $0x94] sm:$0xf]
        %v4371 = vld [vmem:[#allocation2 + $0x98] sm:$0xf]
        %v4372 = vld [vmem:[#allocation2 + $0x9c] sm:$0xf]
        %v4373 = vld [vmem:[#allocation2 + $0xa0] sm:$0xf]
        %v4374 = vld [vmem:[#allocation2 + $0xa4] sm:$0xf]
        %v4375 = vld [vmem:[#allocation2 + $0xa8] sm:$0xf]
        %v4376 = vld [vmem:[#allocation2 + $0xac] sm:$0xf]
        %v4377 = vld [vmem:[#allocation2 + $0xb0] sm:$0xf]
        %v4378 = vld [vmem:[#allocation2 + $0xb4] sm:$0xf]
        %v4379 = vld [vmem:[#allocation2 + $0xb8] sm:$0xf]
        %v4380 = vld [vmem:[#allocation2 + $0xbc] sm:$0xf]
        %v4381 = vld [vmem:[#allocation2 + $0xc0] sm:$0xf]
        %v4382 = vld [vmem:[#allocation2 + $0xc4] sm:$0xf]
        %v4383 = vld [vmem:[#allocation2 + $0xc8] sm:$0xf]
        %v4384 = vld [vmem:[#allocation2 + $0xcc] sm:$0xf]
        %v4385 = vld [vmem:[#allocation2 + $0xd0] sm:$0xf]
        %v4386 = vld [vmem:[#allocation2 + $0xd4] sm:$0xf]
        %v4387 = vld [vmem:[#allocation2 + $0xd8] sm:$0x1]
        %v4437 = vunpack.c.l.b16 %v4339
        %v4438 = vunpack.c.l.b16 %v4340
        %v4439 = vunpack.c.l.b16 %v4341
        %v4440 = vunpack.c.l.b16 %v4342
        %v4441 = vunpack.c.l.b16 %v4343
        %v4442 = vunpack.c.l.b16 %v4344
        %v4443 = vunpack.c.l.b16 %v4345
        %v4444 = vunpack.c.l.b16 %v4346
        %v4445 = vunpack.c.l.b16 %v4347
        %v4446 = vunpack.c.l.b16 %v4348
        %v4447 = vunpack.c.l.b16 %v4349
        %v4448 = vunpack.c.l.b16 %v4350
        %v4449 = vunpack.c.l.b16 %v4351
        %v4450 = vunpack.c.l.b16 %v4352
        %v4451 = vunpack.c.l.b16 %v4353
        %v4452 = vunpack.c.l.b16 %v4354
        %v4453 = vunpack.c.l.b16 %v4355
        %v4454 = vunpack.c.l.b16 %v4356
        %v4455 = vunpack.c.l.b16 %v4357
        %v4456 = vunpack.c.l.b16 %v4358
        %v4457 = vunpack.c.l.b16 %v4359
        %v4458 = vunpack.c.l.b16 %v4360
        %v4459 = vunpack.c.l.b16 %v4361
        %v4460 = vunpack.c.l.b16 %v4362
        %v4461 = vunpack.c.l.b16 %v4363
        %v4462 = vunpack.c.l.b16 %v4364
        %v4463 = vunpack.c.l.b16 %v4365
        %v4464 = vunpack.c.l.b16 %v4366
        %v4465 = vunpack.c.l.b16 %v4367
        %v4466 = vunpack.c.l.b16 %v4368
        %v4467 = vunpack.c.l.b16 %v4369
        %v4468 = vunpack.c.l.b16 %v4370
        %v4469 = vunpack.c.l.b16 %v4371
        %v4470 = vunpack.c.l.b16 %v4372
        %v4471 = vunpack.c.l.b16 %v4373
        %v4472 = vunpack.c.l.b16 %v4374
        %v4473 = vunpack.c.l.b16 %v4375
        %v4474 = vunpack.c.l.b16 %v4376
        %v4475 = vunpack.c.l.b16 %v4377
        %v4476 = vunpack.c.l.b16 %v4378
        %v4477 = vunpack.c.l.b16 %v4379
        %v4478 = vunpack.c.l.b16 %v4380
        %v4479 = vunpack.c.l.b16 %v4381
        %v4480 = vunpack.c.l.b16 %v4382
        %v4481 = vunpack.c.l.b16 %v4383
        %v4482 = vunpack.c.l.b16 %v4384
        %v4483 = vunpack.c.l.b16 %v4385
        %v4484 = vunpack.c.l.b16 %v4386
        %v4485 = vunpack.c.l.b16 %v4387
        %v4486 = vpack.c.b16 %v4438, %v4437
        %v4487 = vpack.c.b16 %v4440, %v4439
        %v4488 = vpack.c.b16 %v4442, %v4441
        %v4489 = vpack.c.b16 %v4444, %v4443
        %v4490 = vpack.c.b16 %v4446, %v4445
        %v4491 = vpack.c.b16 %v4448, %v4447
        %v4492 = vpack.c.b16 %v4450, %v4449
        %v4493 = vpack.c.b16 %v4452, %v4451
        %v4494 = vpack.c.b16 %v4454, %v4453
        %v4495 = vpack.c.b16 %v4456, %v4455
        %v4496 = vpack.c.b16 %v4458, %v4457
        %v4497 = vpack.c.b16 %v4460, %v4459
        %v4498 = vpack.c.b16 %v4462, %v4461
        %v4499 = vpack.c.b16 %v4464, %v4463
        %v4500 = vpack.c.b16 %v4466, %v4465
        %v4501 = vpack.c.b16 %v4468, %v4467
        %v4502 = vpack.c.b16 %v4470, %v4469
        %v4503 = vpack.c.b16 %v4472, %v4471
        %v4504 = vpack.c.b16 %v4474, %v4473
        %v4505 = vpack.c.b16 %v4476, %v4475
        %v4506 = vpack.c.b16 %v4478, %v4477
        %v4507 = vpack.c.b16 %v4480, %v4479
        %v4508 = vpack.c.b16 %v4482, %v4481
        %v4509 = vpack.c.b16 %v4484, %v4483
        %v4510 = vpack.c.b16 %v4485, %v4485
        %v4511 = vrot.slane %v4486, 1
        %v4512 = vrot.slane %v4487, 1
        %v4513 = vsel %vm2466, %v4511, %v4512
        %v4514 = vrot.slane %v4488, 1
        %v4515 = vsel %vm2466, %v4512, %v4514
        %v4516 = vrot.slane %v4489, 1
        %v4517 = vsel %vm2466, %v4514, %v4516
        %v4518 = vrot.slane %v4490, 1
        %v4519 = vsel %vm2466, %v4516, %v4518
        %v4520 = vrot.slane %v4491, 1
        %v4521 = vsel %vm2466, %v4518, %v4520
        %v4522 = vrot.slane %v4492, 1
        %v4523 = vsel %vm2466, %v4520, %v4522
        %v4524 = vrot.slane %v4493, 1
        %v4525 = vsel %vm2466, %v4522, %v4524
        %v4526 = vrot.slane %v4494, 1
        %v4527 = vsel %vm2466, %v4524, %v4526
        %v4528 = vrot.slane %v4495, 1
        %v4529 = vsel %vm2466, %v4526, %v4528
        %v4530 = vrot.slane %v4496, 1
        %v4531 = vsel %vm2466, %v4528, %v4530
        %v4532 = vrot.slane %v4497, 1
        %v4533 = vsel %vm2466, %v4530, %v4532
        %v4534 = vrot.slane %v4498, 1
        %v4535 = vsel %vm2466, %v4532, %v4534
        %v4536 = vrot.slane %v4499, 1
        %v4537 = vsel %vm2466, %v4534, %v4536
        %v4538 = vrot.slane %v4500, 1
        %v4539 = vsel %vm2466, %v4536, %v4538
        %v4540 = vrot.slane %v4501, 1
        %v4541 = vsel %vm2466, %v4538, %v4540
        %v4542 = vrot.slane %v4502, 1
        %v4543 = vsel %vm2466, %v4540, %v4542
        %v4544 = vrot.slane %v4503, 1
        %v4545 = vsel %vm2466, %v4542, %v4544
        %v4546 = vrot.slane %v4504, 1
        %v4547 = vsel %vm2466, %v4544, %v4546
        %v4548 = vrot.slane %v4505, 1
        %v4549 = vsel %vm2466, %v4546, %v4548
        %v4550 = vrot.slane %v4506, 1
        %v4551 = vsel %vm2466, %v4548, %v4550
        %v4552 = vrot.slane %v4507, 1
        %v4553 = vsel %vm2466, %v4550, %v4552
        %v4554 = vrot.slane %v4508, 1
        %v4555 = vsel %vm2466, %v4552, %v4554
        %v4556 = vrot.slane %v4509, 1
        %v4557 = vsel %vm2466, %v4554, %v4556
        %v4558 = vrot.slane %v4510, 1
        %v4559 = vsel %vm2466, %v4556, %v4558
        %4584 = vst.msk [vmem:[#allocation3 + $0x10] sm:$0xff] %vm1803, %v4513
        %4585 = vst.msk [vmem:[#allocation3 + $0x28] sm:$0xff] %vm1803, %v4515
        %4586 = vst.msk [vmem:[#allocation3 + $0x40] sm:$0xff] %vm1803, %v4517
        %4587 = vst.msk [vmem:[#allocation3 + $0x58] sm:$0xff] %vm1803, %v4519
        %4588 = vst.msk [vmem:[#allocation3 + $0x70] sm:$0xff] %vm1803, %v4521
        %4589 = vst.msk [vmem:[#allocation3 + $0x88] sm:$0xff] %vm1803, %v4523
        %4590 = vst.msk [vmem:[#allocation3 + $0xa0] sm:$0xff] %vm1803, %v4525
        %4591 = vst.msk [vmem:[#allocation3 + $0xb8] sm:$0xff] %vm1803, %v4527
        %4592 = vst.msk [vmem:[#allocation3 + $0xd0] sm:$0xff] %vm1803, %v4529
        %4593 = vst.msk [vmem:[#allocation3 + $0xe8] sm:$0xff] %vm1803, %v4531
        %4594 = vst.msk [vmem:[#allocation3 + $0x100] sm:$0xff] %vm1803, %v4533
        %4595 = vst.msk [vmem:[#allocation3 + $0x118] sm:$0xff] %vm1803, %v4535
        %4596 = vst.msk [vmem:[#allocation3 + $0x130] sm:$0xff] %vm1803, %v4537
        %4597 = vst.msk [vmem:[#allocation3 + $0x148] sm:$0xff] %vm1803, %v4539
        %4598 = vst.msk [vmem:[#allocation3 + $0x160] sm:$0xff] %vm1803, %v4541
        %4599 = vst.msk [vmem:[#allocation3 + $0x178] sm:$0xff] %vm1803, %v4543
        %4600 = vst.msk [vmem:[#allocation3 + $0x190] sm:$0xff] %vm1803, %v4545
        %4601 = vst.msk [vmem:[#allocation3 + $0x1a8] sm:$0xff] %vm1803, %v4547
        %4602 = vst.msk [vmem:[#allocation3 + $0x1c0] sm:$0xff] %vm1803, %v4549
        %4603 = vst.msk [vmem:[#allocation3 + $0x1d8] sm:$0xff] %vm1803, %v4551
        %4604 = vst.msk [vmem:[#allocation3 + $0x1f0] sm:$0xff] %vm1803, %v4553
        %4605 = vst.msk [vmem:[#allocation3 + $0x208] sm:$0xff] %vm1803, %v4555
        %4606 = vst.msk [vmem:[#allocation3 + $0x220] sm:$0xff] %vm1803, %v4557
        %4607 = vst.msk [vmem:[#allocation3 + $0x238] sm:$0xff] %vm1803, %v4559
        %v4608 = vld [vmem:[#allocation3] sm:$0xff]
        %v4609 = vld [vmem:[#allocation3 + $0x8] sm:$0xff]
        %v4610 = vld [vmem:[#allocation3 + $0x10] sm:$0xff]
        %v4611 = vld [vmem:[#allocation3 + $0x18] sm:$0xff]
        %v4612 = vld [vmem:[#allocation3 + $0x20] sm:$0xff]
        %v4613 = vld [vmem:[#allocation3 + $0x28] sm:$0xff]
        %v4614 = vld [vmem:[#allocation3 + $0x30] sm:$0xff]
        %v4615 = vld [vmem:[#allocation3 + $0x38] sm:$0xff]
        %v4616 = vld [vmem:[#allocation3 + $0x40] sm:$0xff]
        %v4617 = vld [vmem:[#allocation3 + $0x48] sm:$0xff]
        %v4618 = vld [vmem:[#allocation3 + $0x50] sm:$0xff]
        %v4619 = vld [vmem:[#allocation3 + $0x58] sm:$0xff]
        %v4620 = vld [vmem:[#allocation3 + $0x60] sm:$0xff]
        %v4621 = vld [vmem:[#allocation3 + $0x68] sm:$0xff]
        %v4622 = vld [vmem:[#allocation3 + $0x70] sm:$0xff]
        %v4623 = vld [vmem:[#allocation3 + $0x78] sm:$0xff]
        %v4624 = vld [vmem:[#allocation3 + $0x80] sm:$0xff]
        %v4625 = vld [vmem:[#allocation3 + $0x88] sm:$0xff]
        %v4626 = vld [vmem:[#allocation3 + $0x90] sm:$0xff]
        %v4627 = vld [vmem:[#allocation3 + $0x98] sm:$0xff]
        %v4628 = vld [vmem:[#allocation3 + $0xa0] sm:$0xff]
        %v4629 = vld [vmem:[#allocation3 + $0xa8] sm:$0xff]
        %v4630 = vld [vmem:[#allocation3 + $0xb0] sm:$0xff]
        %v4631 = vld [vmem:[#allocation3 + $0xb8] sm:$0xff]
        %v4632 = vld [vmem:[#allocation3 + $0xc0] sm:$0xff]
        %v4633 = vld [vmem:[#allocation3 + $0xc8] sm:$0xff]
        %v4634 = vld [vmem:[#allocation3 + $0xd0] sm:$0xff]
        %v4635 = vld [vmem:[#allocation3 + $0xd8] sm:$0xff]
        %v4636 = vld [vmem:[#allocation3 + $0xe0] sm:$0xff]
        %v4637 = vld [vmem:[#allocation3 + $0xe8] sm:$0xff]
        %v4638 = vld [vmem:[#allocation3 + $0xf0] sm:$0xff]
        %v4639 = vld [vmem:[#allocation3 + $0xf8] sm:$0xff]
        %v4640 = vld [vmem:[#allocation3 + $0x100] sm:$0xff]
        %v4641 = vld [vmem:[#allocation3 + $0x108] sm:$0xff]
        %v4642 = vld [vmem:[#allocation3 + $0x110] sm:$0xff]
        %v4643 = vld [vmem:[#allocation3 + $0x118] sm:$0xff]
        %v4644 = vld [vmem:[#allocation3 + $0x120] sm:$0xff]
        %v4645 = vld [vmem:[#allocation3 + $0x128] sm:$0xff]
        %v4646 = vld [vmem:[#allocation3 + $0x130] sm:$0xff]
        %v4647 = vld [vmem:[#allocation3 + $0x138] sm:$0xff]
        %v4648 = vld [vmem:[#allocation3 + $0x140] sm:$0xff]
        %v4649 = vld [vmem:[#allocation3 + $0x148] sm:$0xff]
        %v4650 = vld [vmem:[#allocation3 + $0x150] sm:$0xff]
        %v4651 = vld [vmem:[#allocation3 + $0x158] sm:$0xff]
        %v4652 = vld [vmem:[#allocation3 + $0x160] sm:$0xff]
        %v4653 = vld [vmem:[#allocation3 + $0x168] sm:$0xff]
        %v4654 = vld [vmem:[#allocation3 + $0x170] sm:$0xff]
        %v4655 = vld [vmem:[#allocation3 + $0x178] sm:$0xff]
        %v4656 = vld [vmem:[#allocation3 + $0x180] sm:$0xff]
        %v4657 = vld [vmem:[#allocation3 + $0x188] sm:$0xff]
        %v4658 = vld [vmem:[#allocation3 + $0x190] sm:$0xff]
        %v4659 = vld [vmem:[#allocation3 + $0x198] sm:$0xff]
        %v4660 = vld [vmem:[#allocation3 + $0x1a0] sm:$0xff]
        %v4661 = vld [vmem:[#allocation3 + $0x1a8] sm:$0xff]
        %v4662 = vld [vmem:[#allocation3 + $0x1b0] sm:$0xff]
        %v4663 = vld [vmem:[#allocation3 + $0x1b8] sm:$0xff]
        %v4664 = vld [vmem:[#allocation3 + $0x1c0] sm:$0xff]
        %v4665 = vld [vmem:[#allocation3 + $0x1c8] sm:$0xff]
        %v4666 = vld [vmem:[#allocation3 + $0x1d0] sm:$0xff]
        %v4667 = vld [vmem:[#allocation3 + $0x1d8] sm:$0xff]
        %v4668 = vld [vmem:[#allocation3 + $0x1e0] sm:$0xff]
        %v4669 = vld [vmem:[#allocation3 + $0x1e8] sm:$0xff]
        %v4670 = vld [vmem:[#allocation3 + $0x1f0] sm:$0xff]
        %v4671 = vld [vmem:[#allocation3 + $0x1f8] sm:$0xff]
        %v4672 = vld [vmem:[#allocation3 + $0x200] sm:$0xff]
        %v4673 = vld [vmem:[#allocation3 + $0x208] sm:$0xff]
        %v4674 = vld [vmem:[#allocation3 + $0x210] sm:$0xff]
        %v4675 = vld [vmem:[#allocation3 + $0x218] sm:$0xff]
        %v4676 = vld [vmem:[#allocation3 + $0x220] sm:$0xff]
        %v4677 = vld [vmem:[#allocation3 + $0x228] sm:$0xff]
        %v4678 = vld [vmem:[#allocation3 + $0x230] sm:$0xff]
        %v4679 = vld [vmem:[#allocation3 + $0x238] sm:$0xff]
        %v4680 = vld [vmem:[%s5] sm:$0xf]
        %v4681 = vld [vmem:[%s5 + $0x4] sm:$0xf]
        %v4682 = vld [vmem:[%s5 + $0x8] sm:$0xf]
        %v4683 = vld [vmem:[%s5 + $0xc] sm:$0xf]
        %v4684 = vld [vmem:[%s5 + $0x10] sm:$0xf]
        %v4685 = vld [vmem:[%s5 + $0x14] sm:$0xf]
        %v4686 = vld [vmem:[%s5 + $0x18] sm:$0xf]
        %v4687 = vld [vmem:[%s5 + $0x1c] sm:$0xf]
        %v4688 = vld [vmem:[%s5 + $0x20] sm:$0xf]
        %v4689 = vld [vmem:[%s5 + $0x24] sm:$0xf]
        %v4690 = vld [vmem:[%s5 + $0x28] sm:$0xf]
        %v4691 = vld [vmem:[%s5 + $0x2c] sm:$0xf]
        %v4692 = vld [vmem:[%s5 + $0x30] sm:$0xf]
        %v4693 = vld [vmem:[%s5 + $0x34] sm:$0xf]
        %v4694 = vld [vmem:[%s5 + $0x38] sm:$0xf]
        %v4695 = vld [vmem:[%s5 + $0x3c] sm:$0xf]
        %v4696 = vld [vmem:[%s5 + $0x40] sm:$0xf]
        %v4697 = vld [vmem:[%s5 + $0x44] sm:$0xf]
        %v4698 = vld [vmem:[%s5 + $0x48] sm:$0xf]
        %v4699 = vld [vmem:[%s5 + $0x4c] sm:$0xf]
        %v4700 = vld [vmem:[%s5 + $0x50] sm:$0xf]
        %v4701 = vld [vmem:[%s5 + $0x54] sm:$0xf]
        %v4702 = vld [vmem:[%s5 + $0x58] sm:$0xf]
        %v4703 = vld [vmem:[%s5 + $0x5c] sm:$0xf]
        %v4704 = vld [vmem:[%s5 + $0x60] sm:$0xf]
        %v4705 = vld [vmem:[%s5 + $0x64] sm:$0xf]
        %v4706 = vld [vmem:[%s5 + $0x68] sm:$0xf]
        %v4707 = vld [vmem:[%s5 + $0x6c] sm:$0xf]
        %v4708 = vld [vmem:[%s5 + $0x70] sm:$0xf]
        %v4709 = vld [vmem:[%s5 + $0x74] sm:$0xf]
        %v4710 = vld [vmem:[%s5 + $0x78] sm:$0xf]
        %v4711 = vld [vmem:[%s5 + $0x7c] sm:$0xf]
        %v4712 = vld [vmem:[%s5 + $0x80] sm:$0xf]
        %v4713 = vld [vmem:[%s5 + $0x84] sm:$0xf]
        %v4714 = vld [vmem:[%s5 + $0x88] sm:$0xf]
        %v4715 = vld [vmem:[%s5 + $0x8c] sm:$0xf]
        %v4752 = vunpack.c.l.b16 %v4680
        %v4753 = vunpack.c.l.b16 %v4681
        %v4754 = vunpack.c.l.b16 %v4682
        %v4755 = vunpack.c.l.b16 %v4683
        %v4756 = vunpack.c.l.b16 %v4684
        %v4757 = vunpack.c.l.b16 %v4685
        %v4758 = vunpack.c.l.b16 %v4686
        %v4759 = vunpack.c.l.b16 %v4687
        %v4760 = vunpack.c.l.b16 %v4688
        %v4761 = vunpack.c.l.b16 %v4689
        %v4762 = vunpack.c.l.b16 %v4690
        %v4763 = vunpack.c.l.b16 %v4691
        %v4764 = vunpack.c.l.b16 %v4692
        %v4765 = vunpack.c.l.b16 %v4693
        %v4766 = vunpack.c.l.b16 %v4694
        %v4767 = vunpack.c.l.b16 %v4695
        %v4768 = vunpack.c.l.b16 %v4696
        %v4769 = vunpack.c.l.b16 %v4697
        %v4770 = vunpack.c.l.b16 %v4698
        %v4771 = vunpack.c.l.b16 %v4699
        %v4772 = vunpack.c.l.b16 %v4700
        %v4773 = vunpack.c.l.b16 %v4701
        %v4774 = vunpack.c.l.b16 %v4702
        %v4775 = vunpack.c.l.b16 %v4703
        %v4776 = vunpack.c.l.b16 %v4704
        %v4777 = vunpack.c.l.b16 %v4705
        %v4778 = vunpack.c.l.b16 %v4706
        %v4779 = vunpack.c.l.b16 %v4707
        %v4780 = vunpack.c.l.b16 %v4708
        %v4781 = vunpack.c.l.b16 %v4709
        %v4782 = vunpack.c.l.b16 %v4710
        %v4783 = vunpack.c.l.b16 %v4711
        %v4784 = vunpack.c.l.b16 %v4712
        %v4785 = vunpack.c.l.b16 %v4713
        %v4786 = vunpack.c.l.b16 %v4714
        %v4787 = vunpack.c.l.b16 %v4715
        %v4788 = vpack.c.b16 %v4753, %v4752
        %v4789 = vpack.c.b16 %v4755, %v4754
        %v4790 = vpack.c.b16 %v4757, %v4756
        %v4791 = vpack.c.b16 %v4759, %v4758
        %v4792 = vpack.c.b16 %v4761, %v4760
        %v4793 = vpack.c.b16 %v4763, %v4762
        %v4794 = vpack.c.b16 %v4765, %v4764
        %v4795 = vpack.c.b16 %v4767, %v4766
        %v4796 = vpack.c.b16 %v4769, %v4768
        %v4797 = vpack.c.b16 %v4771, %v4770
        %v4798 = vpack.c.b16 %v4773, %v4772
        %v4799 = vpack.c.b16 %v4775, %v4774
        %v4800 = vpack.c.b16 %v4777, %v4776
        %v4801 = vpack.c.b16 %v4779, %v4778
        %v4802 = vpack.c.b16 %v4781, %v4780
        %v4803 = vpack.c.b16 %v4783, %v4782
        %v4804 = vpack.c.b16 %v4785, %v4784
        %v4805 = vpack.c.b16 %v4787, %v4786
        %v4825 = vsel %vm1803, %v4610, 0
        %v4828 = vsel %vm1803, %v4613, 0
        %v4831 = vsel %vm1803, %v4616, 0
        %v4834 = vsel %vm1803, %v4619, 0
        %v4837 = vsel %vm1803, %v4622, 0
        %v4840 = vsel %vm1803, %v4625, 0
        %v4843 = vsel %vm1803, %v4628, 0
        %v4846 = vsel %vm1803, %v4631, 0
        %v4849 = vsel %vm1803, %v4634, 0
        %v4852 = vsel %vm1803, %v4637, 0
        %v4855 = vsel %vm1803, %v4640, 0
        %v4858 = vsel %vm1803, %v4643, 0
        %v4861 = vsel %vm1803, %v4646, 0
        %v4864 = vsel %vm1803, %v4649, 0
        %v4867 = vsel %vm1803, %v4652, 0
        %v4870 = vsel %vm1803, %v4655, 0
        %v4873 = vsel %vm1803, %v4658, 0
        %v4876 = vsel %vm1803, %v4661, 0
        %v4879 = vsel %vm1803, %v4664, 0
        %v4882 = vsel %vm1803, %v4667, 0
        %v4885 = vsel %vm1803, %v4670, 0
        %v4888 = vsel %vm1803, %v4673, 0
        %v4891 = vsel %vm1803, %v4676, 0
        %v4894 = vsel %vm1803, %v4679, 0
        %4896 = vmatprep.subr.bf16.mxu0 0
        %4897 = vmatpush1.bf16.msra.mxu0 %v4788
        %4898 = vmatprep.subr.bf16.mxu0 0
        %4899 = vmatpush1.bf16.msra.mxu0 %v4789
        %4900 = vmatprep.subr.bf16.mxu0 0
        %4901 = vmatpush1.bf16.msra.mxu0 %v4790
        %4902 = vmatprep.subr.bf16.mxu0 0
        %4903 = vmatpush1.bf16.msra.mxu0 %v4791
        %4904 = vmatprep.subr.bf16.mxu0 0
        %4905 = vmatpush1.bf16.msra.mxu0 %v4792
        %4906 = vmatprep.subr.bf16.mxu0 0
        %4907 = vmatpush1.bf16.msra.mxu0 %v4793
        %4908 = vmatprep.subr.bf16.mxu0 0
        %4909 = vmatpush1.bf16.msra.mxu0 %v4794
        %4910 = vmatprep.subr.bf16.mxu0 0
        %4911 = vmatpush1.bf16.msra.mxu0 %v4795
        %4912 = vmatprep.subr.bf16.mxu0 0
        %4913 = vmatpush1.bf16.msra.mxu0 %v4796
        %4914 = vmatprep.subr.bf16.mxu0 0
        %4915 = vmatpush1.bf16.msra.mxu0 %v4797
        %4916 = vmatprep.subr.bf16.mxu0 0
        %4917 = vmatpush1.bf16.msra.mxu0 %v4798
        %4918 = vmatprep.subr.bf16.mxu0 0
        %4919 = vmatpush1.bf16.msra.mxu0 %v4799
        %4920 = vmatprep.subr.bf16.mxu0 0
        %4921 = vmatpush1.bf16.msra.mxu0 %v4800
        %4922 = vmatprep.subr.bf16.mxu0 0
        %4923 = vmatpush1.bf16.msra.mxu0 %v4801
        %4924 = vmatprep.subr.bf16.mxu0 0
        %4925 = vmatpush1.bf16.msra.mxu0 %v4802
        %4926 = vmatprep.subr.bf16.mxu0 0
        %4927 = vmatpush1.bf16.msra.mxu0 %v4803
        %4928 = vmatprep.mubr.bf16.mxu0 %v4609
        %4929 = vmatmul.mubr.bf16.gmra.mrb[0].mxu0 %v4608
        %v4930 = vpop.f32.mrb[0].mxu0
        %v4931 = vadd.f32 0.0, %v4930
        %v4932 = vpop.f32.mrb[0].mxu0
        %v4933 = vpop.f32.mrb[0].mxu0
        %v4934 = vadd.f32 0.0, %v4933
        %v4935 = vpop.f32.mrb[0].mxu0
        %4936 = vmatprep.mubr.bf16.mxu0 %v4612
        %4937 = vmatmul.mubr.bf16.gmra.mrb[0].mxu0 %v4611
        %v4938 = vpop.f32.mrb[0].mxu0
        %v4939 = vadd.f32 0.0, %v4938
        %v4940 = vpop.f32.mrb[0].mxu0
        %v4941 = vpop.f32.mrb[0].mxu0
        %v4942 = vadd.f32 0.0, %v4941
        %v4943 = vpop.f32.mrb[0].mxu0
        %4944 = vmatprep.mubr.bf16.mxu0 %v4615
        %4945 = vmatmul.mubr.bf16.gmra.mrb[0].mxu0 %v4614
        %v4946 = vpop.f32.mrb[0].mxu0
        %v4947 = vadd.f32 0.0, %v4946
        %v4948 = vpop.f32.mrb[0].mxu0
        %v4949 = vpop.f32.mrb[0].mxu0
        %v4950 = vadd.f32 0.0, %v4949
        %v4951 = vpop.f32.mrb[0].mxu0
        %4952 = vmatprep.mubr.bf16.mxu0 %v4618
        %4953 = vmatmul.mubr.bf16.gmra.mrb[0].mxu0 %v4617
        %v4954 = vpop.f32.mrb[0].mxu0
        %v4955 = vadd.f32 0.0, %v4954
        %v4956 = vpop.f32.mrb[0].mxu0
        %v4957 = vpop.f32.mrb[0].mxu0
        %v4958 = vadd.f32 0.0, %v4957
        %v4959 = vpop.f32.mrb[0].mxu0
        %4960 = vmatprep.mubr.bf16.mxu0 %v4621
        %4961 = vmatmul.mubr.bf16.gmra.mrb[0].mxu0 %v4620
        %v4962 = vpop.f32.mrb[0].mxu0
        %v4963 = vadd.f32 0.0, %v4962
        %v4964 = vpop.f32.mrb[0].mxu0
        %v4965 = vpop.f32.mrb[0].mxu0
        %v4966 = vadd.f32 0.0, %v4965
        %v4967 = vpop.f32.mrb[0].mxu0
        %4968 = vmatprep.mubr.bf16.mxu0 %v4624
        %4969 = vmatmul.mubr.bf16.gmra.mrb[0].mxu0 %v4623
        %v4970 = vpop.f32.mrb[0].mxu0
        %v4971 = vadd.f32 0.0, %v4970
        %v4972 = vpop.f32.mrb[0].mxu0
        %v4973 = vpop.f32.mrb[0].mxu0
        %v4974 = vadd.f32 0.0, %v4973
        %v4975 = vpop.f32.mrb[0].mxu0
        %4976 = vmatprep.mubr.bf16.mxu0 %v4627
        %4977 = vmatmul.mubr.bf16.gmra.mrb[0].mxu0 %v4626
        %v4978 = vpop.f32.mrb[0].mxu0
        %v4979 = vadd.f32 0.0, %v4978
        %v4980 = vpop.f32.mrb[0].mxu0
        %v4981 = vpop.f32.mrb[0].mxu0
        %v4982 = vadd.f32 0.0, %v4981
        %v4983 = vpop.f32.mrb[0].mxu0
        %4984 = vmatprep.mubr.bf16.mxu0 %v4630
        %4985 = vmatmul.mubr.bf16.gmra.mrb[0].mxu0 %v4629
        %v4986 = vpop.f32.mrb[0].mxu0
        %v4987 = vadd.f32 0.0, %v4986
        %v4988 = vpop.f32.mrb[0].mxu0
        %v4989 = vpop.f32.mrb[0].mxu0
        %v4990 = vadd.f32 0.0, %v4989
        %v4991 = vpop.f32.mrb[0].mxu0
        %4992 = vmatprep.mubr.bf16.mxu0 %v4633
        %4993 = vmatmul.mubr.bf16.gmra.mrb[0].mxu0 %v4632
        %v4994 = vpop.f32.mrb[0].mxu0
        %v4995 = vadd.f32 0.0, %v4994
        %v4996 = vpop.f32.mrb[0].mxu0
        %v4997 = vpop.f32.mrb[0].mxu0
        %v4998 = vadd.f32 0.0, %v4997
        %v4999 = vpop.f32.mrb[0].mxu0
        %5000 = vmatprep.mubr.bf16.mxu0 %v4636
        %5001 = vmatmul.mubr.bf16.gmra.mrb[0].mxu0 %v4635
        %v5002 = vpop.f32.mrb[0].mxu0
        %v5003 = vadd.f32 0.0, %v5002
        %v5004 = vpop.f32.mrb[0].mxu0
        %v5005 = vpop.f32.mrb[0].mxu0
        %v5006 = vadd.f32 0.0, %v5005
        %v5007 = vpop.f32.mrb[0].mxu0
        %5008 = vmatprep.mubr.bf16.mxu0 %v4639
        %5009 = vmatmul.mubr.bf16.gmra.mrb[0].mxu0 %v4638
        %v5010 = vpop.f32.mrb[0].mxu0
        %v5011 = vadd.f32 0.0, %v5010
        %v5012 = vpop.f32.mrb[0].mxu0
        %v5013 = vpop.f32.mrb[0].mxu0
        %v5014 = vadd.f32 0.0, %v5013
        %v5015 = vpop.f32.mrb[0].mxu0
        %5016 = vmatprep.mubr.bf16.mxu0 %v4642
        %5017 = vmatmul.mubr.bf16.gmra.mrb[0].mxu0 %v4641
        %v5018 = vpop.f32.mrb[0].mxu0
        %v5019 = vadd.f32 0.0, %v5018
        %v5020 = vpop.f32.mrb[0].mxu0
        %v5021 = vpop.f32.mrb[0].mxu0
        %v5022 = vadd.f32 0.0, %v5021
        %v5023 = vpop.f32.mrb[0].mxu0
        %5024 = vmatprep.mubr.bf16.mxu0 %v4645
        %5025 = vmatmul.mubr.bf16.gmra.mrb[0].mxu0 %v4644
        %v5026 = vpop.f32.mrb[0].mxu0
        %v5027 = vadd.f32 0.0, %v5026
        %v5028 = vpop.f32.mrb[0].mxu0
        %v5029 = vpop.f32.mrb[0].mxu0
        %v5030 = vadd.f32 0.0, %v5029
        %v5031 = vpop.f32.mrb[0].mxu0
        %5032 = vmatprep.mubr.bf16.mxu0 %v4648
        %5033 = vmatmul.mubr.bf16.gmra.mrb[0].mxu0 %v4647
        %v5034 = vpop.f32.mrb[0].mxu0
        %v5035 = vadd.f32 0.0, %v5034
        %v5036 = vpop.f32.mrb[0].mxu0
        %v5037 = vpop.f32.mrb[0].mxu0
        %v5038 = vadd.f32 0.0, %v5037
        %v5039 = vpop.f32.mrb[0].mxu0
        %5040 = vmatprep.mubr.bf16.mxu0 %v4651
        %5041 = vmatmul.mubr.bf16.gmra.mrb[0].mxu0 %v4650
        %v5042 = vpop.f32.mrb[0].mxu0
        %v5043 = vadd.f32 0.0, %v5042
        %v5044 = vpop.f32.mrb[0].mxu0
        %v5045 = vpop.f32.mrb[0].mxu0
        %v5046 = vadd.f32 0.0, %v5045
        %v5047 = vpop.f32.mrb[0].mxu0
        %5048 = vmatprep.mubr.bf16.mxu0 %v4654
        %5049 = vmatmul.mubr.bf16.gmra.mrb[0].mxu0 %v4653
        %v5050 = vpop.f32.mrb[0].mxu0
        %v5051 = vadd.f32 0.0, %v5050
        %v5052 = vpop.f32.mrb[0].mxu0
        %v5053 = vpop.f32.mrb[0].mxu0
        %v5054 = vadd.f32 0.0, %v5053
        %v5055 = vpop.f32.mrb[0].mxu0
        %5056 = vmatprep.mubr.bf16.mxu0 %v4657
        %5057 = vmatmul.mubr.bf16.gmra.mrb[0].mxu0 %v4656
        %v5058 = vpop.f32.mrb[0].mxu0
        %v5059 = vadd.f32 0.0, %v5058
        %v5060 = vpop.f32.mrb[0].mxu0
        %v5061 = vpop.f32.mrb[0].mxu0
        %v5062 = vadd.f32 0.0, %v5061
        %v5063 = vpop.f32.mrb[0].mxu0
        %5064 = vmatprep.mubr.bf16.mxu0 %v4660
        %5065 = vmatmul.mubr.bf16.gmra.mrb[0].mxu0 %v4659
        %v5066 = vpop.f32.mrb[0].mxu0
        %v5067 = vadd.f32 0.0, %v5066
        %v5068 = vpop.f32.mrb[0].mxu0
        %v5069 = vpop.f32.mrb[0].mxu0
        %v5070 = vadd.f32 0.0, %v5069
        %v5071 = vpop.f32.mrb[0].mxu0
        %5072 = vmatprep.mubr.bf16.mxu0 %v4663
        %5073 = vmatmul.mubr.bf16.gmra.mrb[0].mxu0 %v4662
        %v5074 = vpop.f32.mrb[0].mxu0
        %v5075 = vadd.f32 0.0, %v5074
        %v5076 = vpop.f32.mrb[0].mxu0
        %v5077 = vpop.f32.mrb[0].mxu0
        %v5078 = vadd.f32 0.0, %v5077
        %v5079 = vpop.f32.mrb[0].mxu0
        %5080 = vmatprep.mubr.bf16.mxu0 %v4666
        %5081 = vmatmul.mubr.bf16.gmra.mrb[0].mxu0 %v4665
        %v5082 = vpop.f32.mrb[0].mxu0
        %v5083 = vadd.f32 0.0, %v5082
        %v5084 = vpop.f32.mrb[0].mxu0
        %v5085 = vpop.f32.mrb[0].mxu0
        %v5086 = vadd.f32 0.0, %v5085
        %v5087 = vpop.f32.mrb[0].mxu0
        %5088 = vmatprep.mubr.bf16.mxu0 %v4669
        %5089 = vmatmul.mubr.bf16.gmra.mrb[0].mxu0 %v4668
        %v5090 = vpop.f32.mrb[0].mxu0
        %v5091 = vadd.f32 0.0, %v5090
        %v5092 = vpop.f32.mrb[0].mxu0
        %v5093 = vpop.f32.mrb[0].mxu0
        %v5094 = vadd.f32 0.0, %v5093
        %v5095 = vpop.f32.mrb[0].mxu0
        %5096 = vmatprep.mubr.bf16.mxu0 %v4672
        %5097 = vmatmul.mubr.bf16.gmra.mrb[0].mxu0 %v4671
        %v5098 = vpop.f32.mrb[0].mxu0
        %v5099 = vadd.f32 0.0, %v5098
        %v5100 = vpop.f32.mrb[0].mxu0
        %v5101 = vpop.f32.mrb[0].mxu0
        %v5102 = vadd.f32 0.0, %v5101
        %v5103 = vpop.f32.mrb[0].mxu0
        %5104 = vmatprep.mubr.bf16.mxu0 %v4675
        %5105 = vmatmul.mubr.bf16.gmra.mrb[0].mxu0 %v4674
        %v5106 = vpop.f32.mrb[0].mxu0
        %v5107 = vadd.f32 0.0, %v5106
        %v5108 = vpop.f32.mrb[0].mxu0
        %v5109 = vpop.f32.mrb[0].mxu0
        %v5110 = vadd.f32 0.0, %v5109
        %v5111 = vpop.f32.mrb[0].mxu0
        %5112 = vmatprep.mubr.bf16.mxu0 %v4678
        %5113 = vmatmul.mubr.bf16.gmra.mrb[0].mxu0 %v4677
        %v5114 = vpop.f32.mrb[0].mxu0
        %v5115 = vadd.f32 0.0, %v5114
        %v5116 = vpop.f32.mrb[0].mxu0
        %v5117 = vpop.f32.mrb[0].mxu0
        %v5118 = vadd.f32 0.0, %v5117
        %v5119 = vpop.f32.mrb[0].mxu0
        %5120 = vdwg.mxu0
        %5121 = vmatprep.subr.bf16.mxu0 0
        %5122 = vmatpush1.bf16.msra.mxu0 %v4804
        %5123 = vmatprep.subr.bf16.mxu0 0
        %5124 = vmatpush1.bf16.msra.mxu0 %v4805
        %5125 = vmatprep.subr.bf16.mxu0 0
        %5126 = vmatpush1.bf16.msra.mxu0 0
        %5127 = vmatprep.subr.bf16.mxu0 0
        %5128 = vmatpush1.bf16.msra.mxu0 0
        %5129 = vmatprep.subr.bf16.mxu0 0
        %5130 = vmatpush1.bf16.msra.mxu0 0
        %5131 = vmatprep.subr.bf16.mxu0 0
        %5132 = vmatpush1.bf16.msra.mxu0 0
        %5133 = vmatprep.subr.bf16.mxu0 0
        %5134 = vmatpush1.bf16.msra.mxu0 0
        %5135 = vmatprep.subr.bf16.mxu0 0
        %5136 = vmatpush1.bf16.msra.mxu0 0
        %5137 = vmatprep.subr.bf16.mxu0 0
        %5138 = vmatpush1.bf16.msra.mxu0 0
        %5139 = vmatprep.subr.bf16.mxu0 0
        %5140 = vmatpush1.bf16.msra.mxu0 0
        %5141 = vmatprep.subr.bf16.mxu0 0
        %5142 = vmatpush1.bf16.msra.mxu0 0
        %5143 = vmatprep.subr.bf16.mxu0 0
        %5144 = vmatpush1.bf16.msra.mxu0 0
        %5145 = vmatprep.subr.bf16.mxu0 0
        %5146 = vmatpush1.bf16.msra.mxu0 0
        %5147 = vmatprep.subr.bf16.mxu0 0
        %5148 = vmatpush1.bf16.msra.mxu0 0
        %5149 = vmatprep.subr.bf16.mxu0 0
        %5150 = vmatpush1.bf16.msra.mxu0 0
        %5151 = vmatprep.subr.bf16.mxu0 0
        %5152 = vmatpush1.bf16.msra.mxu0 0
        %5153 = vmatprep.mubr.bf16.mxu0 0
        %5154 = vmatmul.mubr.bf16.gmra.mrb[0].mxu0 %v4825
        %v5155 = vpop.f32.mrb[0].mxu0
        %v5156 = vadd.f32 %v4931, %v5155
        %v5157 = vpop.f32.mrb[0].mxu0
        %v5158 = vpop.f32.mrb[0].mxu0
        %v5159 = vadd.f32 %v4934, %v5158
        %v5160 = vpop.f32.mrb[0].mxu0
        %5161 = vmatprep.mubr.bf16.mxu0 0
        %5162 = vmatmul.mubr.bf16.gmra.mrb[0].mxu0 %v4828
        %v5163 = vpop.f32.mrb[0].mxu0
        %v5164 = vadd.f32 %v4939, %v5163
        %v5165 = vpop.f32.mrb[0].mxu0
        %v5166 = vpop.f32.mrb[0].mxu0
        %v5167 = vadd.f32 %v4942, %v5166
        %v5168 = vpop.f32.mrb[0].mxu0
        %5169 = vmatprep.mubr.bf16.mxu0 0
        %5170 = vmatmul.mubr.bf16.gmra.mrb[0].mxu0 %v4831
        %v5171 = vpop.f32.mrb[0].mxu0
        %v5172 = vadd.f32 %v4947, %v5171
        %v5173 = vpop.f32.mrb[0].mxu0
        %v5174 = vpop.f32.mrb[0].mxu0
        %v5175 = vadd.f32 %v4950, %v5174
        %v5176 = vpop.f32.mrb[0].mxu0
        %5177 = vmatprep.mubr.bf16.mxu0 0
        %5178 = vmatmul.mubr.bf16.gmra.mrb[0].mxu0 %v4834
        %v5179 = vpop.f32.mrb[0].mxu0
        %v5180 = vadd.f32 %v4955, %v5179
        %v5181 = vpop.f32.mrb[0].mxu0
        %v5182 = vpop.f32.mrb[0].mxu0
        %v5183 = vadd.f32 %v4958, %v5182
        %v5184 = vpop.f32.mrb[0].mxu0
        %5185 = vmatprep.mubr.bf16.mxu0 0
        %5186 = vmatmul.mubr.bf16.gmra.mrb[0].mxu0 %v4837
        %v5187 = vpop.f32.mrb[0].mxu0
        %v5188 = vadd.f32 %v4963, %v5187
        %v5189 = vpop.f32.mrb[0].mxu0
        %v5190 = vpop.f32.mrb[0].mxu0
        %v5191 = vadd.f32 %v4966, %v5190
        %v5192 = vpop.f32.mrb[0].mxu0
        %5193 = vmatprep.mubr.bf16.mxu0 0
        %5194 = vmatmul.mubr.bf16.gmra.mrb[0].mxu0 %v4840
        %v5195 = vpop.f32.mrb[0].mxu0
        %v5196 = vadd.f32 %v4971, %v5195
        %v5197 = vpop.f32.mrb[0].mxu0
        %v5198 = vpop.f32.mrb[0].mxu0
        %v5199 = vadd.f32 %v4974, %v5198
        %v5200 = vpop.f32.mrb[0].mxu0
        %5201 = vmatprep.mubr.bf16.mxu0 0
        %5202 = vmatmul.mubr.bf16.gmra.mrb[0].mxu0 %v4843
        %v5203 = vpop.f32.mrb[0].mxu0
        %v5204 = vadd.f32 %v4979, %v5203
        %v5205 = vpop.f32.mrb[0].mxu0
        %v5206 = vpop.f32.mrb[0].mxu0
        %v5207 = vadd.f32 %v4982, %v5206
        %v5208 = vpop.f32.mrb[0].mxu0
        %5209 = vmatprep.mubr.bf16.mxu0 0
        %5210 = vmatmul.mubr.bf16.gmra.mrb[0].mxu0 %v4846
        %v5211 = vpop.f32.mrb[0].mxu0
        %v5212 = vadd.f32 %v4987, %v5211
        %v5213 = vpop.f32.mrb[0].mxu0
        %v5214 = vpop.f32.mrb[0].mxu0
        %v5215 = vadd.f32 %v4990, %v5214
        %v5216 = vpop.f32.mrb[0].mxu0
        %5217 = vmatprep.mubr.bf16.mxu0 0
        %5218 = vmatmul.mubr.bf16.gmra.mrb[0].mxu0 %v4849
        %v5219 = vpop.f32.mrb[0].mxu0
        %v5220 = vadd.f32 %v4995, %v5219
        %v5221 = vpop.f32.mrb[0].mxu0
        %v5222 = vpop.f32.mrb[0].mxu0
        %v5223 = vadd.f32 %v4998, %v5222
        %v5224 = vpop.f32.mrb[0].mxu0
        %5225 = vmatprep.mubr.bf16.mxu0 0
        %5226 = vmatmul.mubr.bf16.gmra.mrb[0].mxu0 %v4852
        %v5227 = vpop.f32.mrb[0].mxu0
        %v5228 = vadd.f32 %v5003, %v5227
        %v5229 = vpop.f32.mrb[0].mxu0
        %v5230 = vpop.f32.mrb[0].mxu0
        %v5231 = vadd.f32 %v5006, %v5230
        %v5232 = vpop.f32.mrb[0].mxu0
        %5233 = vmatprep.mubr.bf16.mxu0 0
        %5234 = vmatmul.mubr.bf16.gmra.mrb[0].mxu0 %v4855
        %v5235 = vpop.f32.mrb[0].mxu0
        %v5236 = vadd.f32 %v5011, %v5235
        %v5237 = vpop.f32.mrb[0].mxu0
        %v5238 = vpop.f32.mrb[0].mxu0
        %v5239 = vadd.f32 %v5014, %v5238
        %v5240 = vpop.f32.mrb[0].mxu0
        %5241 = vmatprep.mubr.bf16.mxu0 0
        %5242 = vmatmul.mubr.bf16.gmra.mrb[0].mxu0 %v4858
        %v5243 = vpop.f32.mrb[0].mxu0
        %v5244 = vadd.f32 %v5019, %v5243
        %v5245 = vpop.f32.mrb[0].mxu0
        %v5246 = vpop.f32.mrb[0].mxu0
        %v5247 = vadd.f32 %v5022, %v5246
        %v5248 = vpop.f32.mrb[0].mxu0
        %5249 = vmatprep.mubr.bf16.mxu0 0
        %5250 = vmatmul.mubr.bf16.gmra.mrb[0].mxu0 %v4861
        %v5251 = vpop.f32.mrb[0].mxu0
        %v5252 = vadd.f32 %v5027, %v5251
        %v5253 = vpop.f32.mrb[0].mxu0
        %v5254 = vpop.f32.mrb[0].mxu0
        %v5255 = vadd.f32 %v5030, %v5254
        %v5256 = vpop.f32.mrb[0].mxu0
        %5257 = vmatprep.mubr.bf16.mxu0 0
        %5258 = vmatmul.mubr.bf16.gmra.mrb[0].mxu0 %v4864
        %v5259 = vpop.f32.mrb[0].mxu0
        %v5260 = vadd.f32 %v5035, %v5259
        %v5261 = vpop.f32.mrb[0].mxu0
        %v5262 = vpop.f32.mrb[0].mxu0
        %v5263 = vadd.f32 %v5038, %v5262
        %v5264 = vpop.f32.mrb[0].mxu0
        %5265 = vmatprep.mubr.bf16.mxu0 0
        %5266 = vmatmul.mubr.bf16.gmra.mrb[0].mxu0 %v4867
        %v5267 = vpop.f32.mrb[0].mxu0
        %v5268 = vadd.f32 %v5043, %v5267
        %v5269 = vpop.f32.mrb[0].mxu0
        %v5270 = vpop.f32.mrb[0].mxu0
        %v5271 = vadd.f32 %v5046, %v5270
        %v5272 = vpop.f32.mrb[0].mxu0
        %5273 = vmatprep.mubr.bf16.mxu0 0
        %5274 = vmatmul.mubr.bf16.gmra.mrb[0].mxu0 %v4870
        %v5275 = vpop.f32.mrb[0].mxu0
        %v5276 = vadd.f32 %v5051, %v5275
        %v5277 = vpop.f32.mrb[0].mxu0
        %v5278 = vpop.f32.mrb[0].mxu0
        %v5279 = vadd.f32 %v5054, %v5278
        %v5280 = vpop.f32.mrb[0].mxu0
        %5281 = vmatprep.mubr.bf16.mxu0 0
        %5282 = vmatmul.mubr.bf16.gmra.mrb[0].mxu0 %v4873
        %v5283 = vpop.f32.mrb[0].mxu0
        %v5284 = vadd.f32 %v5059, %v5283
        %v5285 = vpop.f32.mrb[0].mxu0
        %v5286 = vpop.f32.mrb[0].mxu0
        %v5287 = vadd.f32 %v5062, %v5286
        %v5288 = vpop.f32.mrb[0].mxu0
        %5289 = vmatprep.mubr.bf16.mxu0 0
        %5290 = vmatmul.mubr.bf16.gmra.mrb[0].mxu0 %v4876
        %v5291 = vpop.f32.mrb[0].mxu0
        %v5292 = vadd.f32 %v5067, %v5291
        %v5293 = vpop.f32.mrb[0].mxu0
        %v5294 = vpop.f32.mrb[0].mxu0
        %v5295 = vadd.f32 %v5070, %v5294
        %v5296 = vpop.f32.mrb[0].mxu0
        %5297 = vmatprep.mubr.bf16.mxu0 0
        %5298 = vmatmul.mubr.bf16.gmra.mrb[0].mxu0 %v4879
        %v5299 = vpop.f32.mrb[0].mxu0
        %v5300 = vadd.f32 %v5075, %v5299
        %v5301 = vpop.f32.mrb[0].mxu0
        %v5302 = vpop.f32.mrb[0].mxu0
        %v5303 = vadd.f32 %v5078, %v5302
        %v5304 = vpop.f32.mrb[0].mxu0
        %5305 = vmatprep.mubr.bf16.mxu0 0
        %5306 = vmatmul.mubr.bf16.gmra.mrb[0].mxu0 %v4882
        %v5307 = vpop.f32.mrb[0].mxu0
        %v5308 = vadd.f32 %v5083, %v5307
        %v5309 = vpop.f32.mrb[0].mxu0
        %v5310 = vpop.f32.mrb[0].mxu0
        %v5311 = vadd.f32 %v5086, %v5310
        %v5312 = vpop.f32.mrb[0].mxu0
        %5313 = vmatprep.mubr.bf16.mxu0 0
        %5314 = vmatmul.mubr.bf16.gmra.mrb[0].mxu0 %v4885
        %v5315 = vpop.f32.mrb[0].mxu0
        %v5316 = vadd.f32 %v5091, %v5315
        %v5317 = vpop.f32.mrb[0].mxu0
        %v5318 = vpop.f32.mrb[0].mxu0
        %v5319 = vadd.f32 %v5094, %v5318
        %v5320 = vpop.f32.mrb[0].mxu0
        %5321 = vmatprep.mubr.bf16.mxu0 0
        %5322 = vmatmul.mubr.bf16.gmra.mrb[0].mxu0 %v4888
        %v5323 = vpop.f32.mrb[0].mxu0
        %v5324 = vadd.f32 %v5099, %v5323
        %v5325 = vpop.f32.mrb[0].mxu0
        %v5326 = vpop.f32.mrb[0].mxu0
        %v5327 = vadd.f32 %v5102, %v5326
        %v5328 = vpop.f32.mrb[0].mxu0
        %5329 = vmatprep.mubr.bf16.mxu0 0
        %5330 = vmatmul.mubr.bf16.gmra.mrb[0].mxu0 %v4891
        %v5331 = vpop.f32.mrb[0].mxu0
        %v5332 = vadd.f32 %v5107, %v5331
        %v5333 = vpop.f32.mrb[0].mxu0
        %v5334 = vpop.f32.mrb[0].mxu0
        %v5335 = vadd.f32 %v5110, %v5334
        %v5336 = vpop.f32.mrb[0].mxu0
        %5337 = vmatprep.mubr.bf16.mxu0 0
        %5338 = vmatmul.mubr.bf16.gmra.mrb[0].mxu0 %v4894
        %v5339 = vpop.f32.mrb[0].mxu0
        %v5340 = vadd.f32 %v5115, %v5339
        %v5341 = vpop.f32.mrb[0].mxu0
        %v5342 = vpop.f32.mrb[0].mxu0
        %v5343 = vadd.f32 %v5118, %v5342
        %v5344 = vpop.f32.mrb[0].mxu0
        %5345 = vdwg.mxu0
        %v5346 = vld [vmem:[%s6] sm:$0x1]
        %v5348 = vlaneseq
        %v5349 = vshrl.u32 %v5348, 7
        %v5350 = vsub.s32 0, %v5349
        %v5351 = vrot.slane %v5346, %v5350
        %v5353 = vmul.f32 %v5156, %v5351
        %v5354 = vmul.f32 %v5159, %v5351
        %v5355 = vmul.f32 %v5164, %v5351
        %v5356 = vmul.f32 %v5167, %v5351
        %v5357 = vmul.f32 %v5172, %v5351
        %v5358 = vmul.f32 %v5175, %v5351
        %v5359 = vmul.f32 %v5180, %v5351
        %v5360 = vmul.f32 %v5183, %v5351
        %v5361 = vmul.f32 %v5188, %v5351
        %v5362 = vmul.f32 %v5191, %v5351
        %v5363 = vmul.f32 %v5196, %v5351
        %v5364 = vmul.f32 %v5199, %v5351
        %v5365 = vmul.f32 %v5204, %v5351
        %v5366 = vmul.f32 %v5207, %v5351
        %v5367 = vmul.f32 %v5212, %v5351
        %v5368 = vmul.f32 %v5215, %v5351
        %v5369 = vmul.f32 %v5220, %v5351
        %v5370 = vmul.f32 %v5223, %v5351
        %v5371 = vmul.f32 %v5228, %v5351
        %v5372 = vmul.f32 %v5231, %v5351
        %v5373 = vmul.f32 %v5236, %v5351
        %v5374 = vmul.f32 %v5239, %v5351
        %v5375 = vmul.f32 %v5244, %v5351
        %v5376 = vmul.f32 %v5247, %v5351
        %v5377 = vmul.f32 %v5252, %v5351
        %v5378 = vmul.f32 %v5255, %v5351
        %v5379 = vmul.f32 %v5260, %v5351
        %v5380 = vmul.f32 %v5263, %v5351
        %v5381 = vmul.f32 %v5268, %v5351
        %v5382 = vmul.f32 %v5271, %v5351
        %v5383 = vmul.f32 %v5276, %v5351
        %v5384 = vmul.f32 %v5279, %v5351
        %v5385 = vmul.f32 %v5284, %v5351
        %v5386 = vmul.f32 %v5287, %v5351
        %v5387 = vmul.f32 %v5292, %v5351
        %v5388 = vmul.f32 %v5295, %v5351
        %v5389 = vmul.f32 %v5300, %v5351
        %v5390 = vmul.f32 %v5303, %v5351
        %v5391 = vmul.f32 %v5308, %v5351
        %v5392 = vmul.f32 %v5311, %v5351
        %v5393 = vmul.f32 %v5316, %v5351
        %v5394 = vmul.f32 %v5319, %v5351
        %v5395 = vmul.f32 %v5324, %v5351
        %v5396 = vmul.f32 %v5327, %v5351
        %v5397 = vmul.f32 %v5332, %v5351
        %v5398 = vmul.f32 %v5335, %v5351
        %v5399 = vmul.f32 %v5340, %v5351
        %v5400 = vmul.f32 %v5343, %v5351
        %v5401 = vld [vmem:[%s7] sm:$0x1]
        %v5403 = vlaneseq
        %v5404 = vshrl.u32 %v5403, 7
        %v5405 = vsub.s32 0, %v5404
        %v5406 = vrot.slane %v5401, %v5405
        %v5408 = vadd.f32 %v5353, %v5406
        %v5409 = vadd.f32 %v5354, %v5406
        %v5410 = vadd.f32 %v5355, %v5406
        %v5411 = vadd.f32 %v5356, %v5406
        %v5412 = vadd.f32 %v5357, %v5406
        %v5413 = vadd.f32 %v5358, %v5406
        %v5414 = vadd.f32 %v5359, %v5406
        %v5415 = vadd.f32 %v5360, %v5406
        %v5416 = vadd.f32 %v5361, %v5406
        %v5417 = vadd.f32 %v5362, %v5406
        %v5418 = vadd.f32 %v5363, %v5406
        %v5419 = vadd.f32 %v5364, %v5406
        %v5420 = vadd.f32 %v5365, %v5406
        %v5421 = vadd.f32 %v5366, %v5406
        %v5422 = vadd.f32 %v5367, %v5406
        %v5423 = vadd.f32 %v5368, %v5406
        %v5424 = vadd.f32 %v5369, %v5406
        %v5425 = vadd.f32 %v5370, %v5406
        %v5426 = vadd.f32 %v5371, %v5406
        %v5427 = vadd.f32 %v5372, %v5406
        %v5428 = vadd.f32 %v5373, %v5406
        %v5429 = vadd.f32 %v5374, %v5406
        %v5430 = vadd.f32 %v5375, %v5406
        %v5431 = vadd.f32 %v5376, %v5406
        %v5432 = vadd.f32 %v5377, %v5406
        %v5433 = vadd.f32 %v5378, %v5406
        %v5434 = vadd.f32 %v5379, %v5406
        %v5435 = vadd.f32 %v5380, %v5406
        %v5436 = vadd.f32 %v5381, %v5406
        %v5437 = vadd.f32 %v5382, %v5406
        %v5438 = vadd.f32 %v5383, %v5406
        %v5439 = vadd.f32 %v5384, %v5406
        %v5440 = vadd.f32 %v5385, %v5406
        %v5441 = vadd.f32 %v5386, %v5406
        %v5442 = vadd.f32 %v5387, %v5406
        %v5443 = vadd.f32 %v5388, %v5406
        %v5444 = vadd.f32 %v5389, %v5406
        %v5445 = vadd.f32 %v5390, %v5406
        %v5446 = vadd.f32 %v5391, %v5406
        %v5447 = vadd.f32 %v5392, %v5406
        %v5448 = vadd.f32 %v5393, %v5406
        %v5449 = vadd.f32 %v5394, %v5406
        %v5450 = vadd.f32 %v5395, %v5406
        %v5451 = vadd.f32 %v5396, %v5406
        %v5452 = vadd.f32 %v5397, %v5406
        %v5453 = vadd.f32 %v5398, %v5406
        %v5454 = vadd.f32 %v5399, %v5406
        %v5455 = vadd.f32 %v5400, %v5406
        %v5456 = vmax.f32 %v5408, 0.0
        %v5457 = vmax.f32 %v5409, 0.0
        %v5458 = vmax.f32 %v5410, 0.0
        %v5459 = vmax.f32 %v5411, 0.0
        %v5460 = vmax.f32 %v5412, 0.0
        %v5461 = vmax.f32 %v5413, 0.0
        %v5462 = vmax.f32 %v5414, 0.0
        %v5463 = vmax.f32 %v5415, 0.0
        %v5464 = vmax.f32 %v5416, 0.0
        %v5465 = vmax.f32 %v5417, 0.0
        %v5466 = vmax.f32 %v5418, 0.0
        %v5467 = vmax.f32 %v5419, 0.0
        %v5468 = vmax.f32 %v5420, 0.0
        %v5469 = vmax.f32 %v5421, 0.0
        %v5470 = vmax.f32 %v5422, 0.0
        %v5471 = vmax.f32 %v5423, 0.0
        %v5472 = vmax.f32 %v5424, 0.0
        %v5473 = vmax.f32 %v5425, 0.0
        %v5474 = vmax.f32 %v5426, 0.0
        %v5475 = vmax.f32 %v5427, 0.0
        %v5476 = vmax.f32 %v5428, 0.0
        %v5477 = vmax.f32 %v5429, 0.0
        %v5478 = vmax.f32 %v5430, 0.0
        %v5479 = vmax.f32 %v5431, 0.0
        %v5480 = vmax.f32 %v5432, 0.0
        %v5481 = vmax.f32 %v5433, 0.0
        %v5482 = vmax.f32 %v5434, 0.0
        %v5483 = vmax.f32 %v5435, 0.0
        %v5484 = vmax.f32 %v5436, 0.0
        %v5485 = vmax.f32 %v5437, 0.0
        %v5486 = vmax.f32 %v5438, 0.0
        %v5487 = vmax.f32 %v5439, 0.0
        %v5488 = vmax.f32 %v5440, 0.0
        %v5489 = vmax.f32 %v5441, 0.0
        %v5490 = vmax.f32 %v5442, 0.0
        %v5491 = vmax.f32 %v5443, 0.0
        %v5492 = vmax.f32 %v5444, 0.0
        %v5493 = vmax.f32 %v5445, 0.0
        %v5494 = vmax.f32 %v5446, 0.0
        %v5495 = vmax.f32 %v5447, 0.0
        %v5496 = vmax.f32 %v5448, 0.0
        %v5497 = vmax.f32 %v5449, 0.0
        %v5498 = vmax.f32 %v5450, 0.0
        %v5499 = vmax.f32 %v5451, 0.0
        %v5500 = vmax.f32 %v5452, 0.0
        %v5501 = vmax.f32 %v5453, 0.0
        %v5502 = vmax.f32 %v5454, 0.0
        %v5503 = vmax.f32 %v5455, 0.0
        %v5504 = vpack.c.bf16 %v5457, %v5456
        %v5505 = vpack.c.bf16 %v5459, %v5458
        %v5506 = vpack.c.bf16 %v5461, %v5460
        %v5507 = vpack.c.bf16 %v5463, %v5462
        %v5508 = vpack.c.bf16 %v5465, %v5464
        %v5509 = vpack.c.bf16 %v5467, %v5466
        %v5510 = vpack.c.bf16 %v5469, %v5468
        %v5511 = vpack.c.bf16 %v5471, %v5470
        %v5512 = vpack.c.bf16 %v5473, %v5472
        %v5513 = vpack.c.bf16 %v5475, %v5474
        %v5514 = vpack.c.bf16 %v5477, %v5476
        %v5515 = vpack.c.bf16 %v5479, %v5478
        %v5516 = vpack.c.bf16 %v5481, %v5480
        %v5517 = vpack.c.bf16 %v5483, %v5482
        %v5518 = vpack.c.bf16 %v5485, %v5484
        %v5519 = vpack.c.bf16 %v5487, %v5486
        %v5520 = vpack.c.bf16 %v5489, %v5488
        %v5521 = vpack.c.bf16 %v5491, %v5490
        %v5522 = vpack.c.bf16 %v5493, %v5492
        %v5523 = vpack.c.bf16 %v5495, %v5494
        %v5524 = vpack.c.bf16 %v5497, %v5496
        %v5525 = vpack.c.bf16 %v5499, %v5498
        %v5526 = vpack.c.bf16 %v5501, %v5500
        %v5527 = vpack.c.bf16 %v5503, %v5502
        %v5528 = vld [vmem:[%s8] sm:$0xf]
        %v5529 = vld [vmem:[%s8 + $0x4] sm:$0xf]
        %v5530 = vld [vmem:[%s8 + $0x8] sm:$0xf]
        %v5531 = vld [vmem:[%s8 + $0xc] sm:$0xf]
        %v5536 = vunpack.c.l.b16 %v5528
        %v5537 = vunpack.c.l.b16 %v5529
        %v5538 = vunpack.c.l.b16 %v5530
        %v5539 = vunpack.c.l.b16 %v5531
        %v5540 = vpack.c.b16 %v5537, %v5536
        %v5541 = vpack.c.b16 %v5539, %v5538
        %v5545 = vsel %vm1803, %v5504, 0
        %v5548 = vsel %vm1803, %v5505, 0
        %v5551 = vsel %vm1803, %v5506, 0
        %v5554 = vsel %vm1803, %v5507, 0
        %v5557 = vsel %vm1803, %v5508, 0
        %v5560 = vsel %vm1803, %v5509, 0
        %v5563 = vsel %vm1803, %v5510, 0
        %v5566 = vsel %vm1803, %v5511, 0
        %v5569 = vsel %vm1803, %v5512, 0
        %v5572 = vsel %vm1803, %v5513, 0
        %v5575 = vsel %vm1803, %v5514, 0
        %v5578 = vsel %vm1803, %v5515, 0
        %v5581 = vsel %vm1803, %v5516, 0
        %v5584 = vsel %vm1803, %v5517, 0
        %v5587 = vsel %vm1803, %v5518, 0
        %v5590 = vsel %vm1803, %v5519, 0
        %v5593 = vsel %vm1803, %v5520, 0
        %v5596 = vsel %vm1803, %v5521, 0
        %v5599 = vsel %vm1803, %v5522, 0
        %v5602 = vsel %vm1803, %v5523, 0
        %v5605 = vsel %vm1803, %v5524, 0
        %v5608 = vsel %vm1803, %v5525, 0
        %v5611 = vsel %vm1803, %v5526, 0
        %v5614 = vsel %vm1803, %v5527, 0
        %5616 = vmatprep.subr.bf16.mxu0 0
        %5617 = vmatpush1.bf16.msra.mxu0 %v5540
        %5618 = vmatprep.subr.bf16.mxu0 0
        %5619 = vmatpush1.bf16.msra.mxu0 %v5541
        %5620 = vmatprep.subr.bf16.mxu0 0
        %5621 = vmatpush1.bf16.msra.mxu0 0
        %5622 = vmatprep.subr.bf16.mxu0 0
        %5623 = vmatpush1.bf16.msra.mxu0 0
        %5624 = vmatprep.subr.bf16.mxu0 0
        %5625 = vmatpush1.bf16.msra.mxu0 0
        %5626 = vmatprep.subr.bf16.mxu0 0
        %5627 = vmatpush1.bf16.msra.mxu0 0
        %5628 = vmatprep.subr.bf16.mxu0 0
        %5629 = vmatpush1.bf16.msra.mxu0 0
        %5630 = vmatprep.subr.bf16.mxu0 0
        %5631 = vmatpush1.bf16.msra.mxu0 0
        %5632 = vmatprep.subr.bf16.mxu0 0
        %5633 = vmatpush1.bf16.msra.mxu0 0
        %5634 = vmatprep.subr.bf16.mxu0 0
        %5635 = vmatpush1.bf16.msra.mxu0 0
        %5636 = vmatprep.subr.bf16.mxu0 0
        %5637 = vmatpush1.bf16.msra.mxu0 0
        %5638 = vmatprep.subr.bf16.mxu0 0
        %5639 = vmatpush1.bf16.msra.mxu0 0
        %5640 = vmatprep.subr.bf16.mxu0 0
        %5641 = vmatpush1.bf16.msra.mxu0 0
        %5642 = vmatprep.subr.bf16.mxu0 0
        %5643 = vmatpush1.bf16.msra.mxu0 0
        %5644 = vmatprep.subr.bf16.mxu0 0
        %5645 = vmatpush1.bf16.msra.mxu0 0
        %5646 = vmatprep.subr.bf16.mxu0 0
        %5647 = vmatpush1.bf16.msra.mxu0 0
        %5648 = vmatprep.mubr.bf16.mxu0 0
        %5649 = vmatmul.mubr.bf16.gmra.mrb[0].mxu0 %v5545
        %v5650 = vpop.f32.mrb[0].mxu0
        %v5651 = vadd.f32 0.0, %v5650
        %v5652 = vpop.f32.mrb[0].mxu0
        %v5653 = vpop.f32.mrb[0].mxu0
        %v5654 = vadd.f32 0.0, %v5653
        %v5655 = vpop.f32.mrb[0].mxu0
        %5656 = vmatprep.mubr.bf16.mxu0 0
        %5657 = vmatmul.mubr.bf16.gmra.mrb[0].mxu0 %v5548
        %v5658 = vpop.f32.mrb[0].mxu0
        %v5659 = vpop.f32.mrb[0].mxu0
        %v5660 = vpop.f32.mrb[0].mxu0
        %v5661 = vadd.f32 0.0, %v5660
        %v5662 = vpop.f32.mrb[0].mxu0
        %5663 = vmatprep.mubr.bf16.mxu0 0
        %5664 = vmatmul.mubr.bf16.gmra.mrb[0].mxu0 %v5551
        %v5665 = vpop.f32.mrb[0].mxu0
        %v5666 = vadd.f32 0.0, %v5665
        %v5667 = vpop.f32.mrb[0].mxu0
        %v5668 = vpop.f32.mrb[0].mxu0
        %v5669 = vpop.f32.mrb[0].mxu0
        %5670 = vmatprep.mubr.bf16.mxu0 0
        %5671 = vmatmul.mubr.bf16.gmra.mrb[0].mxu0 %v5554
        %v5672 = vpop.f32.mrb[0].mxu0
        %v5673 = vadd.f32 0.0, %v5672
        %v5674 = vpop.f32.mrb[0].mxu0
        %v5675 = vpop.f32.mrb[0].mxu0
        %v5676 = vadd.f32 0.0, %v5675
        %v5677 = vpop.f32.mrb[0].mxu0
        %5678 = vmatprep.mubr.bf16.mxu0 0
        %5679 = vmatmul.mubr.bf16.gmra.mrb[0].mxu0 %v5557
        %v5680 = vpop.f32.mrb[0].mxu0
        %v5681 = vpop.f32.mrb[0].mxu0
        %v5682 = vpop.f32.mrb[0].mxu0
        %v5683 = vadd.f32 0.0, %v5682
        %v5684 = vpop.f32.mrb[0].mxu0
        %5685 = vmatprep.mubr.bf16.mxu0 0
        %5686 = vmatmul.mubr.bf16.gmra.mrb[0].mxu0 %v5560
        %v5687 = vpop.f32.mrb[0].mxu0
        %v5688 = vadd.f32 0.0, %v5687
        %v5689 = vpop.f32.mrb[0].mxu0
        %v5690 = vpop.f32.mrb[0].mxu0
        %v5691 = vpop.f32.mrb[0].mxu0
        %5692 = vmatprep.mubr.bf16.mxu0 0
        %5693 = vmatmul.mubr.bf16.gmra.mrb[0].mxu0 %v5563
        %v5694 = vpop.f32.mrb[0].mxu0
        %v5695 = vadd.f32 0.0, %v5694
        %v5696 = vpop.f32.mrb[0].mxu0
        %v5697 = vpop.f32.mrb[0].mxu0
        %v5698 = vadd.f32 0.0, %v5697
        %v5699 = vpop.f32.mrb[0].mxu0
        %5700 = vmatprep.mubr.bf16.mxu0 0
        %5701 = vmatmul.mubr.bf16.gmra.mrb[0].mxu0 %v5566
        %v5702 = vpop.f32.mrb[0].mxu0
        %v5703 = vpop.f32.mrb[0].mxu0
        %v5704 = vpop.f32.mrb[0].mxu0
        %v5705 = vadd.f32 0.0, %v5704
        %v5706 = vpop.f32.mrb[0].mxu0
        %5707 = vmatprep.mubr.bf16.mxu0 0
        %5708 = vmatmul.mubr.bf16.gmra.mrb[0].mxu0 %v5569
        %v5709 = vpop.f32.mrb[0].mxu0
        %v5710 = vadd.f32 0.0, %v5709
        %v5711 = vpop.f32.mrb[0].mxu0
        %v5712 = vpop.f32.mrb[0].mxu0
        %v5713 = vpop.f32.mrb[0].mxu0
        %5714 = vmatprep.mubr.bf16.mxu0 0
        %5715 = vmatmul.mubr.bf16.gmra.mrb[0].mxu0 %v5572
        %v5716 = vpop.f32.mrb[0].mxu0
        %v5717 = vadd.f32 0.0, %v5716
        %v5718 = vpop.f32.mrb[0].mxu0
        %v5719 = vpop.f32.mrb[0].mxu0
        %v5720 = vadd.f32 0.0, %v5719
        %v5721 = vpop.f32.mrb[0].mxu0
        %5722 = vmatprep.mubr.bf16.mxu0 0
        %5723 = vmatmul.mubr.bf16.gmra.mrb[0].mxu0 %v5575
        %v5724 = vpop.f32.mrb[0].mxu0
        %v5725 = vpop.f32.mrb[0].mxu0
        %v5726 = vpop.f32.mrb[0].mxu0
        %v5727 = vadd.f32 0.0, %v5726
        %v5728 = vpop.f32.mrb[0].mxu0
        %5729 = vmatprep.mubr.bf16.mxu0 0
        %5730 = vmatmul.mubr.bf16.gmra.mrb[0].mxu0 %v5578
        %v5731 = vpop.f32.mrb[0].mxu0
        %v5732 = vadd.f32 0.0, %v5731
        %v5733 = vpop.f32.mrb[0].mxu0
        %v5734 = vpop.f32.mrb[0].mxu0
        %v5735 = vpop.f32.mrb[0].mxu0
        %5736 = vmatprep.mubr.bf16.mxu0 0
        %5737 = vmatmul.mubr.bf16.gmra.mrb[0].mxu0 %v5581
        %v5738 = vpop.f32.mrb[0].mxu0
        %v5739 = vadd.f32 0.0, %v5738
        %v5740 = vpop.f32.mrb[0].mxu0
        %v5741 = vpop.f32.mrb[0].mxu0
        %v5742 = vadd.f32 0.0, %v5741
        %v5743 = vpop.f32.mrb[0].mxu0
        %5744 = vmatprep.mubr.bf16.mxu0 0
        %5745 = vmatmul.mubr.bf16.gmra.mrb[0].mxu0 %v5584
        %v5746 = vpop.f32.mrb[0].mxu0
        %v5747 = vpop.f32.mrb[0].mxu0
        %v5748 = vpop.f32.mrb[0].mxu0
        %v5749 = vadd.f32 0.0, %v5748
        %v5750 = vpop.f32.mrb[0].mxu0
        %5751 = vmatprep.mubr.bf16.mxu0 0
        %5752 = vmatmul.mubr.bf16.gmra.mrb[0].mxu0 %v5587
        %v5753 = vpop.f32.mrb[0].mxu0
        %v5754 = vadd.f32 0.0, %v5753
        %v5755 = vpop.f32.mrb[0].mxu0
        %v5756 = vpop.f32.mrb[0].mxu0
        %v5757 = vpop.f32.mrb[0].mxu0
        %5758 = vmatprep.mubr.bf16.mxu0 0
        %5759 = vmatmul.mubr.bf16.gmra.mrb[0].mxu0 %v5590
        %v5760 = vpop.f32.mrb[0].mxu0
        %v5761 = vadd.f32 0.0, %v5760
        %v5762 = vpop.f32.mrb[0].mxu0
        %v5763 = vpop.f32.mrb[0].mxu0
        %v5764 = vadd.f32 0.0, %v5763
        %v5765 = vpop.f32.mrb[0].mxu0
        %5766 = vmatprep.mubr.bf16.mxu0 0
        %5767 = vmatmul.mubr.bf16.gmra.mrb[0].mxu0 %v5593
        %v5768 = vpop.f32.mrb[0].mxu0
        %v5769 = vpop.f32.mrb[0].mxu0
        %v5770 = vpop.f32.mrb[0].mxu0
        %v5771 = vadd.f32 0.0, %v5770
        %v5772 = vpop.f32.mrb[0].mxu0
        %5773 = vmatprep.mubr.bf16.mxu0 0
        %5774 = vmatmul.mubr.bf16.gmra.mrb[0].mxu0 %v5596
        %v5775 = vpop.f32.mrb[0].mxu0
        %v5776 = vadd.f32 0.0, %v5775
        %v5777 = vpop.f32.mrb[0].mxu0
        %v5778 = vpop.f32.mrb[0].mxu0
        %v5779 = vpop.f32.mrb[0].mxu0
        %5780 = vmatprep.mubr.bf16.mxu0 0
        %5781 = vmatmul.mubr.bf16.gmra.mrb[0].mxu0 %v5599
        %v5782 = vpop.f32.mrb[0].mxu0
        %v5783 = vadd.f32 0.0, %v5782
        %v5784 = vpop.f32.mrb[0].mxu0
        %v5785 = vpop.f32.mrb[0].mxu0
        %v5786 = vadd.f32 0.0, %v5785
        %v5787 = vpop.f32.mrb[0].mxu0
        %5788 = vmatprep.mubr.bf16.mxu0 0
        %5789 = vmatmul.mubr.bf16.gmra.mrb[0].mxu0 %v5602
        %v5790 = vpop.f32.mrb[0].mxu0
        %v5791 = vpop.f32.mrb[0].mxu0
        %v5792 = vpop.f32.mrb[0].mxu0
        %v5793 = vadd.f32 0.0, %v5792
        %v5794 = vpop.f32.mrb[0].mxu0
        %5795 = vmatprep.mubr.bf16.mxu0 0
        %5796 = vmatmul.mubr.bf16.gmra.mrb[0].mxu0 %v5605
        %v5797 = vpop.f32.mrb[0].mxu0
        %v5798 = vadd.f32 0.0, %v5797
        %v5799 = vpop.f32.mrb[0].mxu0
        %v5800 = vpop.f32.mrb[0].mxu0
        %v5801 = vpop.f32.mrb[0].mxu0
        %5802 = vmatprep.mubr.bf16.mxu0 0
        %5803 = vmatmul.mubr.bf16.gmra.mrb[0].mxu0 %v5608
        %v5804 = vpop.f32.mrb[0].mxu0
        %v5805 = vadd.f32 0.0, %v5804
        %v5806 = vpop.f32.mrb[0].mxu0
        %v5807 = vpop.f32.mrb[0].mxu0
        %v5808 = vadd.f32 0.0, %v5807
        %v5809 = vpop.f32.mrb[0].mxu0
        %5810 = vmatprep.mubr.bf16.mxu0 0
        %5811 = vmatmul.mubr.bf16.gmra.mrb[0].mxu0 %v5611
        %v5812 = vpop.f32.mrb[0].mxu0
        %v5813 = vpop.f32.mrb[0].mxu0
        %v5814 = vpop.f32.mrb[0].mxu0
        %v5815 = vadd.f32 0.0, %v5814
        %v5816 = vpop.f32.mrb[0].mxu0
        %5817 = vmatprep.mubr.bf16.mxu0 0
        %5818 = vmatmul.mubr.bf16.gmra.mrb[0].mxu0 %v5614
        %v5819 = vpop.f32.mrb[0].mxu0
        %v5820 = vadd.f32 0.0, %v5819
        %v5821 = vpop.f32.mrb[0].mxu0
        %v5822 = vpop.f32.mrb[0].mxu0
        %v5823 = vpop.f32.mrb[0].mxu0
        %5824 = vdwg.mxu0
        %v5825 = vld [vmem:[%s9] sm:$0x1]
        %v5827 = vlaneseq
        %v5828 = vshrl.u32 %v5827, 7
        %v5829 = vsub.s32 0, %v5828
        %v5830 = vrot.slane %v5825, %v5829
        %v5832 = vmul.f32 %v5651, %v5830
        %v5833 = vmul.f32 %v5654, %v5830
        %v5834 = vmul.f32 %v5661, %v5830
        %v5835 = vmul.f32 %v5666, %v5830
        %v5836 = vmul.f32 %v5673, %v5830
        %v5837 = vmul.f32 %v5676, %v5830
        %v5838 = vmul.f32 %v5683, %v5830
        %v5839 = vmul.f32 %v5688, %v5830
        %v5840 = vmul.f32 %v5695, %v5830
        %v5841 = vmul.f32 %v5698, %v5830
        %v5842 = vmul.f32 %v5705, %v5830
        %v5843 = vmul.f32 %v5710, %v5830
        %v5844 = vmul.f32 %v5717, %v5830
        %v5845 = vmul.f32 %v5720, %v5830
        %v5846 = vmul.f32 %v5727, %v5830
        %v5847 = vmul.f32 %v5732, %v5830
        %v5848 = vmul.f32 %v5739, %v5830
        %v5849 = vmul.f32 %v5742, %v5830
        %v5850 = vmul.f32 %v5749, %v5830
        %v5851 = vmul.f32 %v5754, %v5830
        %v5852 = vmul.f32 %v5761, %v5830
        %v5853 = vmul.f32 %v5764, %v5830
        %v5854 = vmul.f32 %v5771, %v5830
        %v5855 = vmul.f32 %v5776, %v5830
        %v5856 = vmul.f32 %v5783, %v5830
        %v5857 = vmul.f32 %v5786, %v5830
        %v5858 = vmul.f32 %v5793, %v5830
        %v5859 = vmul.f32 %v5798, %v5830
        %v5860 = vmul.f32 %v5805, %v5830
        %v5861 = vmul.f32 %v5808, %v5830
        %v5862 = vmul.f32 %v5815, %v5830
        %v5863 = vmul.f32 %v5820, %v5830
        %v5864 = vld [vmem:[%s10] sm:$0x1]
        %v5866 = vlaneseq
        %v5867 = vshrl.u32 %v5866, 7
        %v5868 = vsub.s32 0, %v5867
        %v5869 = vrot.slane %v5864, %v5868
        %v5871 = vadd.f32 %v5832, %v5869
        %v5872 = vadd.f32 %v5833, %v5869
        %v5873 = vadd.f32 %v5834, %v5869
        %v5874 = vadd.f32 %v5835, %v5869
        %v5875 = vadd.f32 %v5836, %v5869
        %v5876 = vadd.f32 %v5837, %v5869
        %v5877 = vadd.f32 %v5838, %v5869
        %v5878 = vadd.f32 %v5839, %v5869
        %v5879 = vadd.f32 %v5840, %v5869
        %v5880 = vadd.f32 %v5841, %v5869
        %v5881 = vadd.f32 %v5842, %v5869
        %v5882 = vadd.f32 %v5843, %v5869
        %v5883 = vadd.f32 %v5844, %v5869
        %v5884 = vadd.f32 %v5845, %v5869
        %v5885 = vadd.f32 %v5846, %v5869
        %v5886 = vadd.f32 %v5847, %v5869
        %v5887 = vadd.f32 %v5848, %v5869
        %v5888 = vadd.f32 %v5849, %v5869
        %v5889 = vadd.f32 %v5850, %v5869
        %v5890 = vadd.f32 %v5851, %v5869
        %v5891 = vadd.f32 %v5852, %v5869
        %v5892 = vadd.f32 %v5853, %v5869
        %v5893 = vadd.f32 %v5854, %v5869
        %v5894 = vadd.f32 %v5855, %v5869
        %v5895 = vadd.f32 %v5856, %v5869
        %v5896 = vadd.f32 %v5857, %v5869
        %v5897 = vadd.f32 %v5858, %v5869
        %v5898 = vadd.f32 %v5859, %v5869
        %v5899 = vadd.f32 %v5860, %v5869
        %v5900 = vadd.f32 %v5861, %v5869
        %v5901 = vadd.f32 %v5862, %v5869
        %v5902 = vadd.f32 %v5863, %v5869
        %v5903 = vld [vmem:[%s384 + $0xc] sm:$0xf]
        %v5904 = vld [vmem:[%s384 + $0x10] sm:$0xf]
        %v5905 = vld [vmem:[%s384 + $0x14] sm:$0xf]
        %v5906 = vld [vmem:[%s384 + $0x18] sm:$0xf]
        %v5907 = vld [vmem:[%s384 + $0x1c] sm:$0xf]
        %v5908 = vld [vmem:[%s384 + $0x20] sm:$0xf]
        %v5909 = vld [vmem:[%s384 + $0x24] sm:$0xf]
        %v5910 = vld [vmem:[%s384 + $0x28] sm:$0xf]
        %v5911 = vld [vmem:[%s384 + $0x2c] sm:$0xf]
        %v5912 = vld [vmem:[%s384 + $0x30] sm:$0xf]
        %v5913 = vld [vmem:[%s384 + $0x34] sm:$0xf]
        %v5914 = vld [vmem:[%s384 + $0x38] sm:$0xf]
        %v5915 = vld [vmem:[%s384 + $0x3c] sm:$0xf]
        %v5916 = vld [vmem:[%s384 + $0x40] sm:$0xf]
        %v5917 = vld [vmem:[%s384 + $0x44] sm:$0xf]
        %v5918 = vld [vmem:[%s384 + $0x48] sm:$0xf]
        %v5919 = vld [vmem:[%s384 + $0x4c] sm:$0xf]
        %v5920 = vld [vmem:[%s384 + $0x50] sm:$0xf]
        %v5921 = vld [vmem:[%s384 + $0x54] sm:$0xf]
        %v5922 = vld [vmem:[%s384 + $0x58] sm:$0xf]
        %v5923 = vld [vmem:[%s384 + $0x5c] sm:$0xf]
        %v5924 = vld [vmem:[%s384 + $0x60] sm:$0xf]
        %v5925 = vld [vmem:[%s384 + $0x64] sm:$0xf]
        %v5926 = vld [vmem:[%s384 + $0x68] sm:$0xf]
        %v5927 = vld [vmem:[%s384 + $0x6c] sm:$0xf]
        %v5928 = vld [vmem:[%s384 + $0x70] sm:$0xf]
        %v5929 = vld [vmem:[%s384 + $0x74] sm:$0xf]
        %v5930 = vld [vmem:[%s384 + $0x78] sm:$0xf]
        %v5931 = vld [vmem:[%s384 + $0x7c] sm:$0xf]
        %v5932 = vld [vmem:[%s384 + $0x80] sm:$0xf]
        %v5933 = vld [vmem:[%s384 + $0x84] sm:$0xf]
        %v5934 = vld [vmem:[%s384 + $0x88] sm:$0xf]
        %v5935 = vld [vmem:[%s384 + $0x8c] sm:$0xf]
        %v5936 = vld [vmem:[%s384 + $0x90] sm:$0xf]
        %v5937 = vld [vmem:[%s384 + $0x94] sm:$0xf]
        %v5938 = vld [vmem:[%s384 + $0x98] sm:$0xf]
        %v5939 = vld [vmem:[%s384 + $0x9c] sm:$0xf]
        %v5940 = vld [vmem:[%s384 + $0xa0] sm:$0xf]
        %v5941 = vld [vmem:[%s384 + $0xa4] sm:$0xf]
        %v5942 = vld [vmem:[%s384 + $0xa8] sm:$0xf]
        %v5943 = vld [vmem:[%s384 + $0xac] sm:$0xf]
        %v5944 = vld [vmem:[%s384 + $0xb0] sm:$0xf]
        %v5945 = vld [vmem:[%s384 + $0xb4] sm:$0xf]
        %v5946 = vld [vmem:[%s384 + $0xb8] sm:$0xf]
        %v5947 = vld [vmem:[%s384 + $0xbc] sm:$0xf]
        %v5948 = vld [vmem:[%s384 + $0xc0] sm:$0xf]
        %v5949 = vld [vmem:[%s384 + $0xc4] sm:$0xf]
        %v5950 = vld [vmem:[%s384 + $0xc8] sm:$0xf]
        %v5951 = vunpack.c.l.bf16 %v5903
        %v5952 = vunpack.c.l.bf16 %v5904
        %v5953 = vunpack.c.l.bf16 %v5905
        %v5954 = vunpack.c.l.bf16 %v5906
        %v5955 = vunpack.c.l.bf16 %v5907
        %v5956 = vunpack.c.l.bf16 %v5908
        %v5957 = vunpack.c.l.bf16 %v5909
        %v5958 = vunpack.c.l.bf16 %v5910
        %v5959 = vunpack.c.l.bf16 %v5911
        %v5960 = vunpack.c.l.bf16 %v5912
        %v5961 = vunpack.c.l.bf16 %v5913
        %v5962 = vunpack.c.l.bf16 %v5914
        %v5963 = vunpack.c.l.bf16 %v5915
        %v5964 = vunpack.c.l.bf16 %v5916
        %v5965 = vunpack.c.l.bf16 %v5917
        %v5966 = vunpack.c.l.bf16 %v5918
        %v5967 = vunpack.c.l.bf16 %v5919
        %v5968 = vunpack.c.l.bf16 %v5920
        %v5969 = vunpack.c.l.bf16 %v5921
        %v5970 = vunpack.c.l.bf16 %v5922
        %v5971 = vunpack.c.l.bf16 %v5923
        %v5972 = vunpack.c.l.bf16 %v5924
        %v5973 = vunpack.c.l.bf16 %v5925
        %v5974 = vunpack.c.l.bf16 %v5926
        %v5975 = vunpack.c.l.bf16 %v5927
        %v5976 = vunpack.c.l.bf16 %v5928
        %v5977 = vunpack.c.l.bf16 %v5929
        %v5978 = vunpack.c.l.bf16 %v5930
        %v5979 = vunpack.c.l.bf16 %v5931
        %v5980 = vunpack.c.l.bf16 %v5932
        %v5981 = vunpack.c.l.bf16 %v5933
        %v5982 = vunpack.c.l.bf16 %v5934
        %v5983 = vunpack.c.l.bf16 %v5935
        %v5984 = vunpack.c.l.bf16 %v5936
        %v5985 = vunpack.c.l.bf16 %v5937
        %v5986 = vunpack.c.l.bf16 %v5938
        %v5987 = vunpack.c.l.bf16 %v5939
        %v5988 = vunpack.c.l.bf16 %v5940
        %v5989 = vunpack.c.l.bf16 %v5941
        %v5990 = vunpack.c.l.bf16 %v5942
        %v5991 = vunpack.c.l.bf16 %v5943
        %v5992 = vunpack.c.l.bf16 %v5944
        %v5993 = vunpack.c.l.bf16 %v5945
        %v5994 = vunpack.c.l.bf16 %v5946
        %v5995 = vunpack.c.l.bf16 %v5947
        %v5996 = vunpack.c.l.bf16 %v5948
        %v5997 = vunpack.c.l.bf16 %v5949
        %v5998 = vunpack.c.l.bf16 %v5950
        %vm6047 = vcmask 1046528
        %v6048 = vrot.slane %v5951, 1
        %v6049 = vrot.slane %v5952, 1
        %v6050 = vsel %vm6047, %v6048, %v6049
        %v6051 = vrot.slane %v5953, 1
        %v6052 = vsel %vm6047, %v6049, %v6051
        %v6053 = vrot.slane %v5954, 1
        %v6054 = vrot.slane %v5955, 1
        %v6055 = vsel %vm6047, %v6053, %v6054
        %v6056 = vrot.slane %v5956, 1
        %v6057 = vsel %vm6047, %v6054, %v6056
        %v6058 = vrot.slane %v5957, 1
        %v6059 = vrot.slane %v5958, 1
        %v6060 = vsel %vm6047, %v6058, %v6059
        %v6061 = vrot.slane %v5959, 1
        %v6062 = vsel %vm6047, %v6059, %v6061
        %v6063 = vrot.slane %v5960, 1
        %v6064 = vrot.slane %v5961, 1
        %v6065 = vsel %vm6047, %v6063, %v6064
        %v6066 = vrot.slane %v5962, 1
        %v6067 = vsel %vm6047, %v6064, %v6066
        %v6068 = vrot.slane %v5963, 1
        %v6069 = vrot.slane %v5964, 1
        %v6070 = vsel %vm6047, %v6068, %v6069
        %v6071 = vrot.slane %v5965, 1
        %v6072 = vsel %vm6047, %v6069, %v6071
        %v6073 = vrot.slane %v5966, 1
        %v6074 = vrot.slane %v5967, 1
        %v6075 = vsel %vm6047, %v6073, %v6074
        %v6076 = vrot.slane %v5968, 1
        %v6077 = vsel %vm6047, %v6074, %v6076
        %v6078 = vrot.slane %v5969, 1
        %v6079 = vrot.slane %v5970, 1
        %v6080 = vsel %vm6047, %v6078, %v6079
        %v6081 = vrot.slane %v5971, 1
        %v6082 = vsel %vm6047, %v6079, %v6081
        %v6083 = vrot.slane %v5972, 1
        %v6084 = vrot.slane %v5973, 1
        %v6085 = vsel %vm6047, %v6083, %v6084
        %v6086 = vrot.slane %v5974, 1
        %v6087 = vsel %vm6047, %v6084, %v6086
        %v6088 = vrot.slane %v5975, 1
        %v6089 = vrot.slane %v5976, 1
        %v6090 = vsel %vm6047, %v6088, %v6089
        %v6091 = vrot.slane %v5977, 1
        %v6092 = vsel %vm6047, %v6089, %v6091
        %v6093 = vrot.slane %v5978, 1
        %v6094 = vrot.slane %v5979, 1
        %v6095 = vsel %vm6047, %v6093, %v6094
        %v6096 = vrot.slane %v5980, 1
        %v6097 = vsel %vm6047, %v6094, %v6096
        %v6098 = vrot.slane %v5981, 1
        %v6099 = vrot.slane %v5982, 1
        %v6100 = vsel %vm6047, %v6098, %v6099
        %v6101 = vrot.slane %v5983, 1
        %v6102 = vsel %vm6047, %v6099, %v6101
        %v6103 = vrot.slane %v5984, 1
        %v6104 = vrot.slane %v5985, 1
        %v6105 = vsel %vm6047, %v6103, %v6104
        %v6106 = vrot.slane %v5986, 1
        %v6107 = vsel %vm6047, %v6104, %v6106
        %v6108 = vrot.slane %v5987, 1
        %v6109 = vrot.slane %v5988, 1
        %v6110 = vsel %vm6047, %v6108, %v6109
        %v6111 = vrot.slane %v5989, 1
        %v6112 = vsel %vm6047, %v6109, %v6111
        %v6113 = vrot.slane %v5990, 1
        %v6114 = vrot.slane %v5991, 1
        %v6115 = vsel %vm6047, %v6113, %v6114
        %v6116 = vrot.slane %v5992, 1
        %v6117 = vsel %vm6047, %v6114, %v6116
        %v6118 = vrot.slane %v5993, 1
        %v6119 = vrot.slane %v5994, 1
        %v6120 = vsel %vm6047, %v6118, %v6119
        %v6121 = vrot.slane %v5995, 1
        %v6122 = vsel %vm6047, %v6119, %v6121
        %v6123 = vrot.slane %v5996, 1
        %v6124 = vrot.slane %v5997, 1
        %v6125 = vsel %vm6047, %v6123, %v6124
        %v6126 = vrot.slane %v5998, 1
        %v6127 = vsel %vm6047, %v6124, %v6126
        %v6160 = vadd.f32 %v5871, %v6050
        %v6161 = vadd.f32 %v5872, %v6052
        %v6162 = vadd.f32 %v5873, %v6055
        %v6163 = vadd.f32 %v5874, %v6057
        %v6164 = vadd.f32 %v5875, %v6060
        %v6165 = vadd.f32 %v5876, %v6062
        %v6166 = vadd.f32 %v5877, %v6065
        %v6167 = vadd.f32 %v5878, %v6067
        %v6168 = vadd.f32 %v5879, %v6070
        %v6169 = vadd.f32 %v5880, %v6072
        %v6170 = vadd.f32 %v5881, %v6075
        %v6171 = vadd.f32 %v5882, %v6077
        %v6172 = vadd.f32 %v5883, %v6080
        %v6173 = vadd.f32 %v5884, %v6082
        %v6174 = vadd.f32 %v5885, %v6085
        %v6175 = vadd.f32 %v5886, %v6087
        %v6176 = vadd.f32 %v5887, %v6090
        %v6177 = vadd.f32 %v5888, %v6092
        %v6178 = vadd.f32 %v5889, %v6095
        %v6179 = vadd.f32 %v5890, %v6097
        %v6180 = vadd.f32 %v5891, %v6100
        %v6181 = vadd.f32 %v5892, %v6102
        %v6182 = vadd.f32 %v5893, %v6105
        %v6183 = vadd.f32 %v5894, %v6107
        %v6184 = vadd.f32 %v5895, %v6110
        %v6185 = vadd.f32 %v5896, %v6112
        %v6186 = vadd.f32 %v5897, %v6115
        %v6187 = vadd.f32 %v5898, %v6117
        %v6188 = vadd.f32 %v5899, %v6120
        %v6189 = vadd.f32 %v5900, %v6122
        %v6190 = vadd.f32 %v5901, %v6125
        %v6191 = vadd.f32 %v5902, %v6127
        %v6192 = vmax.f32 %v6160, 0.0
        %v6193 = vmax.f32 %v6161, 0.0
        %v6194 = vmax.f32 %v6162, 0.0
        %v6195 = vmax.f32 %v6163, 0.0
        %v6196 = vmax.f32 %v6164, 0.0
        %v6197 = vmax.f32 %v6165, 0.0
        %v6198 = vmax.f32 %v6166, 0.0
        %v6199 = vmax.f32 %v6167, 0.0
        %v6200 = vmax.f32 %v6168, 0.0
        %v6201 = vmax.f32 %v6169, 0.0
        %v6202 = vmax.f32 %v6170, 0.0
        %v6203 = vmax.f32 %v6171, 0.0
        %v6204 = vmax.f32 %v6172, 0.0
        %v6205 = vmax.f32 %v6173, 0.0
        %v6206 = vmax.f32 %v6174, 0.0
        %v6207 = vmax.f32 %v6175, 0.0
        %v6208 = vmax.f32 %v6176, 0.0
        %v6209 = vmax.f32 %v6177, 0.0
        %v6210 = vmax.f32 %v6178, 0.0
        %v6211 = vmax.f32 %v6179, 0.0
        %v6212 = vmax.f32 %v6180, 0.0
        %v6213 = vmax.f32 %v6181, 0.0
        %v6214 = vmax.f32 %v6182, 0.0
        %v6215 = vmax.f32 %v6183, 0.0
        %v6216 = vmax.f32 %v6184, 0.0
        %v6217 = vmax.f32 %v6185, 0.0
        %v6218 = vmax.f32 %v6186, 0.0
        %v6219 = vmax.f32 %v6187, 0.0
        %v6220 = vmax.f32 %v6188, 0.0
        %v6221 = vmax.f32 %v6189, 0.0
        %v6222 = vmax.f32 %v6190, 0.0
        %v6223 = vmax.f32 %v6191, 0.0
        %6224 = vst [vmem:[%s379] sm:$0xff] %v6192
        %6225 = vst [vmem:[%s379 + $0x8] sm:$0xff] %v6193
        %6226 = vst [vmem:[%s379 + $0x10] sm:$0xff] %v6194
        %6227 = vst [vmem:[%s379 + $0x18] sm:$0xff] %v6195
        %6228 = vst [vmem:[%s379 + $0x20] sm:$0xff] %v6196
        %6229 = vst [vmem:[%s379 + $0x28] sm:$0xff] %v6197
        %6230 = vst [vmem:[%s379 + $0x30] sm:$0xff] %v6198
        %6231 = vst [vmem:[%s379 + $0x38] sm:$0xff] %v6199
        %6232 = vst [vmem:[%s379 + $0x40] sm:$0xff] %v6200
        %6233 = vst [vmem:[%s379 + $0x48] sm:$0xff] %v6201
        %6234 = vst [vmem:[%s379 + $0x50] sm:$0xff] %v6202
        %6235 = vst [vmem:[%s379 + $0x58] sm:$0xff] %v6203
        %6236 = vst [vmem:[%s379 + $0x60] sm:$0xff] %v6204
        %6237 = vst [vmem:[%s379 + $0x68] sm:$0xff] %v6205
        %6238 = vst [vmem:[%s379 + $0x70] sm:$0xff] %v6206
        %6239 = vst [vmem:[%s379 + $0x78] sm:$0xff] %v6207
        %6240 = vst [vmem:[%s379 + $0x80] sm:$0xff] %v6208
        %6241 = vst [vmem:[%s379 + $0x88] sm:$0xff] %v6209
        %6242 = vst [vmem:[%s379 + $0x90] sm:$0xff] %v6210
        %6243 = vst [vmem:[%s379 + $0x98] sm:$0xff] %v6211
        %6244 = vst [vmem:[%s379 + $0xa0] sm:$0xff] %v6212
        %6245 = vst [vmem:[%s379 + $0xa8] sm:$0xff] %v6213
        %6246 = vst [vmem:[%s379 + $0xb0] sm:$0xff] %v6214
        %6247 = vst [vmem:[%s379 + $0xb8] sm:$0xff] %v6215
        %6248 = vst [vmem:[%s379 + $0xc0] sm:$0xff] %v6216
        %6249 = vst [vmem:[%s379 + $0xc8] sm:$0xff] %v6217
        %6250 = vst [vmem:[%s379 + $0xd0] sm:$0xff] %v6218
        %6251 = vst [vmem:[%s379 + $0xd8] sm:$0xff] %v6219
        %6252 = vst [vmem:[%s379 + $0xe0] sm:$0xff] %v6220
        %6253 = vst [vmem:[%s379 + $0xe8] sm:$0xff] %v6221
        %6254 = vst [vmem:[%s379 + $0xf0] sm:$0xff] %v6222
        %6255 = vst [vmem:[%s379 + $0xf8] sm:$0xff] %v6223
        %s6256 = sand.u32 %s269, 1
        %s6257 = scalar_lea.sflag [#allocation5], %s6256
        %s6258 = sand.u32 %s269, 1
        %s6259 = smul.addr %s6258, 256
        %s6260 = scalar_lea.vmem [#allocation4], %s6259
        // Predicated region
        $region65: #{tpu_custom_call.1} parent=63 // pred_check
          %p6261 = pneg %p279
        $region66: #{tpu_custom_call.1} parent=63 // pred_check_branch
          %6263 = sbr.rel (%p6261) target = $region68
        $region67: #{tpu_custom_call.1} parent=63 // pred_region
          %s6265 = ssub.s32 4096, 4096
          %6266 = vsyncadd %s6257, %s6265
          %s6267 = smul.addr %s25, 32
          %s6268 = smul.addr %s6267, 128
          %s6269 = scalar_lea.hbm %s11, %s6268
          %s6270 = sshll.u32 %s6260, 4
          %s6271 = int_to_ptr.vmem [resolvable:$true] %s6270
          %6276 = dma.vmem_to_hbm [thread:$0]  %s6271, 4096, %s6269, %s6257, 128, 128, 8
        $region68: #{tpu_custom_call.1} parent=63 // pred_fallthru
          _
      $region64: #{tpu_custom_call.1} parent=5 // pred_fallthru
        _
      %p6277 = scmp.le.s32.totalorder 2, %s20
      // Predicated region
      $region69: #{tpu_custom_call.1} parent=5 // pred_check
        %p6278 = pneg %p6277
      $region70: #{tpu_custom_call.1} parent=5 // pred_check_branch
        %6280 = sbr.rel (%p6278) target = $region72
      $region71: #{tpu_custom_call.1} parent=5 // pred_region
        %s6281 = ssub.s32 %s20, 2
        // Predicated region
        $region73: #{tpu_custom_call.1} parent=71 // pred_check
          %p6282 = pneg %p285
        $region74: #{tpu_custom_call.1} parent=71 // pred_check_branch
          %6284 = sbr.rel (%p6282) target = $region76
        $region75: #{tpu_custom_call.1} parent=71 // pred_region
          %s6285 = sand.u32 %s270, 1
          %s6286 = scalar_lea.sflag [#allocation5], %s6285
          %s6287 = sand.u32 %s270, 1
          %s6288 = smul.addr %s6287, 256
          %s6289 = scalar_lea.vmem [#allocation4], %s6288
          %6290 = dma.done %s6286, 4096
        $region76: #{tpu_custom_call.1} parent=71 // pred_fallthru
          _
      $region72: #{tpu_custom_call.1} parent=5 // pred_fallthru
        _
    $region6: #{tpu_custom_call.1} parent=1 // loop_footer
      %s24 = sadd.s32 1, %s20
    $region7: #{tpu_custom_call.1} parent=1 // loop_footer_branch
      %19 = sbr.rel target = $region3
    $region8: #{tpu_custom_call.1} parent=1 // loop_exit
      _
    %6291 = vsyncpa [#allocation5], 1
    %s6292 = scalar_lea.sflag [#allocation5], 1
    %6293 = vsyncpa %s6292, 1

</llo_original>
